<compile_context>
chip_gen: v7x
topology: tpu7x:2x2x1
jax: 0.10.0
libtpu: 0.0.40
codegen_flags: <defaults>
</compile_context>

<pallas_src>
import numpy as np
import jax
import jax.numpy as jnp
from jax import lax
from jax.experimental import pallas as pl
from jax.experimental.pallas import tpu as pltpu


# ----------------------------------------------------------------------------
# Host-side weight preprocessing.
#   lane layout (per branch): lane = c * W + w   (channel-major)
#   SAME conv -> per-row-offset banded (C*W, C*W) matrices, then stacked along
#   the contraction axis and packed block-diagonally for the two branches.
# ----------------------------------------------------------------------------
def build_banded_conv(w_hwio, *, dilation, padding, width):
    """w_hwio: (Kh, Kw, Cin, Cout). Returns (row_offsets, mats[(Kh, W*Cin, W*Cout)])."""
    w = np.asarray(w_hwio, dtype=np.float32)
    kh_, kw_, cin, cout = w.shape
    offsets = tuple(int(kh * dilation - padding) for kh in range(kh_))
    mats = np.zeros((kh_, width * cin, width * cout), np.float32)
    ci_idx = np.arange(cin) * width
    co_idx = np.arange(cout) * width
    for kh in range(kh_):
        for kw in range(kw_):
            dw = kw * dilation - padding
            for wo in range(width):
                wi = wo + dw
                if 0 <= wi < width:
                    mats[kh][np.ix_(ci_idx + wi, co_idx + wo)] += w[kh, kw]
    return offsets, mats


def stack_block_diag(mats):
    """(Kh, L, L) single-branch taps -> (Kh*2L, 2L) stacked block-diagonal matrix."""
    kh_, l_in, l_out = mats.shape
    packed = np.zeros((kh_, 2 * l_in, 2 * l_out), np.float32)
    packed[:, :l_in, :l_out] = mats
    packed[:, l_in:, l_out:] = mats
    return jnp.asarray(packed.reshape(kh_ * 2 * l_in, 2 * l_out))


def rep_bias_packed(b, width):
    """(C,) bias -> (1, 2*C*W) matching lane = branch*C*W + c*W + w."""
    r = np.repeat(np.asarray(b, np.float32), width)
    return jnp.asarray(np.concatenate([r, r])[None, :])


# ----------------------------------------------------------------------------
# Fused kernel: conv chain + projections + cross attention + final residual.
# ----------------------------------------------------------------------------
def _make_fused_kernel(offs_c, offs_d, offs_w, *, C, H, W, heads):
    ch = C // heads
    CW = C * W
    nonzero = sorted({dh for offs in (offs_c, offs_d, offs_w) for dh in offs if dh != 0})

    def kernel(x_ref, m1_ref, m2_ref, m3_ref, mp_ref,
               b1_ref, b2_ref, b3_ref, bp_ref, y_ref):
        f32 = jnp.float32
        x = x_ref[0].astype(f32)                 # (H, 2*CW) = [x1 | x2]

        # Hoisted boundary masks for the conv row offsets (valid iff 0<=r+dh<H).
        rows = lax.broadcasted_iota(jnp.int32, (H, 1), 0)
        masks = {dh: (rows + dh >= 0) & (rows + dh < H) for dh in nonzero}

        def shift_rows(a, dh):
            # y[r, :] = a[r + dh, :] (0 outside), via sublane roll + mask (XLU).
            if dh == 0:
                return a
            rolled = pltpu.roll(a, shift=(-dh) % H, axis=0)
            return jnp.where(masks[dh], rolled, 0.0)

        def band_conv(a, m_ref, offsets, b_ref):
            # All K_h taps folded into ONE matmul: concat the shifted copies
            # along the contraction axis against the stacked banded matrix.
            xs = jnp.concatenate([shift_rows(a, dh) for dh in offsets], axis=-1)
            return jnp.dot(xs, m_ref[...], preferred_element_type=f32) + b_ref[...]

        # --- residual conv chain, both branches at once ----------------------
        x11 = band_conv(x, m1_ref, offs_c, b1_ref) + x          # [x11 | x21]
        x12 = band_conv(x11, m2_ref, offs_d, b2_ref) + x11      # [x12 | x22]
        c3 = band_conv(x12, m3_ref, offs_w, b3_ref)             # [dw(x12)|dw(x22)]
        x12_b1 = x12[:, :CW]
        # PyTorch quirk: branch-2 residual is "+ x12" (branch 1).
        xc = c3 + jnp.concatenate([x12_b1, x12_b1], axis=-1)    # [x1c | x2c]

        outs = jnp.dot(xc, mp_ref[...], preferred_element_type=f32) + bp_ref[...]
        # outs = [out1 | out2]

        # --- cross attention (all heads, both directions) --------------------
        def cross_attn(q_src, kv_src):
            qn = q_src * lax.rsqrt(
                jnp.maximum(jnp.sum(q_src * q_src, axis=-1, keepdims=True), 1e-24))
            kn = kv_src * lax.rsqrt(
                jnp.maximum(jnp.sum(kv_src * kv_src, axis=-1, keepdims=True), 1e-24))
            logits = jnp.dot(qn, kn.T, preferred_element_type=f32)
            logits = logits - jnp.max(logits, axis=-1, keepdims=True)
            p = jnp.exp(logits)
            p = p * pl.reciprocal(jnp.sum(p, axis=-1, keepdims=True))
            # value is the RAW (un-normalized) k-source, residual is normalized q
            return jnp.dot(p, kv_src, preferred_element_type=f32) + qn

        o3_parts, o4_parts = [], []
        for hh in range(heads):
            lo = hh * ch * W
            u = outs[:, lo:lo + ch * W]               # out1, head hh  (H, ch*W)
            v = outs[:, CW + lo:CW + lo + ch * W]     # out2, head hh
            # direction 1 (rows = H): q from out2, k = v = out1
            o3_parts.append(cross_attn(v, u))
            # direction 2 (rows = W): q from out1, k = v = out2.
            # Build the transposed views per channel (contiguous lane slices,
            # tiny (H,W) 2D transposes); last-dim order is a permutation of the
            # reference one, which attention math is invariant to.
            tu = jnp.concatenate(
                [u[:, cc * W:(cc + 1) * W].T for cc in range(ch)], axis=-1)
            tv = jnp.concatenate(
                [v[:, cc * W:(cc + 1) * W].T for cc in range(ch)], axis=-1)
            o4t = cross_attn(tu, tv)                  # (W, ch*H)
            o4_parts.append(jnp.concatenate(
                [o4t[:, cc * H:(cc + 1) * H].T for cc in range(ch)], axis=-1))
        o3 = jnp.concatenate(o3_parts, axis=-1)       # (H, CW), lane = c*W + w
        o4 = jnp.concatenate(o4_parts, axis=-1)

        # --- final projections + residual, reusing the packed proj matrix ----
        pr = jnp.dot(jnp.concatenate([o3, o4], axis=-1), mp_ref[...],
                     preferred_element_type=f32)      # [proj(o3) | proj(o4)] - bias
        y = (pr[:, :CW] + pr[:, CW:] + 2.0 * bp_ref[...][:, :CW]
             + x[:, :CW] + x[:, CW:])
        y_ref[0] = y.astype(y_ref.dtype)

    return kernel


def _fused_call(kernel, x_pk, m1, m2, m3, mp, b1, b2, b3, bp):
    n, h, l = x_pk.shape
    cw = l // 2
    img_in = pl.BlockSpec((1, h, l), lambda b: (b, 0, 0))
    img_out = pl.BlockSpec((1, h, cw), lambda b: (b, 0, 0))

    def full(a):
        return pl.BlockSpec(a.shape, lambda b: (0, 0))

    return pl.pallas_call(
        kernel,
        out_shape=jax.ShapeDtypeStruct((n, h, cw), x_pk.dtype),
        grid=(n,),
        in_specs=[img_in, full(m1), full(m2), full(m3), full(mp),
                  full(b1), full(b2), full(b3), full(bp)],
        out_specs=img_out,
        compiler_params=pltpu.CompilerParams(dimension_semantics=("parallel",)),
    )(x_pk, m1, m2, m3, mp, b1, b2, b3, bp)


# ----------------------------------------------------------------------------
# Layout plumbing (pure reshape/transpose, done once in XLA at the boundary).
# ----------------------------------------------------------------------------
def to_lane_dense(x):
    """NCHW -> (N, H, C*W) with lane = c*W + w (channel-major)."""
    n, c, h, w = x.shape
    return jnp.transpose(x, (0, 2, 1, 3)).reshape(n, h, c * w)


def from_lane_dense(y2d, c):
    n, h, cw = y2d.shape
    w = cw // c
    return jnp.transpose(y2d.reshape(n, h, c, w), (0, 2, 1, 3))


# ----------------------------------------------------------------------------
# Public forward (CCAA.forward(x1, x2)).
# ----------------------------------------------------------------------------
def make_ccaa_forward(weights, *, num, channels, num_heads, height, width):
    C, H, W = channels, height, width
    assert C % num_heads == 0
    p_c = 3 - num
    p_d = 8 - 2 * num
    p_w = 5 - num

    # depthwise conv -> per-tap diagonal channel-mixing matrices
    dw = np.asarray(weights["w_dw"], np.float32)                 # (k_w, k_w, C)
    w_dw_full = dw[:, :, :, None] * np.eye(C, dtype=np.float32)  # (k_w,k_w,C,C)

    offs_c, mc = build_banded_conv(weights["w_c"], dilation=1, padding=p_c, width=W)
    offs_d, md = build_banded_conv(weights["w_d"], dilation=2, padding=p_d, width=W)
    offs_w, mw = build_banded_conv(w_dw_full, dilation=1, padding=p_w, width=W)
    offs_p, mpb = build_banded_conv(weights["w_p"], dilation=1, padding=0, width=W)
    assert offs_p == (0,)

    m1 = stack_block_diag(mc)        # (3*2CW, 2CW)
    m2 = stack_block_diag(md)        # (5*2CW, 2CW)
    m3 = stack_block_diag(mw)        # (7*2CW, 2CW)
    mp = stack_block_diag(mpb)       # (2CW, 2CW)
    b1 = rep_bias_packed(weights["b_c"], W)
    b2 = rep_bias_packed(weights["b_d"], W)
    b3 = rep_bias_packed(weights["b_dw"], W)
    bp = rep_bias_packed(weights["b_p"], W)

    kernel = _make_fused_kernel(offs_c, offs_d, offs_w,
                                C=C, H=H, W=W, heads=num_heads)

    def forward(x1, x2):
        x_pk = jnp.concatenate([to_lane_dense(x1), to_lane_dense(x2)], axis=-1)
        y2d = _fused_call(kernel, x_pk, m1, m2, m3, mp, b1, b2, b3, bp)
        return from_lane_dense(y2d, C)

    return jax.jit(forward)


# ----------------------------------------------------------------------------
# Pure-JAX reference (mirrors the PyTorch forward, incl. the "+ x12" quirk).
# ----------------------------------------------------------------------------
def _reference_forward(x1, x2, weights, *, num, num_heads):
    P = lax.Precision.HIGHEST
    p_c, p_d, p_w = 3 - num, 8 - 2 * num, 5 - num
    n, c, h, w = x1.shape
    heads, ch = num_heads, c // num_heads

    def conv(x, w_hwio, b, pad, dil=1, groups=1):
        y = lax.conv_general_dilated(
            x, jnp.asarray(w_hwio), window_strides=(1, 1),
            padding=[(pad, pad), (pad, pad)], rhs_dilation=(dil, dil),
            dimension_numbers=("NCHW", "HWIO", "NCHW"),
            feature_group_count=groups, precision=P)
        return y + jnp.asarray(b).reshape(1, -1, 1, 1)

    convputong = lambda x: conv(x, weights["w_c"], weights["b_c"], p_c)
    dconv = lambda x: conv(x, weights["w_d"], weights["b_d"], p_d, dil=2)
    w_dw_ref = jnp.asarray(weights["w_dw"])[:, :, None, :]
    dwconv = lambda x: conv(x, w_dw_ref, weights["b_dw"], p_w, groups=c)
    proj = lambda x: conv(x, weights["w_p"], weights["b_p"], 0)

    x11 = convputong(x1) + x1
    x12 = dconv(x11) + x11
    x1c = dwconv(x12) + x12
    x21 = convputong(x2) + x2
    x22 = dconv(x21) + x21
    x2c = dwconv(x22) + x12
    out1 = proj(x1c)
    out2 = proj(x2c)

    def rearr_hw(o):
        return o.reshape(n, heads, ch, h, w).transpose(0, 1, 3, 4, 2).reshape(
            n, heads, h, w * ch)

    def rearr_wh(o):
        return o.reshape(n, heads, ch, h, w).transpose(0, 1, 4, 3, 2).reshape(
            n, heads, w, h * ch)

    def l2n(x):
        nrm = jnp.sqrt(jnp.sum(x * x, axis=-1, keepdims=True))
        return x / jnp.maximum(nrm, 1e-12)

    k1 = rearr_hw(out1); v1 = k1
    k2 = rearr_wh(out2); v2 = k2
    q2 = rearr_wh(out1)
    q1 = rearr_hw(out2)
    q1, q2, k1, k2 = l2n(q1), l2n(q2), l2n(k1), l2n(k2)

    attn1 = jax.nn.softmax(jnp.einsum('bhld,bhmd->bhlm', q1, k1, precision=P), axis=-1)
    out3 = jnp.einsum('bhlm,bhmd->bhld', attn1, v1, precision=P) + q1
    attn2 = jax.nn.softmax(jnp.einsum('bhld,bhmd->bhlm', q2, k2, precision=P), axis=-1)
    out4 = jnp.einsum('bhlm,bhmd->bhld', attn2, v2, precision=P) + q2

    out3 = out3.reshape(n, heads, h, w, ch).transpose(0, 1, 4, 2, 3).reshape(n, c, h, w)
    out4 = out4.reshape(n, heads, w, h, ch).transpose(0, 1, 4, 3, 2).reshape(n, c, h, w)
    return proj(out3) + proj(out4) + x1 + x2


if __name__ == "__main__":
    N, C, H, W = 2, 4, 16, 16
    NUM, HEADS = 2, 2
    k_c, k_d, k_w = 7 - 2 * NUM, 9 - 2 * NUM, 11 - 2 * NUM

    key = jax.random.PRNGKey(0)
    ks = jax.random.split(key, 10)

    def randn(k, shape, scale):
        return jax.random.normal(k, shape, dtype=jnp.float32) * scale

    weights = dict(
        w_c=randn(ks[0], (k_c, k_c, C, C), 0.5 / np.sqrt(C * k_c * k_c)),
        b_c=randn(ks[1], (C,), 0.02),
        w_d=randn(ks[2], (k_d, k_d, C, C), 0.5 / np.sqrt(C * k_d * k_d)),
        b_d=randn(ks[3], (C,), 0.02),
        w_dw=randn(ks[4], (k_w, k_w, C), 0.5 / np.sqrt(k_w * k_w)),
        b_dw=randn(ks[5], (C,), 0.02),
        w_p=randn(ks[6], (1, 1, C, C), 0.5 / np.sqrt(C)),
        b_p=randn(ks[7], (C,), 0.02),
    )
    x1 = jax.random.normal(ks[8], (N, C, H, W), dtype=jnp.float32)
    x2 = jax.random.normal(ks[9], (N, C, H, W), dtype=jnp.float32)

    forward = make_ccaa_forward(weights, num=NUM, channels=C,
                                num_heads=HEADS, height=H, width=W)
    out = jax.block_until_ready(forward(x1, x2))

    ref = jax.block_until_ready(
        _reference_forward(x1, x2, weights, num=NUM, num_heads=HEADS))
    np.testing.assert_allclose(np.asarray(out), np.asarray(ref),
                               rtol=2e-3, atol=2e-3)
    print("KERNEL_OK")
</pallas_src>

<mosaic_0001>
module attributes {stable_mosaic.version = 11 : i64} {
  func.func @kernel(%arg0: i32, %arg1: memref<1x16x128xf32, #tpu.memory_space<vmem>>, %arg2: memref<384x128xf32, #tpu.memory_space<vmem>>, %arg3: memref<640x128xf32, #tpu.memory_space<vmem>>, %arg4: memref<896x128xf32, #tpu.memory_space<vmem>>, %arg5: memref<128x128xf32, #tpu.memory_space<vmem>>, %arg6: memref<1x128xf32, #tpu.memory_space<vmem>>, %arg7: memref<1x128xf32, #tpu.memory_space<vmem>>, %arg8: memref<1x128xf32, #tpu.memory_space<vmem>>, %arg9: memref<1x128xf32, #tpu.memory_space<vmem>>, %arg10: memref<1x16x64xf32, #tpu.memory_space<vmem>>) attributes {dimension_semantics = [#tpu.dimension_semantics<parallel>], iteration_bounds = array<i64: 2>, scalar_prefetch = 0 : i64, scratch_operands = 0 : i64, tpu.core_type = #tpu.core_type<tc>, window_params = [{transform_indices = @transform_0, window_bounds = array<i64: 1, 16, 128>}, {pipeline_mode = #tpu.pipeline_mode<synchronous>, transform_indices = @transform_1, window_bounds = array<i64: 384, 128>}, {pipeline_mode = #tpu.pipeline_mode<synchronous>, transform_indices = @transform_2, window_bounds = array<i64: 640, 128>}, {pipeline_mode = #tpu.pipeline_mode<synchronous>, transform_indices = @transform_3, window_bounds = array<i64: 896, 128>}, {pipeline_mode = #tpu.pipeline_mode<synchronous>, transform_indices = @transform_4, window_bounds = array<i64: 128, 128>}, {pipeline_mode = #tpu.pipeline_mode<synchronous>, transform_indices = @transform_5, window_bounds = array<i64: 1, 128>}, {pipeline_mode = #tpu.pipeline_mode<synchronous>, transform_indices = @transform_6, window_bounds = array<i64: 1, 128>}, {pipeline_mode = #tpu.pipeline_mode<synchronous>, transform_indices = @transform_7, window_bounds = array<i64: 1, 128>}, {pipeline_mode = #tpu.pipeline_mode<synchronous>, transform_indices = @transform_8, window_bounds = array<i64: 1, 128>}, {transform_indices = @transform_9, window_bounds = array<i64: 1, 16, 64>}]} {
    %c0 = arith.constant 0 : index
    %c0_0 = arith.constant 0 : index
    %c0_1 = arith.constant 0 : index
    %0 = vector.load %arg1[%c0, %c0_0, %c0_1] : memref<1x16x128xf32, #tpu.memory_space<vmem>>, vector<1x16x128xf32>
    %1 = vector.shape_cast %0 : vector<1x16x128xf32> to vector<16x128xf32>
    %2 = tpu.iota {dimensions = array<i32: 0>} : vector<16x1xi32>
    %c-4_i32 = arith.constant -4 : i32
    %3 = vector.broadcast %c-4_i32 : i32 to vector<16x1xi32>
    %4 = arith.addi %2, %3 : vector<16x1xi32>
    %c0_i32 = arith.constant 0 : i32
    %5 = vector.broadcast %c0_i32 : i32 to vector<16x1xi32>
    %6 = arith.cmpi sge, %4, %5 : vector<16x1xi32>
    %c-4_i32_2 = arith.constant -4 : i32
    %7 = vector.broadcast %c-4_i32_2 : i32 to vector<16x1xi32>
    %8 = arith.addi %2, %7 : vector<16x1xi32>
    %c16_i32 = arith.constant 16 : i32
    %9 = vector.broadcast %c16_i32 : i32 to vector<16x1xi32>
    %10 = arith.cmpi slt, %8, %9 : vector<16x1xi32>
    %11 = arith.andi %6, %10 : vector<16x1xi1>
    %c-3_i32 = arith.constant -3 : i32
    %12 = vector.broadcast %c-3_i32 : i32 to vector<16x1xi32>
    %13 = arith.addi %2, %12 : vector<16x1xi32>
    %c0_i32_3 = arith.constant 0 : i32
    %14 = vector.broadcast %c0_i32_3 : i32 to vector<16x1xi32>
    %15 = arith.cmpi sge, %13, %14 : vector<16x1xi32>
    %c-3_i32_4 = arith.constant -3 : i32
    %16 = vector.broadcast %c-3_i32_4 : i32 to vector<16x1xi32>
    %17 = arith.addi %2, %16 : vector<16x1xi32>
    %c16_i32_5 = arith.constant 16 : i32
    %18 = vector.broadcast %c16_i32_5 : i32 to vector<16x1xi32>
    %19 = arith.cmpi slt, %17, %18 : vector<16x1xi32>
    %20 = arith.andi %15, %19 : vector<16x1xi1>
    %c-2_i32 = arith.constant -2 : i32
    %21 = vector.broadcast %c-2_i32 : i32 to vector<16x1xi32>
    %22 = arith.addi %2, %21 : vector<16x1xi32>
    %c0_i32_6 = arith.constant 0 : i32
    %23 = vector.broadcast %c0_i32_6 : i32 to vector<16x1xi32>
    %24 = arith.cmpi sge, %22, %23 : vector<16x1xi32>
    %c-2_i32_7 = arith.constant -2 : i32
    %25 = vector.broadcast %c-2_i32_7 : i32 to vector<16x1xi32>
    %26 = arith.addi %2, %25 : vector<16x1xi32>
    %c16_i32_8 = arith.constant 16 : i32
    %27 = vector.broadcast %c16_i32_8 : i32 to vector<16x1xi32>
    %28 = arith.cmpi slt, %26, %27 : vector<16x1xi32>
    %29 = arith.andi %24, %28 : vector<16x1xi1>
    %c-1_i32 = arith.constant -1 : i32
    %30 = vector.broadcast %c-1_i32 : i32 to vector<16x1xi32>
    %31 = arith.addi %2, %30 : vector<16x1xi32>
    %c0_i32_9 = arith.constant 0 : i32
    %32 = vector.broadcast %c0_i32_9 : i32 to vector<16x1xi32>
    %33 = arith.cmpi sge, %31, %32 : vector<16x1xi32>
    %c-1_i32_10 = arith.constant -1 : i32
    %34 = vector.broadcast %c-1_i32_10 : i32 to vector<16x1xi32>
    %35 = arith.addi %2, %34 : vector<16x1xi32>
    %c16_i32_11 = arith.constant 16 : i32
    %36 = vector.broadcast %c16_i32_11 : i32 to vector<16x1xi32>
    %37 = arith.cmpi slt, %35, %36 : vector<16x1xi32>
    %38 = arith.andi %33, %37 : vector<16x1xi1>
    %c1_i32 = arith.constant 1 : i32
    %39 = vector.broadcast %c1_i32 : i32 to vector<16x1xi32>
    %40 = arith.addi %2, %39 : vector<16x1xi32>
    %c0_i32_12 = arith.constant 0 : i32
    %41 = vector.broadcast %c0_i32_12 : i32 to vector<16x1xi32>
    %42 = arith.cmpi sge, %40, %41 : vector<16x1xi32>
    %c1_i32_13 = arith.constant 1 : i32
    %43 = vector.broadcast %c1_i32_13 : i32 to vector<16x1xi32>
    %44 = arith.addi %2, %43 : vector<16x1xi32>
    %c16_i32_14 = arith.constant 16 : i32
    %45 = vector.broadcast %c16_i32_14 : i32 to vector<16x1xi32>
    %46 = arith.cmpi slt, %44, %45 : vector<16x1xi32>
    %47 = arith.andi %42, %46 : vector<16x1xi1>
    %c2_i32 = arith.constant 2 : i32
    %48 = vector.broadcast %c2_i32 : i32 to vector<16x1xi32>
    %49 = arith.addi %2, %48 : vector<16x1xi32>
    %c0_i32_15 = arith.constant 0 : i32
    %50 = vector.broadcast %c0_i32_15 : i32 to vector<16x1xi32>
    %51 = arith.cmpi sge, %49, %50 : vector<16x1xi32>
    %c2_i32_16 = arith.constant 2 : i32
    %52 = vector.broadcast %c2_i32_16 : i32 to vector<16x1xi32>
    %53 = arith.addi %2, %52 : vector<16x1xi32>
    %c16_i32_17 = arith.constant 16 : i32
    %54 = vector.broadcast %c16_i32_17 : i32 to vector<16x1xi32>
    %55 = arith.cmpi slt, %53, %54 : vector<16x1xi32>
    %56 = arith.andi %51, %55 : vector<16x1xi1>
    %c3_i32 = arith.constant 3 : i32
    %57 = vector.broadcast %c3_i32 : i32 to vector<16x1xi32>
    %58 = arith.addi %2, %57 : vector<16x1xi32>
    %c0_i32_18 = arith.constant 0 : i32
    %59 = vector.broadcast %c0_i32_18 : i32 to vector<16x1xi32>
    %60 = arith.cmpi sge, %58, %59 : vector<16x1xi32>
    %c3_i32_19 = arith.constant 3 : i32
    %61 = vector.broadcast %c3_i32_19 : i32 to vector<16x1xi32>
    %62 = arith.addi %2, %61 : vector<16x1xi32>
    %c16_i32_20 = arith.constant 16 : i32
    %63 = vector.broadcast %c16_i32_20 : i32 to vector<16x1xi32>
    %64 = arith.cmpi slt, %62, %63 : vector<16x1xi32>
    %65 = arith.andi %60, %64 : vector<16x1xi1>
    %c4_i32 = arith.constant 4 : i32
    %66 = vector.broadcast %c4_i32 : i32 to vector<16x1xi32>
    %67 = arith.addi %2, %66 : vector<16x1xi32>
    %c0_i32_21 = arith.constant 0 : i32
    %68 = vector.broadcast %c0_i32_21 : i32 to vector<16x1xi32>
    %69 = arith.cmpi sge, %67, %68 : vector<16x1xi32>
    %c4_i32_22 = arith.constant 4 : i32
    %70 = vector.broadcast %c4_i32_22 : i32 to vector<16x1xi32>
    %71 = arith.addi %2, %70 : vector<16x1xi32>
    %c16_i32_23 = arith.constant 16 : i32
    %72 = vector.broadcast %c16_i32_23 : i32 to vector<16x1xi32>
    %73 = arith.cmpi slt, %71, %72 : vector<16x1xi32>
    %74 = arith.andi %69, %73 : vector<16x1xi1>
    %c1_i32_24 = arith.constant 1 : i32
    %75 = tpu.dynamic_rotate %1 by %c1_i32_24 dim 0 : vector<16x128xf32>, i32 -> vector<16x128xf32>
    %cst = arith.constant 0.000000e+00 : f32
    %76 = vector.shape_cast %38 : vector<16x1xi1> to vector<16x1xi1>
    %77 = vector.broadcast %76 : vector<16x1xi1> to vector<16x128xi1>
    %78 = vector.broadcast %cst : f32 to vector<16x128xf32>
    %79 = arith.select %77, %75, %78 : vector<16x128xi1>, vector<16x128xf32>
    %c15_i32 = arith.constant 15 : i32
    %80 = tpu.dynamic_rotate %1 by %c15_i32 dim 0 : vector<16x128xf32>, i32 -> vector<16x128xf32>
    %cst_25 = arith.constant 0.000000e+00 : f32
    %81 = vector.shape_cast %47 : vector<16x1xi1> to vector<16x1xi1>
    %82 = vector.broadcast %81 : vector<16x1xi1> to vector<16x128xi1>
    %83 = vector.broadcast %cst_25 : f32 to vector<16x128xf32>
    %84 = arith.select %82, %80, %83 : vector<16x128xi1>, vector<16x128xf32>
    %85 = tpu.concatenate %79, %1, %84 in 1 : vector<16x128xf32>, vector<16x128xf32>, vector<16x128xf32> -> vector<16x384xf32>
    %c0_26 = arith.constant 0 : index
    %c0_27 = arith.constant 0 : index
    %86 = vector.load %arg2[%c0_26, %c0_27] : memref<384x128xf32, #tpu.memory_space<vmem>>, vector<384x128xf32>
    %cst_28 = arith.constant dense<0.000000e+00> : vector<16x128xf32>
    %87 = tpu.matmul %85, %86, %cst_28 {dimension_numbers = #tpu.dot_dimension_numbers<[1], [0], [0], [1], [0, 0, 1, 1], [], []>} : vector<16x384xf32>, vector<384x128xf32>, vector<16x128xf32> -> vector<16x128xf32>
    %c0_29 = arith.constant 0 : index
    %c0_30 = arith.constant 0 : index
    %88 = vector.load %arg6[%c0_29, %c0_30] : memref<1x128xf32, #tpu.memory_space<vmem>>, vector<1x128xf32>
    %89 = vector.broadcast %88 : vector<1x128xf32> to vector<16x128xf32>
    %90 = arith.addf %87, %89 : vector<16x128xf32>
    %91 = arith.addf %90, %1 : vector<16x128xf32>
    %c4_i32_31 = arith.constant 4 : i32
    %92 = tpu.dynamic_rotate %91 by %c4_i32_31 dim 0 : vector<16x128xf32>, i32 -> vector<16x128xf32>
    %cst_32 = arith.constant 0.000000e+00 : f32
    %93 = vector.shape_cast %11 : vector<16x1xi1> to vector<16x1xi1>
    %94 = vector.broadcast %93 : vector<16x1xi1> to vector<16x128xi1>
    %95 = vector.broadcast %cst_32 : f32 to vector<16x128xf32>
    %96 = arith.select %94, %92, %95 : vector<16x128xi1>, vector<16x128xf32>
    %c2_i32_33 = arith.constant 2 : i32
    %97 = tpu.dynamic_rotate %91 by %c2_i32_33 dim 0 : vector<16x128xf32>, i32 -> vector<16x128xf32>
    %cst_34 = arith.constant 0.000000e+00 : f32
    %98 = vector.shape_cast %29 : vector<16x1xi1> to vector<16x1xi1>
    %99 = vector.broadcast %98 : vector<16x1xi1> to vector<16x128xi1>
    %100 = vector.broadcast %cst_34 : f32 to vector<16x128xf32>
    %101 = arith.select %99, %97, %100 : vector<16x128xi1>, vector<16x128xf32>
    %c14_i32 = arith.constant 14 : i32
    %102 = tpu.dynamic_rotate %91 by %c14_i32 dim 0 : vector<16x128xf32>, i32 -> vector<16x128xf32>
    %cst_35 = arith.constant 0.000000e+00 : f32
    %103 = vector.shape_cast %56 : vector<16x1xi1> to vector<16x1xi1>
    %104 = vector.broadcast %103 : vector<16x1xi1> to vector<16x128xi1>
    %105 = vector.broadcast %cst_35 : f32 to vector<16x128xf32>
    %106 = arith.select %104, %102, %105 : vector<16x128xi1>, vector<16x128xf32>
    %c12_i32 = arith.constant 12 : i32
    %107 = tpu.dynamic_rotate %91 by %c12_i32 dim 0 : vector<16x128xf32>, i32 -> vector<16x128xf32>
    %cst_36 = arith.constant 0.000000e+00 : f32
    %108 = vector.shape_cast %74 : vector<16x1xi1> to vector<16x1xi1>
    %109 = vector.broadcast %108 : vector<16x1xi1> to vector<16x128xi1>
    %110 = vector.broadcast %cst_36 : f32 to vector<16x128xf32>
    %111 = arith.select %109, %107, %110 : vector<16x128xi1>, vector<16x128xf32>
    %112 = tpu.concatenate %96, %101, %91, %106, %111 in 1 : vector<16x128xf32>, vector<16x128xf32>, vector<16x128xf32>, vector<16x128xf32>, vector<16x128xf32> -> vector<16x640xf32>
    %c0_37 = arith.constant 0 : index
    %c0_38 = arith.constant 0 : index
    %113 = vector.load %arg3[%c0_37, %c0_38] : memref<640x128xf32, #tpu.memory_space<vmem>>, vector<640x128xf32>
    %cst_39 = arith.constant dense<0.000000e+00> : vector<16x128xf32>
    %114 = tpu.matmul %112, %113, %cst_39 {dimension_numbers = #tpu.dot_dimension_numbers<[1], [0], [0], [1], [0, 0, 1, 1], [], []>} : vector<16x640xf32>, vector<640x128xf32>, vector<16x128xf32> -> vector<16x128xf32>
    %c0_40 = arith.constant 0 : index
    %c0_41 = arith.constant 0 : index
    %115 = vector.load %arg7[%c0_40, %c0_41] : memref<1x128xf32, #tpu.memory_space<vmem>>, vector<1x128xf32>
    %116 = vector.broadcast %115 : vector<1x128xf32> to vector<16x128xf32>
    %117 = arith.addf %114, %116 : vector<16x128xf32>
    %118 = arith.addf %117, %91 : vector<16x128xf32>
    %c3_i32_42 = arith.constant 3 : i32
    %119 = tpu.dynamic_rotate %118 by %c3_i32_42 dim 0 : vector<16x128xf32>, i32 -> vector<16x128xf32>
    %cst_43 = arith.constant 0.000000e+00 : f32
    %120 = vector.shape_cast %20 : vector<16x1xi1> to vector<16x1xi1>
    %121 = vector.broadcast %120 : vector<16x1xi1> to vector<16x128xi1>
    %122 = vector.broadcast %cst_43 : f32 to vector<16x128xf32>
    %123 = arith.select %121, %119, %122 : vector<16x128xi1>, vector<16x128xf32>
    %c2_i32_44 = arith.constant 2 : i32
    %124 = tpu.dynamic_rotate %118 by %c2_i32_44 dim 0 : vector<16x128xf32>, i32 -> vector<16x128xf32>
    %cst_45 = arith.constant 0.000000e+00 : f32
    %125 = vector.shape_cast %29 : vector<16x1xi1> to vector<16x1xi1>
    %126 = vector.broadcast %125 : vector<16x1xi1> to vector<16x128xi1>
    %127 = vector.broadcast %cst_45 : f32 to vector<16x128xf32>
    %128 = arith.select %126, %124, %127 : vector<16x128xi1>, vector<16x128xf32>
    %c1_i32_46 = arith.constant 1 : i32
    %129 = tpu.dynamic_rotate %118 by %c1_i32_46 dim 0 : vector<16x128xf32>, i32 -> vector<16x128xf32>
    %cst_47 = arith.constant 0.000000e+00 : f32
    %130 = vector.shape_cast %38 : vector<16x1xi1> to vector<16x1xi1>
    %131 = vector.broadcast %130 : vector<16x1xi1> to vector<16x128xi1>
    %132 = vector.broadcast %cst_47 : f32 to vector<16x128xf32>
    %133 = arith.select %131, %129, %132 : vector<16x128xi1>, vector<16x128xf32>
    %c15_i32_48 = arith.constant 15 : i32
    %134 = tpu.dynamic_rotate %118 by %c15_i32_48 dim 0 : vector<16x128xf32>, i32 -> vector<16x128xf32>
    %cst_49 = arith.constant 0.000000e+00 : f32
    %135 = vector.shape_cast %47 : vector<16x1xi1> to vector<16x1xi1>
    %136 = vector.broadcast %135 : vector<16x1xi1> to vector<16x128xi1>
    %137 = vector.broadcast %cst_49 : f32 to vector<16x128xf32>
    %138 = arith.select %136, %134, %137 : vector<16x128xi1>, vector<16x128xf32>
    %c14_i32_50 = arith.constant 14 : i32
    %139 = tpu.dynamic_rotate %118 by %c14_i32_50 dim 0 : vector<16x128xf32>, i32 -> vector<16x128xf32>
    %cst_51 = arith.constant 0.000000e+00 : f32
    %140 = vector.shape_cast %56 : vector<16x1xi1> to vector<16x1xi1>
    %141 = vector.broadcast %140 : vector<16x1xi1> to vector<16x128xi1>
    %142 = vector.broadcast %cst_51 : f32 to vector<16x128xf32>
    %143 = arith.select %141, %139, %142 : vector<16x128xi1>, vector<16x128xf32>
    %c13_i32 = arith.constant 13 : i32
    %144 = tpu.dynamic_rotate %118 by %c13_i32 dim 0 : vector<16x128xf32>, i32 -> vector<16x128xf32>
    %cst_52 = arith.constant 0.000000e+00 : f32
    %145 = vector.shape_cast %65 : vector<16x1xi1> to vector<16x1xi1>
    %146 = vector.broadcast %145 : vector<16x1xi1> to vector<16x128xi1>
    %147 = vector.broadcast %cst_52 : f32 to vector<16x128xf32>
    %148 = arith.select %146, %144, %147 : vector<16x128xi1>, vector<16x128xf32>
    %149 = tpu.concatenate %123, %128, %133, %118, %138, %143, %148 in 1 : vector<16x128xf32>, vector<16x128xf32>, vector<16x128xf32>, vector<16x128xf32>, vector<16x128xf32>, vector<16x128xf32>, vector<16x128xf32> -> vector<16x896xf32>
    %c0_53 = arith.constant 0 : index
    %c0_54 = arith.constant 0 : index
    %150 = vector.load %arg4[%c0_53, %c0_54] : memref<896x128xf32, #tpu.memory_space<vmem>>, vector<896x128xf32>
    %cst_55 = arith.constant dense<0.000000e+00> : vector<16x128xf32>
    %151 = tpu.matmul %149, %150, %cst_55 {dimension_numbers = #tpu.dot_dimension_numbers<[1], [0], [0], [1], [0, 0, 1, 1], [], []>} : vector<16x896xf32>, vector<896x128xf32>, vector<16x128xf32> -> vector<16x128xf32>
    %c0_56 = arith.constant 0 : index
    %c0_57 = arith.constant 0 : index
    %152 = vector.load %arg8[%c0_56, %c0_57] : memref<1x128xf32, #tpu.memory_space<vmem>>, vector<1x128xf32>
    %153 = vector.broadcast %152 : vector<1x128xf32> to vector<16x128xf32>
    %154 = arith.addf %151, %153 : vector<16x128xf32>
    %155 = vector.extract_strided_slice %118 {offsets = [0, 0], sizes = [16, 64], strides = [1, 1]} : vector<16x128xf32> to vector<16x64xf32>
    %156 = tpu.concatenate %155, %155 in 1 : vector<16x64xf32>, vector<16x64xf32> -> vector<16x128xf32>
    %157 = arith.addf %154, %156 : vector<16x128xf32>
    %c0_58 = arith.constant 0 : index
    %c0_59 = arith.constant 0 : index
    %158 = vector.load %arg5[%c0_58, %c0_59] : memref<128x128xf32, #tpu.memory_space<vmem>>, vector<128x128xf32>
    %cst_60 = arith.constant dense<0.000000e+00> : vector<16x128xf32>
    %159 = tpu.matmul %157, %158, %cst_60 {dimension_numbers = #tpu.dot_dimension_numbers<[1], [0], [0], [1], [0, 0, 1, 1], [], []>} : vector<16x128xf32>, vector<128x128xf32>, vector<16x128xf32> -> vector<16x128xf32>
    %c0_61 = arith.constant 0 : index
    %c0_62 = arith.constant 0 : index
    %160 = vector.load %arg9[%c0_61, %c0_62] : memref<1x128xf32, #tpu.memory_space<vmem>>, vector<1x128xf32>
    %161 = vector.broadcast %160 : vector<1x128xf32> to vector<16x128xf32>
    %162 = arith.addf %159, %161 : vector<16x128xf32>
    %163 = vector.extract_strided_slice %162 {offsets = [0, 0], sizes = [16, 32], strides = [1, 1]} : vector<16x128xf32> to vector<16x32xf32>
    %164 = vector.extract_strided_slice %162 {offsets = [0, 64], sizes = [16, 32], strides = [1, 1]} : vector<16x128xf32> to vector<16x32xf32>
    %165 = arith.mulf %164, %164 : vector<16x32xf32>
    %cst_63 = arith.constant dense<0.000000e+00> : vector<16xf32>
    %166 = vector.multi_reduction <add>, %165, %cst_63 [1] : vector<16x32xf32> to vector<16xf32>
    %167 = vector.shape_cast %166 : vector<16xf32> to vector<16x1xf32>
    %cst_64 = arith.constant 1.000000e-24 : f32
    %168 = vector.broadcast %cst_64 : f32 to vector<16x1xf32>
    %169 = arith.maximumf %167, %168 : vector<16x1xf32>
    %170 = math.rsqrt %169 : vector<16x1xf32>
    %171 = vector.broadcast %170 : vector<16x1xf32> to vector<16x32xf32>
    %172 = arith.mulf %164, %171 : vector<16x32xf32>
    %173 = arith.mulf %163, %163 : vector<16x32xf32>
    %cst_65 = arith.constant dense<0.000000e+00> : vector<16xf32>
    %174 = vector.multi_reduction <add>, %173, %cst_65 [1] : vector<16x32xf32> to vector<16xf32>
    %175 = vector.shape_cast %174 : vector<16xf32> to vector<16x1xf32>
    %cst_66 = arith.constant 1.000000e-24 : f32
    %176 = vector.broadcast %cst_66 : f32 to vector<16x1xf32>
    %177 = arith.maximumf %175, %176 : vector<16x1xf32>
    %178 = math.rsqrt %177 : vector<16x1xf32>
    %179 = vector.broadcast %178 : vector<16x1xf32> to vector<16x32xf32>
    %180 = arith.mulf %163, %179 : vector<16x32xf32>
    %181 = tpu.transpose %180, [1, 0] : vector<16x32xf32> -> vector<32x16xf32>
    %cst_67 = arith.constant dense<0.000000e+00> : vector<16x16xf32>
    %182 = tpu.matmul %172, %181, %cst_67 {dimension_numbers = #tpu.dot_dimension_numbers<[1], [0], [0], [1], [0, 0, 1, 1], [], []>} : vector<16x32xf32>, vector<32x16xf32>, vector<16x16xf32> -> vector<16x16xf32>
    %cst_68 = arith.constant dense<0xFF800000> : vector<16xf32>
    %183 = vector.multi_reduction <maximumf>, %182, %cst_68 [1] : vector<16x16xf32> to vector<16xf32>
    %184 = vector.shape_cast %183 : vector<16xf32> to vector<16x1xf32>
    %185 = vector.broadcast %184 : vector<16x1xf32> to vector<16x16xf32>
    %186 = arith.subf %182, %185 : vector<16x16xf32>
    %187 = math.exp %186 : vector<16x16xf32>
    %cst_69 = arith.constant dense<0.000000e+00> : vector<16xf32>
    %188 = vector.multi_reduction <add>, %187, %cst_69 [1] : vector<16x16xf32> to vector<16xf32>
    %189 = vector.shape_cast %188 : vector<16xf32> to vector<16x1xf32>
    %190 = tpu.reciprocal %189 : vector<16x1xf32> -> vector<16x1xf32>
    %191 = vector.broadcast %190 : vector<16x1xf32> to vector<16x16xf32>
    %192 = arith.mulf %187, %191 : vector<16x16xf32>
    %cst_70 = arith.constant dense<0.000000e+00> : vector<16x32xf32>
    %193 = tpu.matmul %192, %163, %cst_70 {dimension_numbers = #tpu.dot_dimension_numbers<[1], [0], [0], [1], [0, 0, 1, 1], [], []>} : vector<16x16xf32>, vector<16x32xf32>, vector<16x32xf32> -> vector<16x32xf32>
    %194 = arith.addf %193, %172 : vector<16x32xf32>
    %195 = vector.extract_strided_slice %163 {offsets = [0, 0], sizes = [16, 16], strides = [1, 1]} : vector<16x32xf32> to vector<16x16xf32>
    %196 = tpu.transpose %195, [1, 0] : vector<16x16xf32> -> vector<16x16xf32>
    %197 = vector.extract_strided_slice %163 {offsets = [0, 16], sizes = [16, 16], strides = [1, 1]} : vector<16x32xf32> to vector<16x16xf32>
    %198 = tpu.transpose %197, [1, 0] : vector<16x16xf32> -> vector<16x16xf32>
    %199 = tpu.concatenate %196, %198 in 1 : vector<16x16xf32>, vector<16x16xf32> -> vector<16x32xf32>
    %200 = vector.extract_strided_slice %164 {offsets = [0, 0], sizes = [16, 16], strides = [1, 1]} : vector<16x32xf32> to vector<16x16xf32>
    %201 = tpu.transpose %200, [1, 0] : vector<16x16xf32> -> vector<16x16xf32>
    %202 = vector.extract_strided_slice %164 {offsets = [0, 16], sizes = [16, 16], strides = [1, 1]} : vector<16x32xf32> to vector<16x16xf32>
    %203 = tpu.transpose %202, [1, 0] : vector<16x16xf32> -> vector<16x16xf32>
    %204 = tpu.concatenate %201, %203 in 1 : vector<16x16xf32>, vector<16x16xf32> -> vector<16x32xf32>
    %205 = arith.mulf %199, %199 : vector<16x32xf32>
    %cst_71 = arith.constant dense<0.000000e+00> : vector<16xf32>
    %206 = vector.multi_reduction <add>, %205, %cst_71 [1] : vector<16x32xf32> to vector<16xf32>
    %207 = vector.shape_cast %206 : vector<16xf32> to vector<16x1xf32>
    %cst_72 = arith.constant 1.000000e-24 : f32
    %208 = vector.broadcast %cst_72 : f32 to vector<16x1xf32>
    %209 = arith.maximumf %207, %208 : vector<16x1xf32>
    %210 = math.rsqrt %209 : vector<16x1xf32>
    %211 = vector.broadcast %210 : vector<16x1xf32> to vector<16x32xf32>
    %212 = arith.mulf %199, %211 : vector<16x32xf32>
    %213 = arith.mulf %204, %204 : vector<16x32xf32>
    %cst_73 = arith.constant dense<0.000000e+00> : vector<16xf32>
    %214 = vector.multi_reduction <add>, %213, %cst_73 [1] : vector<16x32xf32> to vector<16xf32>
    %215 = vector.shape_cast %214 : vector<16xf32> to vector<16x1xf32>
    %cst_74 = arith.constant 1.000000e-24 : f32
    %216 = vector.broadcast %cst_74 : f32 to vector<16x1xf32>
    %217 = arith.maximumf %215, %216 : vector<16x1xf32>
    %218 = math.rsqrt %217 : vector<16x1xf32>
    %219 = vector.broadcast %218 : vector<16x1xf32> to vector<16x32xf32>
    %220 = arith.mulf %204, %219 : vector<16x32xf32>
    %221 = tpu.transpose %220, [1, 0] : vector<16x32xf32> -> vector<32x16xf32>
    %cst_75 = arith.constant dense<0.000000e+00> : vector<16x16xf32>
    %222 = tpu.matmul %212, %221, %cst_75 {dimension_numbers = #tpu.dot_dimension_numbers<[1], [0], [0], [1], [0, 0, 1, 1], [], []>} : vector<16x32xf32>, vector<32x16xf32>, vector<16x16xf32> -> vector<16x16xf32>
    %cst_76 = arith.constant dense<0xFF800000> : vector<16xf32>
    %223 = vector.multi_reduction <maximumf>, %222, %cst_76 [1] : vector<16x16xf32> to vector<16xf32>
    %224 = vector.shape_cast %223 : vector<16xf32> to vector<16x1xf32>
    %225 = vector.broadcast %224 : vector<16x1xf32> to vector<16x16xf32>
    %226 = arith.subf %222, %225 : vector<16x16xf32>
    %227 = math.exp %226 : vector<16x16xf32>
    %cst_77 = arith.constant dense<0.000000e+00> : vector<16xf32>
    %228 = vector.multi_reduction <add>, %227, %cst_77 [1] : vector<16x16xf32> to vector<16xf32>
    %229 = vector.shape_cast %228 : vector<16xf32> to vector<16x1xf32>
    %230 = tpu.reciprocal %229 : vector<16x1xf32> -> vector<16x1xf32>
    %231 = vector.broadcast %230 : vector<16x1xf32> to vector<16x16xf32>
    %232 = arith.mulf %227, %231 : vector<16x16xf32>
    %cst_78 = arith.constant dense<0.000000e+00> : vector<16x32xf32>
    %233 = tpu.matmul %232, %204, %cst_78 {dimension_numbers = #tpu.dot_dimension_numbers<[1], [0], [0], [1], [0, 0, 1, 1], [], []>} : vector<16x16xf32>, vector<16x32xf32>, vector<16x32xf32> -> vector<16x32xf32>
    %234 = arith.addf %233, %212 : vector<16x32xf32>
    %235 = vector.extract_strided_slice %234 {offsets = [0, 0], sizes = [16, 16], strides = [1, 1]} : vector<16x32xf32> to vector<16x16xf32>
    %236 = tpu.transpose %235, [1, 0] : vector<16x16xf32> -> vector<16x16xf32>
    %237 = vector.extract_strided_slice %234 {offsets = [0, 16], sizes = [16, 16], strides = [1, 1]} : vector<16x32xf32> to vector<16x16xf32>
    %238 = tpu.transpose %237, [1, 0] : vector<16x16xf32> -> vector<16x16xf32>
    %239 = tpu.concatenate %236, %238 in 1 : vector<16x16xf32>, vector<16x16xf32> -> vector<16x32xf32>
    %240 = vector.extract_strided_slice %162 {offsets = [0, 32], sizes = [16, 32], strides = [1, 1]} : vector<16x128xf32> to vector<16x32xf32>
    %241 = vector.extract_strided_slice %162 {offsets = [0, 96], sizes = [16, 32], strides = [1, 1]} : vector<16x128xf32> to vector<16x32xf32>
    %242 = arith.mulf %241, %241 : vector<16x32xf32>
    %cst_79 = arith.constant dense<0.000000e+00> : vector<16xf32>
    %243 = vector.multi_reduction <add>, %242, %cst_79 [1] : vector<16x32xf32> to vector<16xf32>
    %244 = vector.shape_cast %243 : vector<16xf32> to vector<16x1xf32>
    %cst_80 = arith.constant 1.000000e-24 : f32
    %245 = vector.broadcast %cst_80 : f32 to vector<16x1xf32>
    %246 = arith.maximumf %244, %245 : vector<16x1xf32>
    %247 = math.rsqrt %246 : vector<16x1xf32>
    %248 = vector.broadcast %247 : vector<16x1xf32> to vector<16x32xf32>
    %249 = arith.mulf %241, %248 : vector<16x32xf32>
    %250 = arith.mulf %240, %240 : vector<16x32xf32>
    %cst_81 = arith.constant dense<0.000000e+00> : vector<16xf32>
    %251 = vector.multi_reduction <add>, %250, %cst_81 [1] : vector<16x32xf32> to vector<16xf32>
    %252 = vector.shape_cast %251 : vector<16xf32> to vector<16x1xf32>
    %cst_82 = arith.constant 1.000000e-24 : f32
    %253 = vector.broadcast %cst_82 : f32 to vector<16x1xf32>
    %254 = arith.maximumf %252, %253 : vector<16x1xf32>
    %255 = math.rsqrt %254 : vector<16x1xf32>
    %256 = vector.broadcast %255 : vector<16x1xf32> to vector<16x32xf32>
    %257 = arith.mulf %240, %256 : vector<16x32xf32>
    %258 = tpu.transpose %257, [1, 0] : vector<16x32xf32> -> vector<32x16xf32>
    %cst_83 = arith.constant dense<0.000000e+00> : vector<16x16xf32>
    %259 = tpu.matmul %249, %258, %cst_83 {dimension_numbers = #tpu.dot_dimension_numbers<[1], [0], [0], [1], [0, 0, 1, 1], [], []>} : vector<16x32xf32>, vector<32x16xf32>, vector<16x16xf32> -> vector<16x16xf32>
    %cst_84 = arith.constant dense<0xFF800000> : vector<16xf32>
    %260 = vector.multi_reduction <maximumf>, %259, %cst_84 [1] : vector<16x16xf32> to vector<16xf32>
    %261 = vector.shape_cast %260 : vector<16xf32> to vector<16x1xf32>
    %262 = vector.broadcast %261 : vector<16x1xf32> to vector<16x16xf32>
    %263 = arith.subf %259, %262 : vector<16x16xf32>
    %264 = math.exp %263 : vector<16x16xf32>
    %cst_85 = arith.constant dense<0.000000e+00> : vector<16xf32>
    %265 = vector.multi_reduction <add>, %264, %cst_85 [1] : vector<16x16xf32> to vector<16xf32>
    %266 = vector.shape_cast %265 : vector<16xf32> to vector<16x1xf32>
    %267 = tpu.reciprocal %266 : vector<16x1xf32> -> vector<16x1xf32>
    %268 = vector.broadcast %267 : vector<16x1xf32> to vector<16x16xf32>
    %269 = arith.mulf %264, %268 : vector<16x16xf32>
    %cst_86 = arith.constant dense<0.000000e+00> : vector<16x32xf32>
    %270 = tpu.matmul %269, %240, %cst_86 {dimension_numbers = #tpu.dot_dimension_numbers<[1], [0], [0], [1], [0, 0, 1, 1], [], []>} : vector<16x16xf32>, vector<16x32xf32>, vector<16x32xf32> -> vector<16x32xf32>
    %271 = arith.addf %270, %249 : vector<16x32xf32>
    %272 = vector.extract_strided_slice %240 {offsets = [0, 0], sizes = [16, 16], strides = [1, 1]} : vector<16x32xf32> to vector<16x16xf32>
    %273 = tpu.transpose %272, [1, 0] : vector<16x16xf32> -> vector<16x16xf32>
    %274 = vector.extract_strided_slice %240 {offsets = [0, 16], sizes = [16, 16], strides = [1, 1]} : vector<16x32xf32> to vector<16x16xf32>
    %275 = tpu.transpose %274, [1, 0] : vector<16x16xf32> -> vector<16x16xf32>
    %276 = tpu.concatenate %273, %275 in 1 : vector<16x16xf32>, vector<16x16xf32> -> vector<16x32xf32>
    %277 = vector.extract_strided_slice %241 {offsets = [0, 0], sizes = [16, 16], strides = [1, 1]} : vector<16x32xf32> to vector<16x16xf32>
    %278 = tpu.transpose %277, [1, 0] : vector<16x16xf32> -> vector<16x16xf32>
    %279 = vector.extract_strided_slice %241 {offsets = [0, 16], sizes = [16, 16], strides = [1, 1]} : vector<16x32xf32> to vector<16x16xf32>
    %280 = tpu.transpose %279, [1, 0] : vector<16x16xf32> -> vector<16x16xf32>
    %281 = tpu.concatenate %278, %280 in 1 : vector<16x16xf32>, vector<16x16xf32> -> vector<16x32xf32>
    %282 = arith.mulf %276, %276 : vector<16x32xf32>
    %cst_87 = arith.constant dense<0.000000e+00> : vector<16xf32>
    %283 = vector.multi_reduction <add>, %282, %cst_87 [1] : vector<16x32xf32> to vector<16xf32>
    %284 = vector.shape_cast %283 : vector<16xf32> to vector<16x1xf32>
    %cst_88 = arith.constant 1.000000e-24 : f32
    %285 = vector.broadcast %cst_88 : f32 to vector<16x1xf32>
    %286 = arith.maximumf %284, %285 : vector<16x1xf32>
    %287 = math.rsqrt %286 : vector<16x1xf32>
    %288 = vector.broadcast %287 : vector<16x1xf32> to vector<16x32xf32>
    %289 = arith.mulf %276, %288 : vector<16x32xf32>
    %290 = arith.mulf %281, %281 : vector<16x32xf32>
    %cst_89 = arith.constant dense<0.000000e+00> : vector<16xf32>
    %291 = vector.multi_reduction <add>, %290, %cst_89 [1] : vector<16x32xf32> to vector<16xf32>
    %292 = vector.shape_cast %291 : vector<16xf32> to vector<16x1xf32>
    %cst_90 = arith.constant 1.000000e-24 : f32
    %293 = vector.broadcast %cst_90 : f32 to vector<16x1xf32>
    %294 = arith.maximumf %292, %293 : vector<16x1xf32>
    %295 = math.rsqrt %294 : vector<16x1xf32>
    %296 = vector.broadcast %295 : vector<16x1xf32> to vector<16x32xf32>
    %297 = arith.mulf %281, %296 : vector<16x32xf32>
    %298 = tpu.transpose %297, [1, 0] : vector<16x32xf32> -> vector<32x16xf32>
    %cst_91 = arith.constant dense<0.000000e+00> : vector<16x16xf32>
    %299 = tpu.matmul %289, %298, %cst_91 {dimension_numbers = #tpu.dot_dimension_numbers<[1], [0], [0], [1], [0, 0, 1, 1], [], []>} : vector<16x32xf32>, vector<32x16xf32>, vector<16x16xf32> -> vector<16x16xf32>
    %cst_92 = arith.constant dense<0xFF800000> : vector<16xf32>
    %300 = vector.multi_reduction <maximumf>, %299, %cst_92 [1] : vector<16x16xf32> to vector<16xf32>
    %301 = vector.shape_cast %300 : vector<16xf32> to vector<16x1xf32>
    %302 = vector.broadcast %301 : vector<16x1xf32> to vector<16x16xf32>
    %303 = arith.subf %299, %302 : vector<16x16xf32>
    %304 = math.exp %303 : vector<16x16xf32>
    %cst_93 = arith.constant dense<0.000000e+00> : vector<16xf32>
    %305 = vector.multi_reduction <add>, %304, %cst_93 [1] : vector<16x16xf32> to vector<16xf32>
    %306 = vector.shape_cast %305 : vector<16xf32> to vector<16x1xf32>
    %307 = tpu.reciprocal %306 : vector<16x1xf32> -> vector<16x1xf32>
    %308 = vector.broadcast %307 : vector<16x1xf32> to vector<16x16xf32>
    %309 = arith.mulf %304, %308 : vector<16x16xf32>
    %cst_94 = arith.constant dense<0.000000e+00> : vector<16x32xf32>
    %310 = tpu.matmul %309, %281, %cst_94 {dimension_numbers = #tpu.dot_dimension_numbers<[1], [0], [0], [1], [0, 0, 1, 1], [], []>} : vector<16x16xf32>, vector<16x32xf32>, vector<16x32xf32> -> vector<16x32xf32>
    %311 = arith.addf %310, %289 : vector<16x32xf32>
    %312 = vector.extract_strided_slice %311 {offsets = [0, 0], sizes = [16, 16], strides = [1, 1]} : vector<16x32xf32> to vector<16x16xf32>
    %313 = tpu.transpose %312, [1, 0] : vector<16x16xf32> -> vector<16x16xf32>
    %314 = vector.extract_strided_slice %311 {offsets = [0, 16], sizes = [16, 16], strides = [1, 1]} : vector<16x32xf32> to vector<16x16xf32>
    %315 = tpu.transpose %314, [1, 0] : vector<16x16xf32> -> vector<16x16xf32>
    %316 = tpu.concatenate %313, %315 in 1 : vector<16x16xf32>, vector<16x16xf32> -> vector<16x32xf32>
    %317 = tpu.concatenate %194, %271 in 1 : vector<16x32xf32>, vector<16x32xf32> -> vector<16x64xf32>
    %318 = tpu.concatenate %239, %316 in 1 : vector<16x32xf32>, vector<16x32xf32> -> vector<16x64xf32>
    %319 = tpu.concatenate %317, %318 in 1 : vector<16x64xf32>, vector<16x64xf32> -> vector<16x128xf32>
    %c0_95 = arith.constant 0 : index
    %c0_96 = arith.constant 0 : index
    %320 = vector.load %arg5[%c0_95, %c0_96] : memref<128x128xf32, #tpu.memory_space<vmem>>, vector<128x128xf32>
    %cst_97 = arith.constant dense<0.000000e+00> : vector<16x128xf32>
    %321 = tpu.matmul %319, %320, %cst_97 {dimension_numbers = #tpu.dot_dimension_numbers<[1], [0], [0], [1], [0, 0, 1, 1], [], []>} : vector<16x128xf32>, vector<128x128xf32>, vector<16x128xf32> -> vector<16x128xf32>
    %322 = vector.extract_strided_slice %321 {offsets = [0, 0], sizes = [16, 64], strides = [1, 1]} : vector<16x128xf32> to vector<16x64xf32>
    %323 = vector.extract_strided_slice %321 {offsets = [0, 64], sizes = [16, 64], strides = [1, 1]} : vector<16x128xf32> to vector<16x64xf32>
    %324 = arith.addf %322, %323 : vector<16x64xf32>
    %c0_98 = arith.constant 0 : index
    %c0_99 = arith.constant 0 : index
    %325 = vector.load %arg9[%c0_98, %c0_99] : memref<1x128xf32, #tpu.memory_space<vmem>>, vector<1x128xf32>
    %326 = vector.extract_strided_slice %325 {offsets = [0, 0], sizes = [1, 64], strides = [1, 1]} : vector<1x128xf32> to vector<1x64xf32>
    %cst_100 = arith.constant 2.000000e+00 : f32
    %327 = vector.broadcast %cst_100 : f32 to vector<1x64xf32>
    %328 = arith.mulf %327, %326 : vector<1x64xf32>
    %329 = vector.broadcast %328 : vector<1x64xf32> to vector<16x64xf32>
    %330 = arith.addf %324, %329 : vector<16x64xf32>
    %331 = vector.extract_strided_slice %1 {offsets = [0, 0], sizes = [16, 64], strides = [1, 1]} : vector<16x128xf32> to vector<16x64xf32>
    %332 = arith.addf %330, %331 : vector<16x64xf32>
    %333 = vector.extract_strided_slice %1 {offsets = [0, 64], sizes = [16, 64], strides = [1, 1]} : vector<16x128xf32> to vector<16x64xf32>
    %334 = arith.addf %332, %333 : vector<16x64xf32>
    %c0_101 = arith.constant 0 : index
    %c0_102 = arith.constant 0 : index
    %c0_103 = arith.constant 0 : index
    %335 = vector.load %arg10[%c0_101, %c0_102, %c0_103] : memref<1x16x64xf32, #tpu.memory_space<vmem>>, vector<1x16x64xf32>
    %336 = vector.shape_cast %335 : vector<1x16x64xf32> to vector<16x64xf32>
    %337 = vector.shape_cast %334 : vector<16x64xf32> to vector<1x16x64xf32>
    tpu.vector_store %arg10[%c0_101, %c0_102, %c0_103], %337 {strides = array<i32>} : memref<1x16x64xf32, #tpu.memory_space<vmem>>, vector<1x16x64xf32>,
    return
  }
  func.func @transform_0(%arg0: i32) -> (i32, i32, i32) {
    %c0_i32 = arith.constant 0 : i32
    %c0_i32_0 = arith.constant 0 : i32
    %c0_i32_1 = arith.constant 0 : i32
    return %arg0, %c0_i32, %c0_i32_0 : i32, i32, i32
  }
  func.func @transform_1(%arg0: i32) -> (i32, i32) {
    %c0_i32 = arith.constant 0 : i32
    %c0_i32_0 = arith.constant 0 : i32
    %c0_i32_1 = arith.constant 0 : i32
    return %c0_i32, %c0_i32_0 : i32, i32
  }
  func.func @transform_2(%arg0: i32) -> (i32, i32) {
    %c0_i32 = arith.constant 0 : i32
    %c0_i32_0 = arith.constant 0 : i32
    %c0_i32_1 = arith.constant 0 : i32
    return %c0_i32, %c0_i32_0 : i32, i32
  }
  func.func @transform_3(%arg0: i32) -> (i32, i32) {
    %c0_i32 = arith.constant 0 : i32
    %c0_i32_0 = arith.constant 0 : i32
    %c0_i32_1 = arith.constant 0 : i32
    return %c0_i32, %c0_i32_0 : i32, i32
  }
  func.func @transform_4(%arg0: i32) -> (i32, i32) {
    %c0_i32 = arith.constant 0 : i32
    %c0_i32_0 = arith.constant 0 : i32
    %c0_i32_1 = arith.constant 0 : i32
    return %c0_i32, %c0_i32_0 : i32, i32
  }
  func.func @transform_5(%arg0: i32) -> (i32, i32) {
    %c0_i32 = arith.constant 0 : i32
    %c0_i32_0 = arith.constant 0 : i32
    %c0_i32_1 = arith.constant 0 : i32
    return %c0_i32, %c0_i32_0 : i32, i32
  }
  func.func @transform_6(%arg0: i32) -> (i32, i32) {
    %c0_i32 = arith.constant 0 : i32
    %c0_i32_0 = arith.constant 0 : i32
    %c0_i32_1 = arith.constant 0 : i32
    return %c0_i32, %c0_i32_0 : i32, i32
  }
  func.func @transform_7(%arg0: i32) -> (i32, i32) {
    %c0_i32 = arith.constant 0 : i32
    %c0_i32_0 = arith.constant 0 : i32
    %c0_i32_1 = arith.constant 0 : i32
    return %c0_i32, %c0_i32_0 : i32, i32
  }
  func.func @transform_8(%arg0: i32) -> (i32, i32) {
    %c0_i32 = arith.constant 0 : i32
    %c0_i32_0 = arith.constant 0 : i32
    %c0_i32_1 = arith.constant 0 : i32
    return %c0_i32, %c0_i32_0 : i32, i32
  }
  func.func @transform_9(%arg0: i32) -> (i32, i32, i32) {
    %c0_i32 = arith.constant 0 : i32
    %c0_i32_0 = arith.constant 0 : i32
    %c0_i32_1 = arith.constant 0 : i32
    return %arg0, %c0_i32, %c0_i32_0 : i32, i32, i32
  }
}

</mosaic_0001>

<llo_original>
// kernel: forward.1
$region0: #{forward.1}
  #allocation0 [shape = 'u32[]', space=smem, size = 0x4, offset = 0x4, fixed_abs, tag = 'smem constant byte address 0x4 - core index']
  #allocation1 [shape = 'u32[144,128]{1,0:T(1,128)}', space=vmem, size = 0x12000, scoped, tag = 'internal scratch']
  %s0 = inlined_call_operand.vmem [shape: f32[2,16,128], index: 0, kind: input, shape index: {}]
  %s1 = inlined_call_operand.hbm [shape: f32[384,128], index: 1, kind: input, shape index: {}]
  %s2 = inlined_call_operand.hbm [shape: f32[640,128], index: 2, kind: input, shape index: {}]
  %s3 = inlined_call_operand.vmem [shape: f32[896,128], index: 3, kind: input, shape index: {}]
  %s4 = inlined_call_operand.hbm [shape: f32[128,128], index: 4, kind: input, shape index: {}]
  %s5 = inlined_call_operand.vmem [shape: f32[1,128], index: 5, kind: input, shape index: {}]
  %s6 = inlined_call_operand.vmem [shape: f32[1,128], index: 6, kind: input, shape index: {}]
  %s7 = inlined_call_operand.vmem [shape: f32[1,128], index: 7, kind: input, shape index: {}]
  %s8 = inlined_call_operand.vmem [shape: f32[1,128], index: 8, kind: input, shape index: {}]
  %s9 = inlined_call_operand.vmem [shape: f32[2,16,64], index: 9, kind: output, shape index: {}]
  %s10 = sld [smem:[#allocation0]]
  $region81: #{forward.1} parent=0
    _
  %s12 = ssub.s32 1, %s10
  %s13 = scalar_select 0, %s12, %s10
  $region1: #{forward.1} parent=0
    #allocation2 [shape = 'u8[196608]{0}', space=vmem, size = 0x30000, scoped, tag = 'input window, operand 1, single buffered']
    #allocation3 [shape = 's32[2]{0}', space=sflag, size = 0x8, scoped, tag = 'scoped memory for forward.1']
    #allocation4 [shape = 'u8[327680]{0}', space=vmem, size = 0x50000, scoped, tag = 'input window, operand 2, single buffered']
    #allocation5 [shape = 's32[1]{0}', space=sflag, size = 0x4, scoped, tag = 'scoped memory for forward.1']
    #allocation6 [shape = 'u8[65536]{0}', space=vmem, size = 0x10000, scoped, tag = 'input window, operand 4, single buffered']
    %14 = vsyncpa [#allocation3], 0
    %15 = vsyncpa [#allocation5], 0
    loop: start=0, step=1, limit=4
    $region2: #{forward.1} parent=1 // loop_pre_header
      _
    $region3: #{forward.1} parent=1 // loop_header
      %s17 = sphi 0, %s21
      %p18 = scmp.ge.s32.totalorder %s17, 4
      %s27 = sphi 0, %s29
      %s30 = sphi 0, %s27
      %s31 = sphi 0, %s30
      %s47 = sphi 0, %s31
      %s51 = sphi 0, %s51
      %s53 = sphi 0, %s51
      %s54 = sphi 0, %s53
      %s68 = sphi 0, %s54
      %s72 = sphi 0, %s72
      %s74 = sphi 0, %s72
      %s75 = sphi 0, %s74
      %s89 = sphi 0, %s75
      %s93 = sphi 0, %s93
      %s95 = sphi 0, %s93
      %s96 = sphi 0, %s95
      %s110 = sphi 0, %s96
      %s114 = sphi 0, %s114
      %s116 = sphi 0, %s114
      %s117 = sphi 0, %s116
      %s131 = sphi 0, %s117
      %s135 = sphi 0, %s135
      %s137 = sphi 0, %s135
      %s138 = sphi 0, %s137
      %s152 = sphi 0, %s138
      %s156 = sphi 0, %s156
      %s158 = sphi 0, %s156
      %s159 = sphi 0, %s158
      %s173 = sphi 0, %s159
      %s177 = sphi 0, %s177
      %s179 = sphi 0, %s177
      %s180 = sphi 0, %s179
      %s194 = sphi 0, %s180
      %s198 = sphi 0, %s198
      %s200 = sphi 0, %s198
      %s201 = sphi 0, %s200
      %s215 = sphi 0, %s201
      %s221 = sphi 0, %s223
      %s224 = sphi 0, %s221
      %s225 = sphi 0, %s224
      %s241 = sphi 0, %s225
    $region4: #{forward.1} parent=1 // loop_header_branch
      %20 = sbr.rel (%p18) target = $region8
    $region5: #{forward.1} parent=1 // loop_body
      %s22 = ssub.s32 %s17, 1
      %s23 = ssub.s32 %s17, 2
      %s24 = sadd.s32 %s17, 1
      %s25 = ssub.s32 %s17, %s24
      %p26 = scmp.eq.s32.totalorder %s25, 0
      %s28 = sadd.s32 %s27, 1
      %s29 = scalar_select %p26, %s27, %s28
      %p32 = pneg %p26
      %p33 = scmp.eq.s32.totalorder %s17, 1
      %p34 = por %p32, %p33
      %p35 = scmp.ne.s32.totalorder %s27, %s30
      %p36 = scmp.eq.s32.totalorder %s17, 0
      %p37 = por %p35, %p36
      %p38 = scmp.ne.s32.totalorder %s27, %s30
      %p39 = scmp.eq.s32.totalorder %s22, 1
      %p40 = por %p38, %p39
      %p41 = scmp.ne.s32.totalorder %s30, %s31
      %p42 = scmp.eq.s32.totalorder %s22, 0
      %p43 = por %p41, %p42
      %p44 = scmp.ne.s32.totalorder %s30, %s31
      %p45 = scmp.eq.s32.totalorder %s23, 1
      %p46 = por %p44, %p45
      %p48 = scmp.ne.s32.totalorder %s31, %s47
      %p49 = scmp.eq.s32.totalorder %s23, 0
      %p50 = por %p48, %p49
      %s52 = sadd.s32 %s51, 1
      %p55 = scmp.eq.s32.totalorder %s17, 1
      %p56 = scmp.ne.s32.totalorder %s51, %s53
      %p57 = scmp.eq.s32.totalorder %s17, 0
      %p58 = por %p56, %p57
      %p59 = scmp.ne.s32.totalorder %s51, %s53
      %p60 = scmp.eq.s32.totalorder %s22, 1
      %p61 = por %p59, %p60
      %p62 = scmp.ne.s32.totalorder %s53, %s54
      %p63 = scmp.eq.s32.totalorder %s22, 0
      %p64 = por %p62, %p63
      %p65 = scmp.ne.s32.totalorder %s53, %s54
      %p66 = scmp.eq.s32.totalorder %s23, 1
      %p67 = por %p65, %p66
      %p69 = scmp.ne.s32.totalorder %s54, %s68
      %p70 = scmp.eq.s32.totalorder %s23, 0
      %p71 = por %p69, %p70
      %s73 = sadd.s32 %s72, 1
      %p76 = scmp.eq.s32.totalorder %s17, 1
      %p77 = scmp.ne.s32.totalorder %s72, %s74
      %p78 = scmp.eq.s32.totalorder %s17, 0
      %p79 = por %p77, %p78
      %p80 = scmp.ne.s32.totalorder %s72, %s74
      %p81 = scmp.eq.s32.totalorder %s22, 1
      %p82 = por %p80, %p81
      %p83 = scmp.ne.s32.totalorder %s74, %s75
      %p84 = scmp.eq.s32.totalorder %s22, 0
      %p85 = por %p83, %p84
      %p86 = scmp.ne.s32.totalorder %s74, %s75
      %p87 = scmp.eq.s32.totalorder %s23, 1
      %p88 = por %p86, %p87
      %p90 = scmp.ne.s32.totalorder %s75, %s89
      %p91 = scmp.eq.s32.totalorder %s23, 0
      %p92 = por %p90, %p91
      %s94 = sadd.s32 %s93, 1
      %p97 = scmp.eq.s32.totalorder %s17, 1
      %p98 = scmp.ne.s32.totalorder %s93, %s95
      %p99 = scmp.eq.s32.totalorder %s17, 0
      %p100 = por %p98, %p99
      %p101 = scmp.ne.s32.totalorder %s93, %s95
      %p102 = scmp.eq.s32.totalorder %s22, 1
      %p103 = por %p101, %p102
      %p104 = scmp.ne.s32.totalorder %s95, %s96
      %p105 = scmp.eq.s32.totalorder %s22, 0
      %p106 = por %p104, %p105
      %p107 = scmp.ne.s32.totalorder %s95, %s96
      %p108 = scmp.eq.s32.totalorder %s23, 1
      %p109 = por %p107, %p108
      %p111 = scmp.ne.s32.totalorder %s96, %s110
      %p112 = scmp.eq.s32.totalorder %s23, 0
      %p113 = por %p111, %p112
      %s115 = sadd.s32 %s114, 1
      %p118 = scmp.eq.s32.totalorder %s17, 1
      %p119 = scmp.ne.s32.totalorder %s114, %s116
      %p120 = scmp.eq.s32.totalorder %s17, 0
      %p121 = por %p119, %p120
      %p122 = scmp.ne.s32.totalorder %s114, %s116
      %p123 = scmp.eq.s32.totalorder %s22, 1
      %p124 = por %p122, %p123
      %p125 = scmp.ne.s32.totalorder %s116, %s117
      %p126 = scmp.eq.s32.totalorder %s22, 0
      %p127 = por %p125, %p126
      %p128 = scmp.ne.s32.totalorder %s116, %s117
      %p129 = scmp.eq.s32.totalorder %s23, 1
      %p130 = por %p128, %p129
      %p132 = scmp.ne.s32.totalorder %s117, %s131
      %p133 = scmp.eq.s32.totalorder %s23, 0
      %p134 = por %p132, %p133
      %s136 = sadd.s32 %s135, 1
      %p139 = scmp.eq.s32.totalorder %s17, 1
      %p140 = scmp.ne.s32.totalorder %s135, %s137
      %p141 = scmp.eq.s32.totalorder %s17, 0
      %p142 = por %p140, %p141
      %p143 = scmp.ne.s32.totalorder %s135, %s137
      %p144 = scmp.eq.s32.totalorder %s22, 1
      %p145 = por %p143, %p144
      %p146 = scmp.ne.s32.totalorder %s137, %s138
      %p147 = scmp.eq.s32.totalorder %s22, 0
      %p148 = por %p146, %p147
      %p149 = scmp.ne.s32.totalorder %s137, %s138
      %p150 = scmp.eq.s32.totalorder %s23, 1
      %p151 = por %p149, %p150
      %p153 = scmp.ne.s32.totalorder %s138, %s152
      %p154 = scmp.eq.s32.totalorder %s23, 0
      %p155 = por %p153, %p154
      %s157 = sadd.s32 %s156, 1
      %p160 = scmp.eq.s32.totalorder %s17, 1
      %p161 = scmp.ne.s32.totalorder %s156, %s158
      %p162 = scmp.eq.s32.totalorder %s17, 0
      %p163 = por %p161, %p162
      %p164 = scmp.ne.s32.totalorder %s156, %s158
      %p165 = scmp.eq.s32.totalorder %s22, 1
      %p166 = por %p164, %p165
      %p167 = scmp.ne.s32.totalorder %s158, %s159
      %p168 = scmp.eq.s32.totalorder %s22, 0
      %p169 = por %p167, %p168
      %p170 = scmp.ne.s32.totalorder %s158, %s159
      %p171 = scmp.eq.s32.totalorder %s23, 1
      %p172 = por %p170, %p171
      %p174 = scmp.ne.s32.totalorder %s159, %s173
      %p175 = scmp.eq.s32.totalorder %s23, 0
      %p176 = por %p174, %p175
      %s178 = sadd.s32 %s177, 1
      %p181 = scmp.eq.s32.totalorder %s17, 1
      %p182 = scmp.ne.s32.totalorder %s177, %s179
      %p183 = scmp.eq.s32.totalorder %s17, 0
      %p184 = por %p182, %p183
      %p185 = scmp.ne.s32.totalorder %s177, %s179
      %p186 = scmp.eq.s32.totalorder %s22, 1
      %p187 = por %p185, %p186
      %p188 = scmp.ne.s32.totalorder %s179, %s180
      %p189 = scmp.eq.s32.totalorder %s22, 0
      %p190 = por %p188, %p189
      %p191 = scmp.ne.s32.totalorder %s179, %s180
      %p192 = scmp.eq.s32.totalorder %s23, 1
      %p193 = por %p191, %p192
      %p195 = scmp.ne.s32.totalorder %s180, %s194
      %p196 = scmp.eq.s32.totalorder %s23, 0
      %p197 = por %p195, %p196
      %s199 = sadd.s32 %s198, 1
      %p202 = scmp.eq.s32.totalorder %s17, 1
      %p203 = scmp.ne.s32.totalorder %s198, %s200
      %p204 = scmp.eq.s32.totalorder %s17, 0
      %p205 = por %p203, %p204
      %p206 = scmp.ne.s32.totalorder %s198, %s200
      %p207 = scmp.eq.s32.totalorder %s22, 1
      %p208 = por %p206, %p207
      %p209 = scmp.ne.s32.totalorder %s200, %s201
      %p210 = scmp.eq.s32.totalorder %s22, 0
      %p211 = por %p209, %p210
      %p212 = scmp.ne.s32.totalorder %s200, %s201
      %p213 = scmp.eq.s32.totalorder %s23, 1
      %p214 = por %p212, %p213
      %p216 = scmp.ne.s32.totalorder %s201, %s215
      %p217 = scmp.eq.s32.totalorder %s23, 0
      %p218 = por %p216, %p217
      %s219 = ssub.s32 %s17, %s24
      %p220 = scmp.eq.s32.totalorder %s219, 0
      %s222 = sadd.s32 %s221, 1
      %s223 = scalar_select %p220, %s221, %s222
      %p226 = pneg %p220
      %p227 = scmp.eq.s32.totalorder %s17, 1
      %p228 = por %p226, %p227
      %p229 = scmp.ne.s32.totalorder %s221, %s224
      %p230 = scmp.eq.s32.totalorder %s17, 0
      %p231 = por %p229, %p230
      %p232 = scmp.ne.s32.totalorder %s221, %s224
      %p233 = scmp.eq.s32.totalorder %s22, 1
      %p234 = por %p232, %p233
      %p235 = scmp.ne.s32.totalorder %s224, %s225
      %p236 = scmp.eq.s32.totalorder %s22, 0
      %p237 = por %p235, %p236
      %p238 = scmp.ne.s32.totalorder %s224, %s225
      %p239 = scmp.eq.s32.totalorder %s23, 1
      %p240 = por %p238, %p239
      %p242 = scmp.ne.s32.totalorder %s225, %s241
      %p243 = scmp.eq.s32.totalorder %s23, 0
      %p244 = por %p242, %p243
      %p245 = scmp.le.s32.totalorder 1, %s17
      %p246 = scmp.lt.s32.totalorder %s17, 3
      %p247 = pnand %p245, %p246
      %p248 = pneg %p247
      // Predicated region
      $region9: #{forward.1} parent=5 // pred_check
        _
      $region10: #{forward.1} parent=5 // pred_check_branch
        %250 = sbr.rel (%p247) target = $region12
      $region11: #{forward.1} parent=5 // pred_region
        %s251 = ssub.s32 %s17, 1
        // Predicated region
        $region13: #{forward.1} parent=11 // pred_check
          %p252 = pneg %p64
        $region14: #{forward.1} parent=11 // pred_check_branch
          %254 = sbr.rel (%p252) target = $region16
        $region15: #{forward.1} parent=11 // pred_region
          %s256 = ssub.s32 6144, 6144
          %257 = vsyncadd [#allocation3], %s256
          %s258 = sshll.u32 [#allocation2], 4
          %s259 = int_to_ptr.vmem [resolvable:$true] %s258
          %264 = dma.hbm_to_vmem [thread:$0]  %s1, 6144, %s259, [#allocation3], 128, 128, 8
        $region16: #{forward.1} parent=11 // pred_fallthru
          _
        // Predicated region
        $region17: #{forward.1} parent=11 // pred_check
          %p265 = pneg %p85
        $region18: #{forward.1} parent=11 // pred_check_branch
          %267 = sbr.rel (%p265) target = $region20
        $region19: #{forward.1} parent=11 // pred_region
          %s269 = ssub.s32 10240, 10240
          %270 = vsyncadd [#allocation5], %s269
          %s271 = sshll.u32 [#allocation4], 4
          %s272 = int_to_ptr.vmem [resolvable:$true] %s271
          %277 = dma.hbm_to_vmem [thread:$0]  %s2, 10240, %s272, [#allocation5], 128, 128, 8
        $region20: #{forward.1} parent=11 // pred_fallthru
          _
        // Predicated region
        $region21: #{forward.1} parent=11 // pred_check
          %p278 = pneg %p106
        $region22: #{forward.1} parent=11 // pred_check_branch
          %280 = sbr.rel (%p278) target = $region24
        $region23: #{forward.1} parent=11 // pred_region
          _
        $region24: #{forward.1} parent=11 // pred_fallthru
          _
        // Predicated region
        $region25: #{forward.1} parent=11 // pred_check
          %p281 = pneg %p127
        $region26: #{forward.1} parent=11 // pred_check_branch
          %283 = sbr.rel (%p281) target = $region28
        $region27: #{forward.1} parent=11 // pred_region
          %s285 = ssub.s32 2048, 2048
          %286 = vsyncadd [#allocation5], %s285
          %s287 = sshll.u32 [#allocation6], 4
          %s288 = int_to_ptr.vmem [resolvable:$true] %s287
          %293 = dma.hbm_to_vmem [thread:$0]  %s4, 2048, %s288, [#allocation5], 128, 128, 8
        $region28: #{forward.1} parent=11 // pred_fallthru
          _
        // Predicated region
        $region29: #{forward.1} parent=11 // pred_check
          %p294 = pneg %p148
        $region30: #{forward.1} parent=11 // pred_check_branch
          %296 = sbr.rel (%p294) target = $region32
        $region31: #{forward.1} parent=11 // pred_region
          _
        $region32: #{forward.1} parent=11 // pred_fallthru
          _
        // Predicated region
        $region33: #{forward.1} parent=11 // pred_check
          %p297 = pneg %p169
        $region34: #{forward.1} parent=11 // pred_check_branch
          %299 = sbr.rel (%p297) target = $region36
        $region35: #{forward.1} parent=11 // pred_region
          _
        $region36: #{forward.1} parent=11 // pred_fallthru
          _
        // Predicated region
        $region37: #{forward.1} parent=11 // pred_check
          %p300 = pneg %p190
        $region38: #{forward.1} parent=11 // pred_check_branch
          %302 = sbr.rel (%p300) target = $region40
        $region39: #{forward.1} parent=11 // pred_region
          _
        $region40: #{forward.1} parent=11 // pred_fallthru
          _
        // Predicated region
        $region41: #{forward.1} parent=11 // pred_check
          %p303 = pneg %p211
        $region42: #{forward.1} parent=11 // pred_check_branch
          %305 = sbr.rel (%p303) target = $region44
        $region43: #{forward.1} parent=11 // pred_region
          _
        $region44: #{forward.1} parent=11 // pred_fallthru
          _
      $region12: #{forward.1} parent=5 // pred_fallthru
        _
      %p306 = scmp.lt.s32.totalorder %s17, 2
      // Predicated region
      $region45: #{forward.1} parent=5 // pred_check
        %p307 = pneg %p306
      $region46: #{forward.1} parent=5 // pred_check_branch
        %309 = sbr.rel (%p307) target = $region48
      $region47: #{forward.1} parent=5 // pred_region
        // Predicated region
        $region49: #{forward.1} parent=47 // pred_check
          %p310 = pneg %p37
        $region50: #{forward.1} parent=47 // pred_check_branch
          %312 = sbr.rel (%p310) target = $region52
        $region51: #{forward.1} parent=47 // pred_region
          %p313 = scmp.lt.s32.totalorder %s17, 1
          %s314 = scalar_select %p313, %s17, 1
          %s315 = smul.addr %s314, 2
          %s316 = smul.addr %s315, 8
          %s317 = scalar_lea.vmem %s0, %s316
        $region52: #{forward.1} parent=47 // pred_fallthru
          _
      $region48: #{forward.1} parent=5 // pred_fallthru
        _
      %p318 = scmp.le.s32.totalorder 1, %s17
      %p319 = scmp.lt.s32.totalorder %s17, 3
      %p320 = pnand %p318, %p319
      %p321 = pneg %p320
      // Predicated region
      $region53: #{forward.1} parent=5 // pred_check
        _
      $region54: #{forward.1} parent=5 // pred_check_branch
        %323 = sbr.rel (%p320) target = $region56
      $region55: #{forward.1} parent=5 // pred_region
        %s324 = ssub.s32 %s17, 1
        // Predicated region
        $region57: #{forward.1} parent=55 // pred_check
          %p325 = pneg %p64
        $region58: #{forward.1} parent=55 // pred_check_branch
          %327 = sbr.rel (%p325) target = $region60
        $region59: #{forward.1} parent=55 // pred_region
          %328 = dma.done [#allocation3], 6144
        $region60: #{forward.1} parent=55 // pred_fallthru
          _
        // Predicated region
        $region61: #{forward.1} parent=55 // pred_check
          %p329 = pneg %p85
        $region62: #{forward.1} parent=55 // pred_check_branch
          %331 = sbr.rel (%p329) target = $region64
        $region63: #{forward.1} parent=55 // pred_region
          %332 = dma.done [#allocation5], 10240
        $region64: #{forward.1} parent=55 // pred_fallthru
          _
        // Predicated region
        $region65: #{forward.1} parent=55 // pred_check
          %p333 = pneg %p127
        $region66: #{forward.1} parent=55 // pred_check_branch
          %335 = sbr.rel (%p333) target = $region68
        $region67: #{forward.1} parent=55 // pred_region
          %336 = dma.done [#allocation5], 2048
        $region68: #{forward.1} parent=55 // pred_fallthru
          _
        %p337 = scmp.lt.s32.totalorder %s22, 1
        %s338 = scalar_select %p337, %s22, 1
        %s339 = smul.addr %s338, 2
        %s340 = smul.addr %s339, 8
        %s341 = scalar_lea.vmem %s0, %s340
        %p342 = pneg %p43
        %p343 = pneg %p40
        %p344 = pneg %p64
        %p345 = pneg %p61
        %p346 = pneg %p85
        %p347 = pneg %p82
        %p348 = pneg %p106
        %p349 = pneg %p103
        %p350 = pneg %p127
        %p351 = pneg %p124
        %p352 = pneg %p148
        %p353 = pneg %p145
        %p354 = pneg %p169
        %p355 = pneg %p166
        %p356 = pneg %p190
        %p357 = pneg %p187
        %p358 = pneg %p211
        %p359 = pneg %p208
        %p360 = pneg %p237
        %p361 = pneg %p234
        %p362 = scmp.lt.s32.totalorder %s22, 1
        %s363 = scalar_select %p362, %s22, 1
        %s364 = smul.addr %s363, 2
        %s365 = smul.addr %s364, 8
        %s366 = scalar_lea.vmem %s9, %s365
        %p367 = scmp.lt.s32.totalorder %s22, 1
        %s368 = scalar_select %p367, %s22, 1
        %s369 = smul.addr %s368, 2
        %s370 = smul.addr %s369, 8
        %s371 = scalar_lea.vmem %s0, %s370
        %p372 = scmp.lt.s32.totalorder %s22, 1
        %s373 = scalar_select %p372, %s22, 1
        %s374 = smul.addr %s373, 2
        %s375 = smul.addr %s374, 8
        %s376 = scalar_lea.vmem %s9, %s375
        %v377 = vld [vmem:[%s371] sm:$0xff]
        %v378 = vld [vmem:[%s371 + $0x8] sm:$0xff]
        %v379 = vlaneseq
        %v380 = vshrl.u32 %v379, 7
        %v381 = vadd.s32 %v380, 8
        %v382 = vadd.s32 %v380, 4294967292
        %v383 = vadd.s32 %v381, 4294967292
        %vm384 = vcmp.ge.s32.totalorder %v382, 0
        %vm385 = vcmp.ge.s32.totalorder %v383, 0
        %vm386 = vcmp.lt.s32.totalorder %v382, 16
        %vm387 = vcmp.lt.s32.totalorder %v383, 16
        %vm388 = vmand %vm384, %vm386
        %vm389 = vmand %vm385, %vm387
        %v390 = vadd.s32 %v380, 4294967293
        %v391 = vadd.s32 %v381, 4294967293
        %vm392 = vcmp.ge.s32.totalorder %v390, 0
        %vm393 = vcmp.ge.s32.totalorder %v391, 0
        %vm394 = vcmp.lt.s32.totalorder %v390, 16
        %vm395 = vcmp.lt.s32.totalorder %v391, 16
        %vm396 = vmand %vm392, %vm394
        %vm397 = vmand %vm393, %vm395
        %v398 = vadd.s32 %v380, 4294967294
        %v399 = vadd.s32 %v381, 4294967294
        %vm400 = vcmp.ge.s32.totalorder %v398, 0
        %vm401 = vcmp.ge.s32.totalorder %v399, 0
        %vm402 = vcmp.lt.s32.totalorder %v398, 16
        %vm403 = vcmp.lt.s32.totalorder %v399, 16
        %vm404 = vmand %vm400, %vm402
        %vm405 = vmand %vm401, %vm403
        %v406 = vadd.s32 %v380, 4294967295
        %v407 = vadd.s32 %v381, 4294967295
        %vm408 = vcmp.ge.s32.totalorder %v406, 0
        %vm409 = vcmp.ge.s32.totalorder %v407, 0
        %vm410 = vcmp.lt.s32.totalorder %v406, 16
        %vm411 = vcmp.lt.s32.totalorder %v407, 16
        %vm412 = vmand %vm408, %vm410
        %vm413 = vmand %vm409, %vm411
        %v414 = vadd.s32 %v380, 1
        %v415 = vadd.s32 %v381, 1
        %vm416 = vcmp.ge.s32.totalorder %v414, 0
        %vm417 = vcmp.ge.s32.totalorder %v415, 0
        %vm418 = vcmp.lt.s32.totalorder %v414, 16
        %vm419 = vcmp.lt.s32.totalorder %v415, 16
        %vm420 = vmand %vm416, %vm418
        %vm421 = vmand %vm417, %vm419
        %v422 = vadd.s32 %v380, 2
        %v423 = vadd.s32 %v381, 2
        %vm424 = vcmp.ge.s32.totalorder %v422, 0
        %vm425 = vcmp.ge.s32.totalorder %v423, 0
        %vm426 = vcmp.lt.s32.totalorder %v422, 16
        %vm427 = vcmp.lt.s32.totalorder %v423, 16
        %vm428 = vmand %vm424, %vm426
        %vm429 = vmand %vm425, %vm427
        %v430 = vadd.s32 %v380, 3
        %v431 = vadd.s32 %v381, 3
        %vm432 = vcmp.ge.s32.totalorder %v430, 0
        %vm433 = vcmp.ge.s32.totalorder %v431, 0
        %vm434 = vcmp.lt.s32.totalorder %v430, 16
        %vm435 = vcmp.lt.s32.totalorder %v431, 16
        %vm436 = vmand %vm432, %vm434
        %vm437 = vmand %vm433, %vm435
        %v438 = vadd.s32 %v380, 4
        %v439 = vadd.s32 %v381, 4
        %vm440 = vcmp.ge.s32.totalorder %v438, 0
        %vm441 = vcmp.ge.s32.totalorder %v439, 0
        %vm442 = vcmp.lt.s32.totalorder %v438, 16
        %vm443 = vcmp.lt.s32.totalorder %v439, 16
        %vm444 = vmand %vm440, %vm442
        %vm445 = vmand %vm441, %vm443
        %v446 = vrot.slane %v377, 7
        %v447 = vrot.slane %v378, 7
        %vm448 = vcmp.lt.s32.totalorder %v380, 1
        %v449 = vsel %vm448, %v446, %v447
        %v450 = vsel %vm448, %v447, %v446
        %v451 = vsel %vm412, 1, 0
        %v452 = vsel %vm413, 1, 0
        %vm453 = vcmp.eq.s32.totalorder %v451, 1
        %vm454 = vcmp.eq.s32.totalorder %v452, 1
        %v455 = vsel %vm453, %v450, 0.0
        %v456 = vsel %vm454, %v449, 0.0
        %v457 = vrot.slane %v377, 1
        %v458 = vrot.slane %v378, 1
        %vm459 = vcmp.lt.s32.totalorder %v380, 7
        %v460 = vsel %vm459, %v457, %v458
        %v461 = vsel %vm459, %v458, %v457
        %v462 = vsel %vm420, 1, 0
        %v463 = vsel %vm421, 1, 0
        %vm464 = vcmp.eq.s32.totalorder %v462, 1
        %vm465 = vcmp.eq.s32.totalorder %v463, 1
        %v466 = vsel %vm464, %v460, 0.0
        %v467 = vsel %vm465, %v461, 0.0
        %v468 = vld [vmem:[#allocation2] sm:$0xff]
        %v469 = vld [vmem:[#allocation2 + $0x8] sm:$0xff]
        %v470 = vld [vmem:[#allocation2 + $0x10] sm:$0xff]
        %v471 = vld [vmem:[#allocation2 + $0x18] sm:$0xff]
        %v472 = vld [vmem:[#allocation2 + $0x20] sm:$0xff]
        %v473 = vld [vmem:[#allocation2 + $0x28] sm:$0xff]
        %v474 = vld [vmem:[#allocation2 + $0x30] sm:$0xff]
        %v475 = vld [vmem:[#allocation2 + $0x38] sm:$0xff]
        %v476 = vld [vmem:[#allocation2 + $0x40] sm:$0xff]
        %v477 = vld [vmem:[#allocation2 + $0x48] sm:$0xff]
        %v478 = vld [vmem:[#allocation2 + $0x50] sm:$0xff]
        %v479 = vld [vmem:[#allocation2 + $0x58] sm:$0xff]
        %v480 = vld [vmem:[#allocation2 + $0x60] sm:$0xff]
        %v481 = vld [vmem:[#allocation2 + $0x68] sm:$0xff]
        %v482 = vld [vmem:[#allocation2 + $0x70] sm:$0xff]
        %v483 = vld [vmem:[#allocation2 + $0x78] sm:$0xff]
        %v484 = vld [vmem:[#allocation2 + $0x80] sm:$0xff]
        %v485 = vld [vmem:[#allocation2 + $0x88] sm:$0xff]
        %v486 = vld [vmem:[#allocation2 + $0x90] sm:$0xff]
        %v487 = vld [vmem:[#allocation2 + $0x98] sm:$0xff]
        %v488 = vld [vmem:[#allocation2 + $0xa0] sm:$0xff]
        %v489 = vld [vmem:[#allocation2 + $0xa8] sm:$0xff]
        %v490 = vld [vmem:[#allocation2 + $0xb0] sm:$0xff]
        %v491 = vld [vmem:[#allocation2 + $0xb8] sm:$0xff]
        %v492 = vld [vmem:[#allocation2 + $0xc0] sm:$0xff]
        %v493 = vld [vmem:[#allocation2 + $0xc8] sm:$0xff]
        %v494 = vld [vmem:[#allocation2 + $0xd0] sm:$0xff]
        %v495 = vld [vmem:[#allocation2 + $0xd8] sm:$0xff]
        %v496 = vld [vmem:[#allocation2 + $0xe0] sm:$0xff]
        %v497 = vld [vmem:[#allocation2 + $0xe8] sm:$0xff]
        %v498 = vld [vmem:[#allocation2 + $0xf0] sm:$0xff]
        %v499 = vld [vmem:[#allocation2 + $0xf8] sm:$0xff]
        %v500 = vld [vmem:[#allocation2 + $0x100] sm:$0xff]
        %v501 = vld [vmem:[#allocation2 + $0x108] sm:$0xff]
        %v502 = vld [vmem:[#allocation2 + $0x110] sm:$0xff]
        %v503 = vld [vmem:[#allocation2 + $0x118] sm:$0xff]
        %v504 = vld [vmem:[#allocation2 + $0x120] sm:$0xff]
        %v505 = vld [vmem:[#allocation2 + $0x128] sm:$0xff]
        %v506 = vld [vmem:[#allocation2 + $0x130] sm:$0xff]
        %v507 = vld [vmem:[#allocation2 + $0x138] sm:$0xff]
        %v508 = vld [vmem:[#allocation2 + $0x140] sm:$0xff]
        %v509 = vld [vmem:[#allocation2 + $0x148] sm:$0xff]
        %v510 = vld [vmem:[#allocation2 + $0x150] sm:$0xff]
        %v511 = vld [vmem:[#allocation2 + $0x158] sm:$0xff]
        %v512 = vld [vmem:[#allocation2 + $0x160] sm:$0xff]
        %v513 = vld [vmem:[#allocation2 + $0x168] sm:$0xff]
        %v514 = vld [vmem:[#allocation2 + $0x170] sm:$0xff]
        %v515 = vld [vmem:[#allocation2 + $0x178] sm:$0xff]
        %v516 = vld [vmem:[%s5] sm:$0x1]
        %v518 = vlaneseq
        %v519 = vshrl.u32 %v518, 7
        %v520 = vsub.s32 0, %v519
        %v521 = vrot.slane %v516, %v520
        %523 = vmatprep.subr.mxu0 0.0
        %524 = vmatpush1.msra.mxu0 %v468
        %525 = vmatprep.subr.mxu0 0.0
        %526 = vmatpush1.msra.mxu0 %v469
        %527 = vmatprep.subr.mxu0 0.0
        %528 = vmatpush1.msra.mxu0 %v470
        %529 = vmatprep.subr.mxu0 0.0
        %530 = vmatpush1.msra.mxu0 %v471
        %531 = vmatprep.subr.mxu0 0.0
        %532 = vmatpush1.msra.mxu0 %v472
        %533 = vmatprep.subr.mxu0 0.0
        %534 = vmatpush1.msra.mxu0 %v473
        %535 = vmatprep.subr.mxu0 0.0
        %536 = vmatpush1.msra.mxu0 %v474
        %537 = vmatprep.subr.mxu0 0.0
        %538 = vmatpush1.msra.mxu0 %v475
        %539 = vmatprep.subr.mxu0 0.0
        %540 = vmatpush1.msra.mxu0 %v476
        %541 = vmatprep.subr.mxu0 0.0
        %542 = vmatpush1.msra.mxu0 %v477
        %543 = vmatprep.subr.mxu0 0.0
        %544 = vmatpush1.msra.mxu0 %v478
        %545 = vmatprep.subr.mxu0 0.0
        %546 = vmatpush1.msra.mxu0 %v479
        %547 = vmatprep.subr.mxu0 0.0
        %548 = vmatpush1.msra.mxu0 %v480
        %549 = vmatprep.subr.mxu0 0.0
        %550 = vmatpush1.msra.mxu0 %v481
        %551 = vmatprep.subr.mxu0 0.0
        %552 = vmatpush1.msra.mxu0 %v482
        %553 = vmatprep.subr.mxu0 0.0
        %554 = vmatpush1.msra.mxu0 %v483
        %555 = vmatprep.subr.mxu0 0.0
        %556 = vmatpush1.msra.mxu0 %v484
        %557 = vmatprep.subr.mxu0 0.0
        %558 = vmatpush1.msra.mxu0 %v485
        %559 = vmatprep.subr.mxu0 0.0
        %560 = vmatpush1.msra.mxu0 %v486
        %561 = vmatprep.subr.mxu0 0.0
        %562 = vmatpush1.msra.mxu0 %v487
        %563 = vmatprep.subr.mxu0 0.0
        %564 = vmatpush1.msra.mxu0 %v488
        %565 = vmatprep.subr.mxu0 0.0
        %566 = vmatpush1.msra.mxu0 %v489
        %567 = vmatprep.subr.mxu0 0.0
        %568 = vmatpush1.msra.mxu0 %v490
        %569 = vmatprep.subr.mxu0 0.0
        %570 = vmatpush1.msra.mxu0 %v491
        %571 = vmatprep.subr.mxu0 0.0
        %572 = vmatpush1.msra.mxu0 %v492
        %573 = vmatprep.subr.mxu0 0.0
        %574 = vmatpush1.msra.mxu0 %v493
        %575 = vmatprep.subr.mxu0 0.0
        %576 = vmatpush1.msra.mxu0 %v494
        %577 = vmatprep.subr.mxu0 0.0
        %578 = vmatpush1.msra.mxu0 %v495
        %579 = vmatprep.subr.mxu0 0.0
        %580 = vmatpush1.msra.mxu0 %v496
        %581 = vmatprep.subr.mxu0 0.0
        %582 = vmatpush1.msra.mxu0 %v497
        %583 = vmatprep.subr.mxu0 0.0
        %584 = vmatpush1.msra.mxu0 %v498
        %585 = vmatprep.subr.mxu0 0.0
        %586 = vmatpush1.msra.mxu0 %v499
        %587 = vmatprep.mubr.f32.mxu0 %v377
        %588 = vmatmul.mubr.f32.gmra.mrb[0].mxu0 %v455
        %v589 = vpop.f32.mrb[0].mxu0
        %v590 = vadd.f32 %v521, %v589
        %v591 = vpop.f32.mrb[0].mxu0
        %592 = vmatprep.mubr.f32.mxu0 %v378
        %593 = vmatmul.mubr.f32.gmra.mrb[0].mxu0 %v456
        %v594 = vpop.f32.mrb[0].mxu0
        %v595 = vadd.f32 %v521, %v594
        %v596 = vpop.f32.mrb[0].mxu0
        %597 = vdwg.mxu0
        %598 = vmatprep.subr.mxu0 0.0
        %599 = vmatpush1.msra.mxu0 %v500
        %600 = vmatprep.subr.mxu0 0.0
        %601 = vmatpush1.msra.mxu0 %v501
        %602 = vmatprep.subr.mxu0 0.0
        %603 = vmatpush1.msra.mxu0 %v502
        %604 = vmatprep.subr.mxu0 0.0
        %605 = vmatpush1.msra.mxu0 %v503
        %606 = vmatprep.subr.mxu0 0.0
        %607 = vmatpush1.msra.mxu0 %v504
        %608 = vmatprep.subr.mxu0 0.0
        %609 = vmatpush1.msra.mxu0 %v505
        %610 = vmatprep.subr.mxu0 0.0
        %611 = vmatpush1.msra.mxu0 %v506
        %612 = vmatprep.subr.mxu0 0.0
        %613 = vmatpush1.msra.mxu0 %v507
        %614 = vmatprep.subr.mxu0 0.0
        %615 = vmatpush1.msra.mxu0 %v508
        %616 = vmatprep.subr.mxu0 0.0
        %617 = vmatpush1.msra.mxu0 %v509
        %618 = vmatprep.subr.mxu0 0.0
        %619 = vmatpush1.msra.mxu0 %v510
        %620 = vmatprep.subr.mxu0 0.0
        %621 = vmatpush1.msra.mxu0 %v511
        %622 = vmatprep.subr.mxu0 0.0
        %623 = vmatpush1.msra.mxu0 %v512
        %624 = vmatprep.subr.mxu0 0.0
        %625 = vmatpush1.msra.mxu0 %v513
        %626 = vmatprep.subr.mxu0 0.0
        %627 = vmatpush1.msra.mxu0 %v514
        %628 = vmatprep.subr.mxu0 0.0
        %629 = vmatpush1.msra.mxu0 %v515
        %630 = vmatprep.subr.mxu0 0.0
        %631 = vmatpush1.msra.mxu0 0.0
        %632 = vmatprep.subr.mxu0 0.0
        %633 = vmatpush1.msra.mxu0 0.0
        %634 = vmatprep.subr.mxu0 0.0
        %635 = vmatpush1.msra.mxu0 0.0
        %636 = vmatprep.subr.mxu0 0.0
        %637 = vmatpush1.msra.mxu0 0.0
        %638 = vmatprep.subr.mxu0 0.0
        %639 = vmatpush1.msra.mxu0 0.0
        %640 = vmatprep.subr.mxu0 0.0
        %641 = vmatpush1.msra.mxu0 0.0
        %642 = vmatprep.subr.mxu0 0.0
        %643 = vmatpush1.msra.mxu0 0.0
        %644 = vmatprep.subr.mxu0 0.0
        %645 = vmatpush1.msra.mxu0 0.0
        %646 = vmatprep.subr.mxu0 0.0
        %647 = vmatpush1.msra.mxu0 0.0
        %648 = vmatprep.subr.mxu0 0.0
        %649 = vmatpush1.msra.mxu0 0.0
        %650 = vmatprep.subr.mxu0 0.0
        %651 = vmatpush1.msra.mxu0 0.0
        %652 = vmatprep.subr.mxu0 0.0
        %653 = vmatpush1.msra.mxu0 0.0
        %654 = vmatprep.subr.mxu0 0.0
        %655 = vmatpush1.msra.mxu0 0.0
        %656 = vmatprep.subr.mxu0 0.0
        %657 = vmatpush1.msra.mxu0 0.0
        %658 = vmatprep.subr.mxu0 0.0
        %659 = vmatpush1.msra.mxu0 0.0
        %660 = vmatprep.subr.mxu0 0.0
        %661 = vmatpush1.msra.mxu0 0.0
        %662 = vmatprep.mubr.f32.mxu0 0.0
        %663 = vmatmul.mubr.f32.gmra.mrb[0].mxu0 %v466
        %v664 = vpop.f32.mrb[0].mxu0
        %v665 = vadd.f32 %v590, %v664
        %v666 = vpop.f32.mrb[0].mxu0
        %667 = vmatprep.mubr.f32.mxu0 0.0
        %668 = vmatmul.mubr.f32.gmra.mrb[0].mxu0 %v467
        %v669 = vpop.f32.mrb[0].mxu0
        %v670 = vadd.f32 %v595, %v669
        %v671 = vpop.f32.mrb[0].mxu0
        %672 = vdwg.mxu0
        %v673 = vadd.f32 %v665, %v377
        %v674 = vadd.f32 %v670, %v378
        %v675 = vrot.slane %v673, 4
        %v676 = vrot.slane %v674, 4
        %vm677 = vcmp.lt.s32.totalorder %v380, 4
        %v678 = vsel %vm677, %v675, %v676
        %v679 = vsel %vm677, %v676, %v675
        %v680 = vsel %vm388, 1, 0
        %v681 = vsel %vm389, 1, 0
        %vm682 = vcmp.eq.s32.totalorder %v680, 1
        %vm683 = vcmp.eq.s32.totalorder %v681, 1
        %v684 = vsel %vm682, %v679, 0.0
        %v685 = vsel %vm683, %v678, 0.0
        %v686 = vrot.slane %v673, 6
        %v687 = vrot.slane %v674, 6
        %vm688 = vcmp.lt.s32.totalorder %v380, 2
        %v689 = vsel %vm688, %v686, %v687
        %v690 = vsel %vm688, %v687, %v686
        %v691 = vsel %vm404, 1, 0
        %v692 = vsel %vm405, 1, 0
        %vm693 = vcmp.eq.s32.totalorder %v691, 1
        %vm694 = vcmp.eq.s32.totalorder %v692, 1
        %v695 = vsel %vm693, %v690, 0.0
        %v696 = vsel %vm694, %v689, 0.0
        %v697 = vrot.slane %v673, 2
        %v698 = vrot.slane %v674, 2
        %vm699 = vcmp.lt.s32.totalorder %v380, 6
        %v700 = vsel %vm699, %v697, %v698
        %v701 = vsel %vm699, %v698, %v697
        %v702 = vsel %vm428, 1, 0
        %v703 = vsel %vm429, 1, 0
        %vm704 = vcmp.eq.s32.totalorder %v702, 1
        %vm705 = vcmp.eq.s32.totalorder %v703, 1
        %v706 = vsel %vm704, %v700, 0.0
        %v707 = vsel %vm705, %v701, 0.0
        %v708 = vsel %vm444, 1, 0
        %v709 = vsel %vm445, 1, 0
        %vm710 = vcmp.eq.s32.totalorder %v708, 1
        %vm711 = vcmp.eq.s32.totalorder %v709, 1
        %v712 = vsel %vm710, %v678, 0.0
        %v713 = vsel %vm711, %v679, 0.0
        %v714 = vld [vmem:[#allocation4] sm:$0xff]
        %v715 = vld [vmem:[#allocation4 + $0x8] sm:$0xff]
        %v716 = vld [vmem:[#allocation4 + $0x10] sm:$0xff]
        %v717 = vld [vmem:[#allocation4 + $0x18] sm:$0xff]
        %v718 = vld [vmem:[#allocation4 + $0x20] sm:$0xff]
        %v719 = vld [vmem:[#allocation4 + $0x28] sm:$0xff]
        %v720 = vld [vmem:[#allocation4 + $0x30] sm:$0xff]
        %v721 = vld [vmem:[#allocation4 + $0x38] sm:$0xff]
        %v722 = vld [vmem:[#allocation4 + $0x40] sm:$0xff]
        %v723 = vld [vmem:[#allocation4 + $0x48] sm:$0xff]
        %v724 = vld [vmem:[#allocation4 + $0x50] sm:$0xff]
        %v725 = vld [vmem:[#allocation4 + $0x58] sm:$0xff]
        %v726 = vld [vmem:[#allocation4 + $0x60] sm:$0xff]
        %v727 = vld [vmem:[#allocation4 + $0x68] sm:$0xff]
        %v728 = vld [vmem:[#allocation4 + $0x70] sm:$0xff]
        %v729 = vld [vmem:[#allocation4 + $0x78] sm:$0xff]
        %v730 = vld [vmem:[#allocation4 + $0x80] sm:$0xff]
        %v731 = vld [vmem:[#allocation4 + $0x88] sm:$0xff]
        %v732 = vld [vmem:[#allocation4 + $0x90] sm:$0xff]
        %v733 = vld [vmem:[#allocation4 + $0x98] sm:$0xff]
        %v734 = vld [vmem:[#allocation4 + $0xa0] sm:$0xff]
        %v735 = vld [vmem:[#allocation4 + $0xa8] sm:$0xff]
        %v736 = vld [vmem:[#allocation4 + $0xb0] sm:$0xff]
        %v737 = vld [vmem:[#allocation4 + $0xb8] sm:$0xff]
        %v738 = vld [vmem:[#allocation4 + $0xc0] sm:$0xff]
        %v739 = vld [vmem:[#allocation4 + $0xc8] sm:$0xff]
        %v740 = vld [vmem:[#allocation4 + $0xd0] sm:$0xff]
        %v741 = vld [vmem:[#allocation4 + $0xd8] sm:$0xff]
        %v742 = vld [vmem:[#allocation4 + $0xe0] sm:$0xff]
        %v743 = vld [vmem:[#allocation4 + $0xe8] sm:$0xff]
        %v744 = vld [vmem:[#allocation4 + $0xf0] sm:$0xff]
        %v745 = vld [vmem:[#allocation4 + $0xf8] sm:$0xff]
        %v746 = vld [vmem:[#allocation4 + $0x100] sm:$0xff]
        %v747 = vld [vmem:[#allocation4 + $0x108] sm:$0xff]
        %v748 = vld [vmem:[#allocation4 + $0x110] sm:$0xff]
        %v749 = vld [vmem:[#allocation4 + $0x118] sm:$0xff]
        %v750 = vld [vmem:[#allocation4 + $0x120] sm:$0xff]
        %v751 = vld [vmem:[#allocation4 + $0x128] sm:$0xff]
        %v752 = vld [vmem:[#allocation4 + $0x130] sm:$0xff]
        %v753 = vld [vmem:[#allocation4 + $0x138] sm:$0xff]
        %v754 = vld [vmem:[#allocation4 + $0x140] sm:$0xff]
        %v755 = vld [vmem:[#allocation4 + $0x148] sm:$0xff]
        %v756 = vld [vmem:[#allocation4 + $0x150] sm:$0xff]
        %v757 = vld [vmem:[#allocation4 + $0x158] sm:$0xff]
        %v758 = vld [vmem:[#allocation4 + $0x160] sm:$0xff]
        %v759 = vld [vmem:[#allocation4 + $0x168] sm:$0xff]
        %v760 = vld [vmem:[#allocation4 + $0x170] sm:$0xff]
        %v761 = vld [vmem:[#allocation4 + $0x178] sm:$0xff]
        %v762 = vld [vmem:[#allocation4 + $0x180] sm:$0xff]
        %v763 = vld [vmem:[#allocation4 + $0x188] sm:$0xff]
        %v764 = vld [vmem:[#allocation4 + $0x190] sm:$0xff]
        %v765 = vld [vmem:[#allocation4 + $0x198] sm:$0xff]
        %v766 = vld [vmem:[#allocation4 + $0x1a0] sm:$0xff]
        %v767 = vld [vmem:[#allocation4 + $0x1a8] sm:$0xff]
        %v768 = vld [vmem:[#allocation4 + $0x1b0] sm:$0xff]
        %v769 = vld [vmem:[#allocation4 + $0x1b8] sm:$0xff]
        %v770 = vld [vmem:[#allocation4 + $0x1c0] sm:$0xff]
        %v771 = vld [vmem:[#allocation4 + $0x1c8] sm:$0xff]
        %v772 = vld [vmem:[#allocation4 + $0x1d0] sm:$0xff]
        %v773 = vld [vmem:[#allocation4 + $0x1d8] sm:$0xff]
        %v774 = vld [vmem:[#allocation4 + $0x1e0] sm:$0xff]
        %v775 = vld [vmem:[#allocation4 + $0x1e8] sm:$0xff]
        %v776 = vld [vmem:[#allocation4 + $0x1f0] sm:$0xff]
        %v777 = vld [vmem:[#allocation4 + $0x1f8] sm:$0xff]
        %v778 = vld [vmem:[#allocation4 + $0x200] sm:$0xff]
        %v779 = vld [vmem:[#allocation4 + $0x208] sm:$0xff]
        %v780 = vld [vmem:[#allocation4 + $0x210] sm:$0xff]
        %v781 = vld [vmem:[#allocation4 + $0x218] sm:$0xff]
        %v782 = vld [vmem:[#allocation4 + $0x220] sm:$0xff]
        %v783 = vld [vmem:[#allocation4 + $0x228] sm:$0xff]
        %v784 = vld [vmem:[#allocation4 + $0x230] sm:$0xff]
        %v785 = vld [vmem:[#allocation4 + $0x238] sm:$0xff]
        %v786 = vld [vmem:[#allocation4 + $0x240] sm:$0xff]
        %v787 = vld [vmem:[#allocation4 + $0x248] sm:$0xff]
        %v788 = vld [vmem:[#allocation4 + $0x250] sm:$0xff]
        %v789 = vld [vmem:[#allocation4 + $0x258] sm:$0xff]
        %v790 = vld [vmem:[#allocation4 + $0x260] sm:$0xff]
        %v791 = vld [vmem:[#allocation4 + $0x268] sm:$0xff]
        %v792 = vld [vmem:[#allocation4 + $0x270] sm:$0xff]
        %v793 = vld [vmem:[#allocation4 + $0x278] sm:$0xff]
        %v794 = vld [vmem:[%s6] sm:$0x1]
        %v796 = vlaneseq
        %v797 = vshrl.u32 %v796, 7
        %v798 = vsub.s32 0, %v797
        %v799 = vrot.slane %v794, %v798
        %801 = vmatprep.subr.mxu0 0.0
        %802 = vmatpush1.msra.mxu0 %v714
        %803 = vmatprep.subr.mxu0 0.0
        %804 = vmatpush1.msra.mxu0 %v715
        %805 = vmatprep.subr.mxu0 0.0
        %806 = vmatpush1.msra.mxu0 %v716
        %807 = vmatprep.subr.mxu0 0.0
        %808 = vmatpush1.msra.mxu0 %v717
        %809 = vmatprep.subr.mxu0 0.0
        %810 = vmatpush1.msra.mxu0 %v718
        %811 = vmatprep.subr.mxu0 0.0
        %812 = vmatpush1.msra.mxu0 %v719
        %813 = vmatprep.subr.mxu0 0.0
        %814 = vmatpush1.msra.mxu0 %v720
        %815 = vmatprep.subr.mxu0 0.0
        %816 = vmatpush1.msra.mxu0 %v721
        %817 = vmatprep.subr.mxu0 0.0
        %818 = vmatpush1.msra.mxu0 %v722
        %819 = vmatprep.subr.mxu0 0.0
        %820 = vmatpush1.msra.mxu0 %v723
        %821 = vmatprep.subr.mxu0 0.0
        %822 = vmatpush1.msra.mxu0 %v724
        %823 = vmatprep.subr.mxu0 0.0
        %824 = vmatpush1.msra.mxu0 %v725
        %825 = vmatprep.subr.mxu0 0.0
        %826 = vmatpush1.msra.mxu0 %v726
        %827 = vmatprep.subr.mxu0 0.0
        %828 = vmatpush1.msra.mxu0 %v727
        %829 = vmatprep.subr.mxu0 0.0
        %830 = vmatpush1.msra.mxu0 %v728
        %831 = vmatprep.subr.mxu0 0.0
        %832 = vmatpush1.msra.mxu0 %v729
        %833 = vmatprep.subr.mxu0 0.0
        %834 = vmatpush1.msra.mxu0 %v730
        %835 = vmatprep.subr.mxu0 0.0
        %836 = vmatpush1.msra.mxu0 %v731
        %837 = vmatprep.subr.mxu0 0.0
        %838 = vmatpush1.msra.mxu0 %v732
        %839 = vmatprep.subr.mxu0 0.0
        %840 = vmatpush1.msra.mxu0 %v733
        %841 = vmatprep.subr.mxu0 0.0
        %842 = vmatpush1.msra.mxu0 %v734
        %843 = vmatprep.subr.mxu0 0.0
        %844 = vmatpush1.msra.mxu0 %v735
        %845 = vmatprep.subr.mxu0 0.0
        %846 = vmatpush1.msra.mxu0 %v736
        %847 = vmatprep.subr.mxu0 0.0
        %848 = vmatpush1.msra.mxu0 %v737
        %849 = vmatprep.subr.mxu0 0.0
        %850 = vmatpush1.msra.mxu0 %v738
        %851 = vmatprep.subr.mxu0 0.0
        %852 = vmatpush1.msra.mxu0 %v739
        %853 = vmatprep.subr.mxu0 0.0
        %854 = vmatpush1.msra.mxu0 %v740
        %855 = vmatprep.subr.mxu0 0.0
        %856 = vmatpush1.msra.mxu0 %v741
        %857 = vmatprep.subr.mxu0 0.0
        %858 = vmatpush1.msra.mxu0 %v742
        %859 = vmatprep.subr.mxu0 0.0
        %860 = vmatpush1.msra.mxu0 %v743
        %861 = vmatprep.subr.mxu0 0.0
        %862 = vmatpush1.msra.mxu0 %v744
        %863 = vmatprep.subr.mxu0 0.0
        %864 = vmatpush1.msra.mxu0 %v745
        %865 = vmatprep.mubr.f32.mxu0 %v695
        %866 = vmatmul.mubr.f32.gmra.mrb[0].mxu0 %v684
        %v867 = vpop.f32.mrb[0].mxu0
        %v868 = vadd.f32 %v799, %v867
        %v869 = vpop.f32.mrb[0].mxu0
        %870 = vmatprep.mubr.f32.mxu0 %v696
        %871 = vmatmul.mubr.f32.gmra.mrb[0].mxu0 %v685
        %v872 = vpop.f32.mrb[0].mxu0
        %v873 = vadd.f32 %v799, %v872
        %v874 = vpop.f32.mrb[0].mxu0
        %875 = vdwg.mxu0
        %876 = vmatprep.subr.mxu0 0.0
        %877 = vmatpush1.msra.mxu0 %v746
        %878 = vmatprep.subr.mxu0 0.0
        %879 = vmatpush1.msra.mxu0 %v747
        %880 = vmatprep.subr.mxu0 0.0
        %881 = vmatpush1.msra.mxu0 %v748
        %882 = vmatprep.subr.mxu0 0.0
        %883 = vmatpush1.msra.mxu0 %v749
        %884 = vmatprep.subr.mxu0 0.0
        %885 = vmatpush1.msra.mxu0 %v750
        %886 = vmatprep.subr.mxu0 0.0
        %887 = vmatpush1.msra.mxu0 %v751
        %888 = vmatprep.subr.mxu0 0.0
        %889 = vmatpush1.msra.mxu0 %v752
        %890 = vmatprep.subr.mxu0 0.0
        %891 = vmatpush1.msra.mxu0 %v753
        %892 = vmatprep.subr.mxu0 0.0
        %893 = vmatpush1.msra.mxu0 %v754
        %894 = vmatprep.subr.mxu0 0.0
        %895 = vmatpush1.msra.mxu0 %v755
        %896 = vmatprep.subr.mxu0 0.0
        %897 = vmatpush1.msra.mxu0 %v756
        %898 = vmatprep.subr.mxu0 0.0
        %899 = vmatpush1.msra.mxu0 %v757
        %900 = vmatprep.subr.mxu0 0.0
        %901 = vmatpush1.msra.mxu0 %v758
        %902 = vmatprep.subr.mxu0 0.0
        %903 = vmatpush1.msra.mxu0 %v759
        %904 = vmatprep.subr.mxu0 0.0
        %905 = vmatpush1.msra.mxu0 %v760
        %906 = vmatprep.subr.mxu0 0.0
        %907 = vmatpush1.msra.mxu0 %v761
        %908 = vmatprep.subr.mxu0 0.0
        %909 = vmatpush1.msra.mxu0 %v762
        %910 = vmatprep.subr.mxu0 0.0
        %911 = vmatpush1.msra.mxu0 %v763
        %912 = vmatprep.subr.mxu0 0.0
        %913 = vmatpush1.msra.mxu0 %v764
        %914 = vmatprep.subr.mxu0 0.0
        %915 = vmatpush1.msra.mxu0 %v765
        %916 = vmatprep.subr.mxu0 0.0
        %917 = vmatpush1.msra.mxu0 %v766
        %918 = vmatprep.subr.mxu0 0.0
        %919 = vmatpush1.msra.mxu0 %v767
        %920 = vmatprep.subr.mxu0 0.0
        %921 = vmatpush1.msra.mxu0 %v768
        %922 = vmatprep.subr.mxu0 0.0
        %923 = vmatpush1.msra.mxu0 %v769
        %924 = vmatprep.subr.mxu0 0.0
        %925 = vmatpush1.msra.mxu0 %v770
        %926 = vmatprep.subr.mxu0 0.0
        %927 = vmatpush1.msra.mxu0 %v771
        %928 = vmatprep.subr.mxu0 0.0
        %929 = vmatpush1.msra.mxu0 %v772
        %930 = vmatprep.subr.mxu0 0.0
        %931 = vmatpush1.msra.mxu0 %v773
        %932 = vmatprep.subr.mxu0 0.0
        %933 = vmatpush1.msra.mxu0 %v774
        %934 = vmatprep.subr.mxu0 0.0
        %935 = vmatpush1.msra.mxu0 %v775
        %936 = vmatprep.subr.mxu0 0.0
        %937 = vmatpush1.msra.mxu0 %v776
        %938 = vmatprep.subr.mxu0 0.0
        %939 = vmatpush1.msra.mxu0 %v777
        %940 = vmatprep.mubr.f32.mxu0 %v706
        %941 = vmatmul.mubr.f32.gmra.mrb[0].mxu0 %v673
        %v942 = vpop.f32.mrb[0].mxu0
        %v943 = vadd.f32 %v868, %v942
        %v944 = vpop.f32.mrb[0].mxu0
        %945 = vmatprep.mubr.f32.mxu0 %v707
        %946 = vmatmul.mubr.f32.gmra.mrb[0].mxu0 %v674
        %v947 = vpop.f32.mrb[0].mxu0
        %v948 = vadd.f32 %v873, %v947
        %v949 = vpop.f32.mrb[0].mxu0
        %950 = vdwg.mxu0
        %951 = vmatprep.subr.mxu0 0.0
        %952 = vmatpush1.msra.mxu0 %v778
        %953 = vmatprep.subr.mxu0 0.0
        %954 = vmatpush1.msra.mxu0 %v779
        %955 = vmatprep.subr.mxu0 0.0
        %956 = vmatpush1.msra.mxu0 %v780
        %957 = vmatprep.subr.mxu0 0.0
        %958 = vmatpush1.msra.mxu0 %v781
        %959 = vmatprep.subr.mxu0 0.0
        %960 = vmatpush1.msra.mxu0 %v782
        %961 = vmatprep.subr.mxu0 0.0
        %962 = vmatpush1.msra.mxu0 %v783
        %963 = vmatprep.subr.mxu0 0.0
        %964 = vmatpush1.msra.mxu0 %v784
        %965 = vmatprep.subr.mxu0 0.0
        %966 = vmatpush1.msra.mxu0 %v785
        %967 = vmatprep.subr.mxu0 0.0
        %968 = vmatpush1.msra.mxu0 %v786
        %969 = vmatprep.subr.mxu0 0.0
        %970 = vmatpush1.msra.mxu0 %v787
        %971 = vmatprep.subr.mxu0 0.0
        %972 = vmatpush1.msra.mxu0 %v788
        %973 = vmatprep.subr.mxu0 0.0
        %974 = vmatpush1.msra.mxu0 %v789
        %975 = vmatprep.subr.mxu0 0.0
        %976 = vmatpush1.msra.mxu0 %v790
        %977 = vmatprep.subr.mxu0 0.0
        %978 = vmatpush1.msra.mxu0 %v791
        %979 = vmatprep.subr.mxu0 0.0
        %980 = vmatpush1.msra.mxu0 %v792
        %981 = vmatprep.subr.mxu0 0.0
        %982 = vmatpush1.msra.mxu0 %v793
        %983 = vmatprep.subr.mxu0 0.0
        %984 = vmatpush1.msra.mxu0 0.0
        %985 = vmatprep.subr.mxu0 0.0
        %986 = vmatpush1.msra.mxu0 0.0
        %987 = vmatprep.subr.mxu0 0.0
        %988 = vmatpush1.msra.mxu0 0.0
        %989 = vmatprep.subr.mxu0 0.0
        %990 = vmatpush1.msra.mxu0 0.0
        %991 = vmatprep.subr.mxu0 0.0
        %992 = vmatpush1.msra.mxu0 0.0
        %993 = vmatprep.subr.mxu0 0.0
        %994 = vmatpush1.msra.mxu0 0.0
        %995 = vmatprep.subr.mxu0 0.0
        %996 = vmatpush1.msra.mxu0 0.0
        %997 = vmatprep.subr.mxu0 0.0
        %998 = vmatpush1.msra.mxu0 0.0
        %999 = vmatprep.subr.mxu0 0.0
        %1000 = vmatpush1.msra.mxu0 0.0
        %1001 = vmatprep.subr.mxu0 0.0
        %1002 = vmatpush1.msra.mxu0 0.0
        %1003 = vmatprep.subr.mxu0 0.0
        %1004 = vmatpush1.msra.mxu0 0.0
        %1005 = vmatprep.subr.mxu0 0.0
        %1006 = vmatpush1.msra.mxu0 0.0
        %1007 = vmatprep.subr.mxu0 0.0
        %1008 = vmatpush1.msra.mxu0 0.0
        %1009 = vmatprep.subr.mxu0 0.0
        %1010 = vmatpush1.msra.mxu0 0.0
        %1011 = vmatprep.subr.mxu0 0.0
        %1012 = vmatpush1.msra.mxu0 0.0
        %1013 = vmatprep.subr.mxu0 0.0
        %1014 = vmatpush1.msra.mxu0 0.0
        %1015 = vmatprep.mubr.f32.mxu0 0.0
        %1016 = vmatmul.mubr.f32.gmra.mrb[0].mxu0 %v712
        %v1017 = vpop.f32.mrb[0].mxu0
        %v1018 = vadd.f32 %v943, %v1017
        %v1019 = vpop.f32.mrb[0].mxu0
        %1020 = vmatprep.mubr.f32.mxu0 0.0
        %1021 = vmatmul.mubr.f32.gmra.mrb[0].mxu0 %v713
        %v1022 = vpop.f32.mrb[0].mxu0
        %v1023 = vadd.f32 %v948, %v1022
        %v1024 = vpop.f32.mrb[0].mxu0
        %1025 = vdwg.mxu0
        %v1026 = vadd.f32 %v1018, %v673
        %v1027 = vadd.f32 %v1023, %v674
        %v1028 = vrot.slane %v1026, 5
        %v1029 = vrot.slane %v1027, 5
        %vm1030 = vcmp.lt.s32.totalorder %v380, 3
        %v1031 = vsel %vm1030, %v1028, %v1029
        %v1032 = vsel %vm1030, %v1029, %v1028
        %v1033 = vsel %vm396, 1, 0
        %v1034 = vsel %vm397, 1, 0
        %vm1035 = vcmp.eq.s32.totalorder %v1033, 1
        %vm1036 = vcmp.eq.s32.totalorder %v1034, 1
        %v1037 = vsel %vm1035, %v1032, 0.0
        %v1038 = vsel %vm1036, %v1031, 0.0
        %v1039 = vrot.slane %v1026, 6
        %v1040 = vrot.slane %v1027, 6
        %v1041 = vsel %vm688, %v1039, %v1040
        %v1042 = vsel %vm688, %v1040, %v1039
        %v1043 = vsel %vm693, %v1042, 0.0
        %v1044 = vsel %vm694, %v1041, 0.0
        %v1045 = vrot.slane %v1026, 7
        %v1046 = vrot.slane %v1027, 7
        %v1047 = vsel %vm448, %v1045, %v1046
        %v1048 = vsel %vm448, %v1046, %v1045
        %v1049 = vsel %vm453, %v1048, 0.0
        %v1050 = vsel %vm454, %v1047, 0.0
        %v1051 = vrot.slane %v1026, 1
        %v1052 = vrot.slane %v1027, 1
        %v1053 = vsel %vm459, %v1051, %v1052
        %v1054 = vsel %vm459, %v1052, %v1051
        %v1055 = vsel %vm464, %v1053, 0.0
        %v1056 = vsel %vm465, %v1054, 0.0
        %v1057 = vrot.slane %v1026, 2
        %v1058 = vrot.slane %v1027, 2
        %v1059 = vsel %vm699, %v1057, %v1058
        %v1060 = vsel %vm699, %v1058, %v1057
        %v1061 = vsel %vm704, %v1059, 0.0
        %v1062 = vsel %vm705, %v1060, 0.0
        %v1063 = vrot.slane %v1026, 3
        %v1064 = vrot.slane %v1027, 3
        %vm1065 = vcmp.lt.s32.totalorder %v380, 5
        %v1066 = vsel %vm1065, %v1063, %v1064
        %v1067 = vsel %vm1065, %v1064, %v1063
        %v1068 = vsel %vm436, 1, 0
        %v1069 = vsel %vm437, 1, 0
        %vm1070 = vcmp.eq.s32.totalorder %v1068, 1
        %vm1071 = vcmp.eq.s32.totalorder %v1069, 1
        %v1072 = vsel %vm1070, %v1066, 0.0
        %v1073 = vsel %vm1071, %v1067, 0.0
        %v1074 = vld [vmem:[%s3] sm:$0xff]
        %v1075 = vld [vmem:[%s3 + $0x8] sm:$0xff]
        %v1076 = vld [vmem:[%s3 + $0x10] sm:$0xff]
        %v1077 = vld [vmem:[%s3 + $0x18] sm:$0xff]
        %v1078 = vld [vmem:[%s3 + $0x20] sm:$0xff]
        %v1079 = vld [vmem:[%s3 + $0x28] sm:$0xff]
        %v1080 = vld [vmem:[%s3 + $0x30] sm:$0xff]
        %v1081 = vld [vmem:[%s3 + $0x38] sm:$0xff]
        %v1082 = vld [vmem:[%s3 + $0x40] sm:$0xff]
        %v1083 = vld [vmem:[%s3 + $0x48] sm:$0xff]
        %v1084 = vld [vmem:[%s3 + $0x50] sm:$0xff]
        %v1085 = vld [vmem:[%s3 + $0x58] sm:$0xff]
        %v1086 = vld [vmem:[%s3 + $0x60] sm:$0xff]
        %v1087 = vld [vmem:[%s3 + $0x68] sm:$0xff]
        %v1088 = vld [vmem:[%s3 + $0x70] sm:$0xff]
        %v1089 = vld [vmem:[%s3 + $0x78] sm:$0xff]
        %v1090 = vld [vmem:[%s3 + $0x80] sm:$0xff]
        %v1091 = vld [vmem:[%s3 + $0x88] sm:$0xff]
        %v1092 = vld [vmem:[%s3 + $0x90] sm:$0xff]
        %v1093 = vld [vmem:[%s3 + $0x98] sm:$0xff]
        %v1094 = vld [vmem:[%s3 + $0xa0] sm:$0xff]
        %v1095 = vld [vmem:[%s3 + $0xa8] sm:$0xff]
        %v1096 = vld [vmem:[%s3 + $0xb0] sm:$0xff]
        %v1097 = vld [vmem:[%s3 + $0xb8] sm:$0xff]
        %v1098 = vld [vmem:[%s3 + $0xc0] sm:$0xff]
        %v1099 = vld [vmem:[%s3 + $0xc8] sm:$0xff]
        %v1100 = vld [vmem:[%s3 + $0xd0] sm:$0xff]
        %v1101 = vld [vmem:[%s3 + $0xd8] sm:$0xff]
        %v1102 = vld [vmem:[%s3 + $0xe0] sm:$0xff]
        %v1103 = vld [vmem:[%s3 + $0xe8] sm:$0xff]
        %v1104 = vld [vmem:[%s3 + $0xf0] sm:$0xff]
        %v1105 = vld [vmem:[%s3 + $0xf8] sm:$0xff]
        %v1106 = vld [vmem:[%s3 + $0x100] sm:$0xff]
        %v1107 = vld [vmem:[%s3 + $0x108] sm:$0xff]
        %v1108 = vld [vmem:[%s3 + $0x110] sm:$0xff]
        %v1109 = vld [vmem:[%s3 + $0x118] sm:$0xff]
        %v1110 = vld [vmem:[%s3 + $0x120] sm:$0xff]
        %v1111 = vld [vmem:[%s3 + $0x128] sm:$0xff]
        %v1112 = vld [vmem:[%s3 + $0x130] sm:$0xff]
        %v1113 = vld [vmem:[%s3 + $0x138] sm:$0xff]
        %v1114 = vld [vmem:[%s3 + $0x140] sm:$0xff]
        %v1115 = vld [vmem:[%s3 + $0x148] sm:$0xff]
        %v1116 = vld [vmem:[%s3 + $0x150] sm:$0xff]
        %v1117 = vld [vmem:[%s3 + $0x158] sm:$0xff]
        %v1118 = vld [vmem:[%s3 + $0x160] sm:$0xff]
        %v1119 = vld [vmem:[%s3 + $0x168] sm:$0xff]
        %v1120 = vld [vmem:[%s3 + $0x170] sm:$0xff]
        %v1121 = vld [vmem:[%s3 + $0x178] sm:$0xff]
        %v1122 = vld [vmem:[%s3 + $0x180] sm:$0xff]
        %v1123 = vld [vmem:[%s3 + $0x188] sm:$0xff]
        %v1124 = vld [vmem:[%s3 + $0x190] sm:$0xff]
        %v1125 = vld [vmem:[%s3 + $0x198] sm:$0xff]
        %v1126 = vld [vmem:[%s3 + $0x1a0] sm:$0xff]
        %v1127 = vld [vmem:[%s3 + $0x1a8] sm:$0xff]
        %v1128 = vld [vmem:[%s3 + $0x1b0] sm:$0xff]
        %v1129 = vld [vmem:[%s3 + $0x1b8] sm:$0xff]
        %v1130 = vld [vmem:[%s3 + $0x1c0] sm:$0xff]
        %v1131 = vld [vmem:[%s3 + $0x1c8] sm:$0xff]
        %v1132 = vld [vmem:[%s3 + $0x1d0] sm:$0xff]
        %v1133 = vld [vmem:[%s3 + $0x1d8] sm:$0xff]
        %v1134 = vld [vmem:[%s3 + $0x1e0] sm:$0xff]
        %v1135 = vld [vmem:[%s3 + $0x1e8] sm:$0xff]
        %v1136 = vld [vmem:[%s3 + $0x1f0] sm:$0xff]
        %v1137 = vld [vmem:[%s3 + $0x1f8] sm:$0xff]
        %v1138 = vld [vmem:[%s3 + $0x200] sm:$0xff]
        %v1139 = vld [vmem:[%s3 + $0x208] sm:$0xff]
        %v1140 = vld [vmem:[%s3 + $0x210] sm:$0xff]
        %v1141 = vld [vmem:[%s3 + $0x218] sm:$0xff]
        %v1142 = vld [vmem:[%s3 + $0x220] sm:$0xff]
        %v1143 = vld [vmem:[%s3 + $0x228] sm:$0xff]
        %v1144 = vld [vmem:[%s3 + $0x230] sm:$0xff]
        %v1145 = vld [vmem:[%s3 + $0x238] sm:$0xff]
        %v1146 = vld [vmem:[%s3 + $0x240] sm:$0xff]
        %v1147 = vld [vmem:[%s3 + $0x248] sm:$0xff]
        %v1148 = vld [vmem:[%s3 + $0x250] sm:$0xff]
        %v1149 = vld [vmem:[%s3 + $0x258] sm:$0xff]
        %v1150 = vld [vmem:[%s3 + $0x260] sm:$0xff]
        %v1151 = vld [vmem:[%s3 + $0x268] sm:$0xff]
        %v1152 = vld [vmem:[%s3 + $0x270] sm:$0xff]
        %v1153 = vld [vmem:[%s3 + $0x278] sm:$0xff]
        %v1154 = vld [vmem:[%s3 + $0x280] sm:$0xff]
        %v1155 = vld [vmem:[%s3 + $0x288] sm:$0xff]
        %v1156 = vld [vmem:[%s3 + $0x290] sm:$0xff]
        %v1157 = vld [vmem:[%s3 + $0x298] sm:$0xff]
        %v1158 = vld [vmem:[%s3 + $0x2a0] sm:$0xff]
        %v1159 = vld [vmem:[%s3 + $0x2a8] sm:$0xff]
        %v1160 = vld [vmem:[%s3 + $0x2b0] sm:$0xff]
        %v1161 = vld [vmem:[%s3 + $0x2b8] sm:$0xff]
        %v1162 = vld [vmem:[%s3 + $0x2c0] sm:$0xff]
        %v1163 = vld [vmem:[%s3 + $0x2c8] sm:$0xff]
        %v1164 = vld [vmem:[%s3 + $0x2d0] sm:$0xff]
        %v1165 = vld [vmem:[%s3 + $0x2d8] sm:$0xff]
        %v1166 = vld [vmem:[%s3 + $0x2e0] sm:$0xff]
        %v1167 = vld [vmem:[%s3 + $0x2e8] sm:$0xff]
        %v1168 = vld [vmem:[%s3 + $0x2f0] sm:$0xff]
        %v1169 = vld [vmem:[%s3 + $0x2f8] sm:$0xff]
        %v1170 = vld [vmem:[%s3 + $0x300] sm:$0xff]
        %v1171 = vld [vmem:[%s3 + $0x308] sm:$0xff]
        %v1172 = vld [vmem:[%s3 + $0x310] sm:$0xff]
        %v1173 = vld [vmem:[%s3 + $0x318] sm:$0xff]
        %v1174 = vld [vmem:[%s3 + $0x320] sm:$0xff]
        %v1175 = vld [vmem:[%s3 + $0x328] sm:$0xff]
        %v1176 = vld [vmem:[%s3 + $0x330] sm:$0xff]
        %v1177 = vld [vmem:[%s3 + $0x338] sm:$0xff]
        %v1178 = vld [vmem:[%s3 + $0x340] sm:$0xff]
        %v1179 = vld [vmem:[%s3 + $0x348] sm:$0xff]
        %v1180 = vld [vmem:[%s3 + $0x350] sm:$0xff]
        %v1181 = vld [vmem:[%s3 + $0x358] sm:$0xff]
        %v1182 = vld [vmem:[%s3 + $0x360] sm:$0xff]
        %v1183 = vld [vmem:[%s3 + $0x368] sm:$0xff]
        %v1184 = vld [vmem:[%s3 + $0x370] sm:$0xff]
        %v1185 = vld [vmem:[%s3 + $0x378] sm:$0xff]
        %v1186 = vld [vmem:[%s7] sm:$0x1]
        %v1188 = vlaneseq
        %v1189 = vshrl.u32 %v1188, 7
        %v1190 = vsub.s32 0, %v1189
        %v1191 = vrot.slane %v1186, %v1190
        %1193 = vmatprep.subr.mxu0 0.0
        %1194 = vmatpush1.msra.mxu0 %v1074
        %1195 = vmatprep.subr.mxu0 0.0
        %1196 = vmatpush1.msra.mxu0 %v1075
        %1197 = vmatprep.subr.mxu0 0.0
        %1198 = vmatpush1.msra.mxu0 %v1076
        %1199 = vmatprep.subr.mxu0 0.0
        %1200 = vmatpush1.msra.mxu0 %v1077
        %1201 = vmatprep.subr.mxu0 0.0
        %1202 = vmatpush1.msra.mxu0 %v1078
        %1203 = vmatprep.subr.mxu0 0.0
        %1204 = vmatpush1.msra.mxu0 %v1079
        %1205 = vmatprep.subr.mxu0 0.0
        %1206 = vmatpush1.msra.mxu0 %v1080
        %1207 = vmatprep.subr.mxu0 0.0
        %1208 = vmatpush1.msra.mxu0 %v1081
        %1209 = vmatprep.subr.mxu0 0.0
        %1210 = vmatpush1.msra.mxu0 %v1082
        %1211 = vmatprep.subr.mxu0 0.0
        %1212 = vmatpush1.msra.mxu0 %v1083
        %1213 = vmatprep.subr.mxu0 0.0
        %1214 = vmatpush1.msra.mxu0 %v1084
        %1215 = vmatprep.subr.mxu0 0.0
        %1216 = vmatpush1.msra.mxu0 %v1085
        %1217 = vmatprep.subr.mxu0 0.0
        %1218 = vmatpush1.msra.mxu0 %v1086
        %1219 = vmatprep.subr.mxu0 0.0
        %1220 = vmatpush1.msra.mxu0 %v1087
        %1221 = vmatprep.subr.mxu0 0.0
        %1222 = vmatpush1.msra.mxu0 %v1088
        %1223 = vmatprep.subr.mxu0 0.0
        %1224 = vmatpush1.msra.mxu0 %v1089
        %1225 = vmatprep.subr.mxu0 0.0
        %1226 = vmatpush1.msra.mxu0 %v1090
        %1227 = vmatprep.subr.mxu0 0.0
        %1228 = vmatpush1.msra.mxu0 %v1091
        %1229 = vmatprep.subr.mxu0 0.0
        %1230 = vmatpush1.msra.mxu0 %v1092
        %1231 = vmatprep.subr.mxu0 0.0
        %1232 = vmatpush1.msra.mxu0 %v1093
        %1233 = vmatprep.subr.mxu0 0.0
        %1234 = vmatpush1.msra.mxu0 %v1094
        %1235 = vmatprep.subr.mxu0 0.0
        %1236 = vmatpush1.msra.mxu0 %v1095
        %1237 = vmatprep.subr.mxu0 0.0
        %1238 = vmatpush1.msra.mxu0 %v1096
        %1239 = vmatprep.subr.mxu0 0.0
        %1240 = vmatpush1.msra.mxu0 %v1097
        %1241 = vmatprep.subr.mxu0 0.0
        %1242 = vmatpush1.msra.mxu0 %v1098
        %1243 = vmatprep.subr.mxu0 0.0
        %1244 = vmatpush1.msra.mxu0 %v1099
        %1245 = vmatprep.subr.mxu0 0.0
        %1246 = vmatpush1.msra.mxu0 %v1100
        %1247 = vmatprep.subr.mxu0 0.0
        %1248 = vmatpush1.msra.mxu0 %v1101
        %1249 = vmatprep.subr.mxu0 0.0
        %1250 = vmatpush1.msra.mxu0 %v1102
        %1251 = vmatprep.subr.mxu0 0.0
        %1252 = vmatpush1.msra.mxu0 %v1103
        %1253 = vmatprep.subr.mxu0 0.0
        %1254 = vmatpush1.msra.mxu0 %v1104
        %1255 = vmatprep.subr.mxu0 0.0
        %1256 = vmatpush1.msra.mxu0 %v1105
        %1257 = vmatprep.mubr.f32.mxu0 %v1043
        %1258 = vmatmul.mubr.f32.gmra.mrb[0].mxu0 %v1037
        %v1259 = vpop.f32.mrb[0].mxu0
        %v1260 = vadd.f32 %v1191, %v1259
        %v1261 = vpop.f32.mrb[0].mxu0
        %1262 = vmatprep.mubr.f32.mxu0 %v1044
        %1263 = vmatmul.mubr.f32.gmra.mrb[0].mxu0 %v1038
        %v1264 = vpop.f32.mrb[0].mxu0
        %v1265 = vadd.f32 %v1191, %v1264
        %v1266 = vpop.f32.mrb[0].mxu0
        %1267 = vdwg.mxu0
        %1268 = vmatprep.subr.mxu0 0.0
        %1269 = vmatpush1.msra.mxu0 %v1106
        %1270 = vmatprep.subr.mxu0 0.0
        %1271 = vmatpush1.msra.mxu0 %v1107
        %1272 = vmatprep.subr.mxu0 0.0
        %1273 = vmatpush1.msra.mxu0 %v1108
        %1274 = vmatprep.subr.mxu0 0.0
        %1275 = vmatpush1.msra.mxu0 %v1109
        %1276 = vmatprep.subr.mxu0 0.0
        %1277 = vmatpush1.msra.mxu0 %v1110
        %1278 = vmatprep.subr.mxu0 0.0
        %1279 = vmatpush1.msra.mxu0 %v1111
        %1280 = vmatprep.subr.mxu0 0.0
        %1281 = vmatpush1.msra.mxu0 %v1112
        %1282 = vmatprep.subr.mxu0 0.0
        %1283 = vmatpush1.msra.mxu0 %v1113
        %1284 = vmatprep.subr.mxu0 0.0
        %1285 = vmatpush1.msra.mxu0 %v1114
        %1286 = vmatprep.subr.mxu0 0.0
        %1287 = vmatpush1.msra.mxu0 %v1115
        %1288 = vmatprep.subr.mxu0 0.0
        %1289 = vmatpush1.msra.mxu0 %v1116
        %1290 = vmatprep.subr.mxu0 0.0
        %1291 = vmatpush1.msra.mxu0 %v1117
        %1292 = vmatprep.subr.mxu0 0.0
        %1293 = vmatpush1.msra.mxu0 %v1118
        %1294 = vmatprep.subr.mxu0 0.0
        %1295 = vmatpush1.msra.mxu0 %v1119
        %1296 = vmatprep.subr.mxu0 0.0
        %1297 = vmatpush1.msra.mxu0 %v1120
        %1298 = vmatprep.subr.mxu0 0.0
        %1299 = vmatpush1.msra.mxu0 %v1121
        %1300 = vmatprep.subr.mxu0 0.0
        %1301 = vmatpush1.msra.mxu0 %v1122
        %1302 = vmatprep.subr.mxu0 0.0
        %1303 = vmatpush1.msra.mxu0 %v1123
        %1304 = vmatprep.subr.mxu0 0.0
        %1305 = vmatpush1.msra.mxu0 %v1124
        %1306 = vmatprep.subr.mxu0 0.0
        %1307 = vmatpush1.msra.mxu0 %v1125
        %1308 = vmatprep.subr.mxu0 0.0
        %1309 = vmatpush1.msra.mxu0 %v1126
        %1310 = vmatprep.subr.mxu0 0.0
        %1311 = vmatpush1.msra.mxu0 %v1127
        %1312 = vmatprep.subr.mxu0 0.0
        %1313 = vmatpush1.msra.mxu0 %v1128
        %1314 = vmatprep.subr.mxu0 0.0
        %1315 = vmatpush1.msra.mxu0 %v1129
        %1316 = vmatprep.subr.mxu0 0.0
        %1317 = vmatpush1.msra.mxu0 %v1130
        %1318 = vmatprep.subr.mxu0 0.0
        %1319 = vmatpush1.msra.mxu0 %v1131
        %1320 = vmatprep.subr.mxu0 0.0
        %1321 = vmatpush1.msra.mxu0 %v1132
        %1322 = vmatprep.subr.mxu0 0.0
        %1323 = vmatpush1.msra.mxu0 %v1133
        %1324 = vmatprep.subr.mxu0 0.0
        %1325 = vmatpush1.msra.mxu0 %v1134
        %1326 = vmatprep.subr.mxu0 0.0
        %1327 = vmatpush1.msra.mxu0 %v1135
        %1328 = vmatprep.subr.mxu0 0.0
        %1329 = vmatpush1.msra.mxu0 %v1136
        %1330 = vmatprep.subr.mxu0 0.0
        %1331 = vmatpush1.msra.mxu0 %v1137
        %1332 = vmatprep.mubr.f32.mxu0 %v1026
        %1333 = vmatmul.mubr.f32.gmra.mrb[0].mxu0 %v1049
        %v1334 = vpop.f32.mrb[0].mxu0
        %v1335 = vadd.f32 %v1260, %v1334
        %v1336 = vpop.f32.mrb[0].mxu0
        %1337 = vmatprep.mubr.f32.mxu0 %v1027
        %1338 = vmatmul.mubr.f32.gmra.mrb[0].mxu0 %v1050
        %v1339 = vpop.f32.mrb[0].mxu0
        %v1340 = vadd.f32 %v1265, %v1339
        %v1341 = vpop.f32.mrb[0].mxu0
        %1342 = vdwg.mxu0
        %1343 = vmatprep.subr.mxu0 0.0
        %1344 = vmatpush1.msra.mxu0 %v1138
        %1345 = vmatprep.subr.mxu0 0.0
        %1346 = vmatpush1.msra.mxu0 %v1139
        %1347 = vmatprep.subr.mxu0 0.0
        %1348 = vmatpush1.msra.mxu0 %v1140
        %1349 = vmatprep.subr.mxu0 0.0
        %1350 = vmatpush1.msra.mxu0 %v1141
        %1351 = vmatprep.subr.mxu0 0.0
        %1352 = vmatpush1.msra.mxu0 %v1142
        %1353 = vmatprep.subr.mxu0 0.0
        %1354 = vmatpush1.msra.mxu0 %v1143
        %1355 = vmatprep.subr.mxu0 0.0
        %1356 = vmatpush1.msra.mxu0 %v1144
        %1357 = vmatprep.subr.mxu0 0.0
        %1358 = vmatpush1.msra.mxu0 %v1145
        %1359 = vmatprep.subr.mxu0 0.0
        %1360 = vmatpush1.msra.mxu0 %v1146
        %1361 = vmatprep.subr.mxu0 0.0
        %1362 = vmatpush1.msra.mxu0 %v1147
        %1363 = vmatprep.subr.mxu0 0.0
        %1364 = vmatpush1.msra.mxu0 %v1148
        %1365 = vmatprep.subr.mxu0 0.0
        %1366 = vmatpush1.msra.mxu0 %v1149
        %1367 = vmatprep.subr.mxu0 0.0
        %1368 = vmatpush1.msra.mxu0 %v1150
        %1369 = vmatprep.subr.mxu0 0.0
        %1370 = vmatpush1.msra.mxu0 %v1151
        %1371 = vmatprep.subr.mxu0 0.0
        %1372 = vmatpush1.msra.mxu0 %v1152
        %1373 = vmatprep.subr.mxu0 0.0
        %1374 = vmatpush1.msra.mxu0 %v1153
        %1375 = vmatprep.subr.mxu0 0.0
        %1376 = vmatpush1.msra.mxu0 %v1154
        %1377 = vmatprep.subr.mxu0 0.0
        %1378 = vmatpush1.msra.mxu0 %v1155
        %1379 = vmatprep.subr.mxu0 0.0
        %1380 = vmatpush1.msra.mxu0 %v1156
        %1381 = vmatprep.subr.mxu0 0.0
        %1382 = vmatpush1.msra.mxu0 %v1157
        %1383 = vmatprep.subr.mxu0 0.0
        %1384 = vmatpush1.msra.mxu0 %v1158
        %1385 = vmatprep.subr.mxu0 0.0
        %1386 = vmatpush1.msra.mxu0 %v1159
        %1387 = vmatprep.subr.mxu0 0.0
        %1388 = vmatpush1.msra.mxu0 %v1160
        %1389 = vmatprep.subr.mxu0 0.0
        %1390 = vmatpush1.msra.mxu0 %v1161
        %1391 = vmatprep.subr.mxu0 0.0
        %1392 = vmatpush1.msra.mxu0 %v1162
        %1393 = vmatprep.subr.mxu0 0.0
        %1394 = vmatpush1.msra.mxu0 %v1163
        %1395 = vmatprep.subr.mxu0 0.0
        %1396 = vmatpush1.msra.mxu0 %v1164
        %1397 = vmatprep.subr.mxu0 0.0
        %1398 = vmatpush1.msra.mxu0 %v1165
        %1399 = vmatprep.subr.mxu0 0.0
        %1400 = vmatpush1.msra.mxu0 %v1166
        %1401 = vmatprep.subr.mxu0 0.0
        %1402 = vmatpush1.msra.mxu0 %v1167
        %1403 = vmatprep.subr.mxu0 0.0
        %1404 = vmatpush1.msra.mxu0 %v1168
        %1405 = vmatprep.subr.mxu0 0.0
        %1406 = vmatpush1.msra.mxu0 %v1169
        %1407 = vmatprep.mubr.f32.mxu0 %v1061
        %1408 = vmatmul.mubr.f32.gmra.mrb[0].mxu0 %v1055
        %v1409 = vpop.f32.mrb[0].mxu0
        %v1410 = vadd.f32 %v1335, %v1409
        %v1411 = vpop.f32.mrb[0].mxu0
        %1412 = vmatprep.mubr.f32.mxu0 %v1062
        %1413 = vmatmul.mubr.f32.gmra.mrb[0].mxu0 %v1056
        %v1414 = vpop.f32.mrb[0].mxu0
        %v1415 = vadd.f32 %v1340, %v1414
        %v1416 = vpop.f32.mrb[0].mxu0
        %1417 = vdwg.mxu0
        %1418 = vmatprep.subr.mxu0 0.0
        %1419 = vmatpush1.msra.mxu0 %v1170
        %1420 = vmatprep.subr.mxu0 0.0
        %1421 = vmatpush1.msra.mxu0 %v1171
        %1422 = vmatprep.subr.mxu0 0.0
        %1423 = vmatpush1.msra.mxu0 %v1172
        %1424 = vmatprep.subr.mxu0 0.0
        %1425 = vmatpush1.msra.mxu0 %v1173
        %1426 = vmatprep.subr.mxu0 0.0
        %1427 = vmatpush1.msra.mxu0 %v1174
        %1428 = vmatprep.subr.mxu0 0.0
        %1429 = vmatpush1.msra.mxu0 %v1175
        %1430 = vmatprep.subr.mxu0 0.0
        %1431 = vmatpush1.msra.mxu0 %v1176
        %1432 = vmatprep.subr.mxu0 0.0
        %1433 = vmatpush1.msra.mxu0 %v1177
        %1434 = vmatprep.subr.mxu0 0.0
        %1435 = vmatpush1.msra.mxu0 %v1178
        %1436 = vmatprep.subr.mxu0 0.0
        %1437 = vmatpush1.msra.mxu0 %v1179
        %1438 = vmatprep.subr.mxu0 0.0
        %1439 = vmatpush1.msra.mxu0 %v1180
        %1440 = vmatprep.subr.mxu0 0.0
        %1441 = vmatpush1.msra.mxu0 %v1181
        %1442 = vmatprep.subr.mxu0 0.0
        %1443 = vmatpush1.msra.mxu0 %v1182
        %1444 = vmatprep.subr.mxu0 0.0
        %1445 = vmatpush1.msra.mxu0 %v1183
        %1446 = vmatprep.subr.mxu0 0.0
        %1447 = vmatpush1.msra.mxu0 %v1184
        %1448 = vmatprep.subr.mxu0 0.0
        %1449 = vmatpush1.msra.mxu0 %v1185
        %1450 = vmatprep.subr.mxu0 0.0
        %1451 = vmatpush1.msra.mxu0 0.0
        %1452 = vmatprep.subr.mxu0 0.0
        %1453 = vmatpush1.msra.mxu0 0.0
        %1454 = vmatprep.subr.mxu0 0.0
        %1455 = vmatpush1.msra.mxu0 0.0
        %1456 = vmatprep.subr.mxu0 0.0
        %1457 = vmatpush1.msra.mxu0 0.0
        %1458 = vmatprep.subr.mxu0 0.0
        %1459 = vmatpush1.msra.mxu0 0.0
        %1460 = vmatprep.subr.mxu0 0.0
        %1461 = vmatpush1.msra.mxu0 0.0
        %1462 = vmatprep.subr.mxu0 0.0
        %1463 = vmatpush1.msra.mxu0 0.0
        %1464 = vmatprep.subr.mxu0 0.0
        %1465 = vmatpush1.msra.mxu0 0.0
        %1466 = vmatprep.subr.mxu0 0.0
        %1467 = vmatpush1.msra.mxu0 0.0
        %1468 = vmatprep.subr.mxu0 0.0
        %1469 = vmatpush1.msra.mxu0 0.0
        %1470 = vmatprep.subr.mxu0 0.0
        %1471 = vmatpush1.msra.mxu0 0.0
        %1472 = vmatprep.subr.mxu0 0.0
        %1473 = vmatpush1.msra.mxu0 0.0
        %1474 = vmatprep.subr.mxu0 0.0
        %1475 = vmatpush1.msra.mxu0 0.0
        %1476 = vmatprep.subr.mxu0 0.0
        %1477 = vmatpush1.msra.mxu0 0.0
        %1478 = vmatprep.subr.mxu0 0.0
        %1479 = vmatpush1.msra.mxu0 0.0
        %1480 = vmatprep.subr.mxu0 0.0
        %1481 = vmatpush1.msra.mxu0 0.0
        %1482 = vmatprep.mubr.f32.mxu0 0.0
        %1483 = vmatmul.mubr.f32.gmra.mrb[0].mxu0 %v1072
        %v1484 = vpop.f32.mrb[0].mxu0
        %v1485 = vadd.f32 %v1410, %v1484
        %v1486 = vpop.f32.mrb[0].mxu0
        %1487 = vmatprep.mubr.f32.mxu0 0.0
        %1488 = vmatmul.mubr.f32.gmra.mrb[0].mxu0 %v1073
        %v1489 = vpop.f32.mrb[0].mxu0
        %v1490 = vadd.f32 %v1415, %v1489
        %v1491 = vpop.f32.mrb[0].mxu0
        %1492 = vdwg.mxu0
        %1495 = vrot.lane.b32.xlu0 %v1026, 64
        %v1496 = vpop.permute.xlu0 %1495
        %1497 = vrot.lane.b32.xlu0 %v1027, 64
        %v1498 = vpop.permute.xlu0 %1497
        %vm1501 = vcmask 523264
        %v1502 = vsel %vm1501, %v1026, %v1496
        %v1503 = vsel %vm1501, %v1027, %v1498
        %v1504 = vadd.f32 %v1485, %v1502
        %v1505 = vadd.f32 %v1490, %v1503
        %v1506 = vld [vmem:[#allocation6] sm:$0xff]
        %v1507 = vld [vmem:[#allocation6 + $0x8] sm:$0xff]
        %v1508 = vld [vmem:[#allocation6 + $0x10] sm:$0xff]
        %v1509 = vld [vmem:[#allocation6 + $0x18] sm:$0xff]
        %v1510 = vld [vmem:[#allocation6 + $0x20] sm:$0xff]
        %v1511 = vld [vmem:[#allocation6 + $0x28] sm:$0xff]
        %v1512 = vld [vmem:[#allocation6 + $0x30] sm:$0xff]
        %v1513 = vld [vmem:[#allocation6 + $0x38] sm:$0xff]
        %v1514 = vld [vmem:[#allocation6 + $0x40] sm:$0xff]
        %v1515 = vld [vmem:[#allocation6 + $0x48] sm:$0xff]
        %v1516 = vld [vmem:[#allocation6 + $0x50] sm:$0xff]
        %v1517 = vld [vmem:[#allocation6 + $0x58] sm:$0xff]
        %v1518 = vld [vmem:[#allocation6 + $0x60] sm:$0xff]
        %v1519 = vld [vmem:[#allocation6 + $0x68] sm:$0xff]
        %v1520 = vld [vmem:[#allocation6 + $0x70] sm:$0xff]
        %v1521 = vld [vmem:[#allocation6 + $0x78] sm:$0xff]
        %v1522 = vld [vmem:[%s8] sm:$0x1]
        %v1524 = vlaneseq
        %v1525 = vshrl.u32 %v1524, 7
        %v1526 = vsub.s32 0, %v1525
        %v1527 = vrot.slane %v1522, %v1526
        %1529 = vmatprep.subr.mxu0 0.0
        %1530 = vmatpush1.msra.mxu0 %v1506
        %1531 = vmatprep.subr.mxu0 0.0
        %1532 = vmatpush1.msra.mxu0 %v1507
        %1533 = vmatprep.subr.mxu0 0.0
        %1534 = vmatpush1.msra.mxu0 %v1508
        %1535 = vmatprep.subr.mxu0 0.0
        %1536 = vmatpush1.msra.mxu0 %v1509
        %1537 = vmatprep.subr.mxu0 0.0
        %1538 = vmatpush1.msra.mxu0 %v1510
        %1539 = vmatprep.subr.mxu0 0.0
        %1540 = vmatpush1.msra.mxu0 %v1511
        %1541 = vmatprep.subr.mxu0 0.0
        %1542 = vmatpush1.msra.mxu0 %v1512
        %1543 = vmatprep.subr.mxu0 0.0
        %1544 = vmatpush1.msra.mxu0 %v1513
        %1545 = vmatprep.subr.mxu0 0.0
        %1546 = vmatpush1.msra.mxu0 %v1514
        %1547 = vmatprep.subr.mxu0 0.0
        %1548 = vmatpush1.msra.mxu0 %v1515
        %1549 = vmatprep.subr.mxu0 0.0
        %1550 = vmatpush1.msra.mxu0 %v1516
        %1551 = vmatprep.subr.mxu0 0.0
        %1552 = vmatpush1.msra.mxu0 %v1517
        %1553 = vmatprep.subr.mxu0 0.0
        %1554 = vmatpush1.msra.mxu0 %v1518
        %1555 = vmatprep.subr.mxu0 0.0
        %1556 = vmatpush1.msra.mxu0 %v1519
        %1557 = vmatprep.subr.mxu0 0.0
        %1558 = vmatpush1.msra.mxu0 %v1520
        %1559 = vmatprep.subr.mxu0 0.0
        %1560 = vmatpush1.msra.mxu0 %v1521
        %1561 = vmatprep.subr.mxu0 0.0
        %1562 = vmatpush1.msra.mxu0 0.0
        %1563 = vmatprep.subr.mxu0 0.0
        %1564 = vmatpush1.msra.mxu0 0.0
        %1565 = vmatprep.subr.mxu0 0.0
        %1566 = vmatpush1.msra.mxu0 0.0
        %1567 = vmatprep.subr.mxu0 0.0
        %1568 = vmatpush1.msra.mxu0 0.0
        %1569 = vmatprep.subr.mxu0 0.0
        %1570 = vmatpush1.msra.mxu0 0.0
        %1571 = vmatprep.subr.mxu0 0.0
        %1572 = vmatpush1.msra.mxu0 0.0
        %1573 = vmatprep.subr.mxu0 0.0
        %1574 = vmatpush1.msra.mxu0 0.0
        %1575 = vmatprep.subr.mxu0 0.0
        %1576 = vmatpush1.msra.mxu0 0.0
        %1577 = vmatprep.subr.mxu0 0.0
        %1578 = vmatpush1.msra.mxu0 0.0
        %1579 = vmatprep.subr.mxu0 0.0
        %1580 = vmatpush1.msra.mxu0 0.0
        %1581 = vmatprep.subr.mxu0 0.0
        %1582 = vmatpush1.msra.mxu0 0.0
        %1583 = vmatprep.subr.mxu0 0.0
        %1584 = vmatpush1.msra.mxu0 0.0
        %1585 = vmatprep.subr.mxu0 0.0
        %1586 = vmatpush1.msra.mxu0 0.0
        %1587 = vmatprep.subr.mxu0 0.0
        %1588 = vmatpush1.msra.mxu0 0.0
        %1589 = vmatprep.subr.mxu0 0.0
        %1590 = vmatpush1.msra.mxu0 0.0
        %1591 = vmatprep.subr.mxu0 0.0
        %1592 = vmatpush1.msra.mxu0 0.0
        %1593 = vmatprep.mubr.f32.mxu0 0.0
        %1594 = vmatmul.mubr.f32.gmra.mrb[0].mxu0 %v1504
        %v1595 = vpop.f32.mrb[0].mxu0
        %v1596 = vadd.f32 %v1527, %v1595
        %v1597 = vpop.f32.mrb[0].mxu0
        %1598 = vmatprep.mubr.f32.mxu0 0.0
        %1599 = vmatmul.mubr.f32.gmra.mrb[0].mxu0 %v1505
        %v1600 = vpop.f32.mrb[0].mxu0
        %v1601 = vadd.f32 %v1527, %v1600
        %v1602 = vpop.f32.mrb[0].mxu0
        %1603 = vdwg.mxu0
        %v1604 = vmul.f32 %v1596, %v1596
        %v1605 = vmul.f32 %v1601, %v1601
        %1608 = vrot.lane.b32.xlu0 %v1604, 64
        %v1609 = vpop.permute.xlu0 %1608
        %1610 = vrot.lane.b32.xlu0 %v1605, 64
        %v1611 = vpop.permute.xlu0 %1610
        %vm1614 = vcmask 261120
        %v1615 = vsel %vm1614, %v1609, 0.0
        %1616 = vadd.xlane.f32.xlu0 %v1615
        %v1617 = vpop.xlane.xlu0 %1616
        %v1618 = vsel %vm1614, %v1611, 0.0
        %1619 = vadd.xlane.f32.xlu0 %v1618
        %v1620 = vpop.xlane.xlu0 %1619
        %v1621 = vmax.f32 %v1617, 1e-24
        %v1622 = vmax.f32 %v1620, 1e-24
        %v1623 = vrsqrt.pop %v1621
        %v1624 = vrsqrt.pop %v1622
        %v1625 = vmul.f32 %v1596, %v1623
        %v1626 = vmul.f32 %v1601, %v1624
        %v1627 = vsel %vm1614, %v1604, 0.0
        %1628 = vadd.xlane.f32.xlu0 %v1627
        %v1629 = vpop.xlane.xlu0 %1628
        %v1630 = vsel %vm1614, %v1605, 0.0
        %1631 = vadd.xlane.f32.xlu0 %v1630
        %v1632 = vpop.xlane.xlu0 %1631
        %v1633 = vmax.f32 %v1629, 1e-24
        %v1634 = vmax.f32 %v1632, 1e-24
        %v1635 = vrsqrt.pop %v1633
        %v1636 = vrsqrt.pop %v1634
        %v1637 = vmul.f32 %v1596, %v1635
        %v1638 = vmul.f32 %v1601, %v1636
        %1641 = vrot.lane.b32.xlu0 %v1625, 64
        %v1642 = vpop.permute.xlu0 %1641
        %1643 = vrot.lane.b32.xlu0 %v1626, 64
        %v1644 = vpop.permute.xlu0 %1643
        %v1645 = vsel %vm1614, %v1642, 0
        %v1647 = vsel %vm1614, %v1644, 0
        %v1650 = vsel %vm1614, %v1637, 0
        %v1653 = vsel %vm1614, %v1638, 0
        %1655 = vmatprep.subr.mxu0 0.0
        %1656 = vmatpush1.xpose.msra.mxu0 %v1650
        %1657 = vmatprep.subr.mxu0 0.0
        %1658 = vmatpush1.xpose.msra.mxu0 %v1653
        %1659 = vmatprep.subr.mxu0 0.0
        %1660 = vmatpush1.xpose.msra.mxu0 0.0
        %1661 = vmatprep.subr.mxu0 0.0
        %1662 = vmatpush1.xpose.msra.mxu0 0.0
        %1663 = vmatprep.subr.mxu0 0.0
        %1664 = vmatpush1.xpose.msra.mxu0 0.0
        %1665 = vmatprep.subr.mxu0 0.0
        %1666 = vmatpush1.xpose.msra.mxu0 0.0
        %1667 = vmatprep.subr.mxu0 0.0
        %1668 = vmatpush1.xpose.msra.mxu0 0.0
        %1669 = vmatprep.subr.mxu0 0.0
        %1670 = vmatpush1.xpose.msra.mxu0 0.0
        %1671 = vmatprep.subr.mxu0 0.0
        %1672 = vmatpush1.xpose.msra.mxu0 0.0
        %1673 = vmatprep.subr.mxu0 0.0
        %1674 = vmatpush1.xpose.msra.mxu0 0.0
        %1675 = vmatprep.subr.mxu0 0.0
        %1676 = vmatpush1.xpose.msra.mxu0 0.0
        %1677 = vmatprep.subr.mxu0 0.0
        %1678 = vmatpush1.xpose.msra.mxu0 0.0
        %1679 = vmatprep.subr.mxu0 0.0
        %1680 = vmatpush1.xpose.msra.mxu0 0.0
        %1681 = vmatprep.subr.mxu0 0.0
        %1682 = vmatpush1.xpose.msra.mxu0 0.0
        %1683 = vmatprep.subr.mxu0 0.0
        %1684 = vmatpush1.xpose.msra.mxu0 0.0
        %1685 = vmatprep.subr.mxu0 0.0
        %1686 = vmatpush1.xpose.msra.mxu0 0.0
        %1687 = vmatprep.subr.mxu0 0.0
        %1688 = vmatpush1.xpose.msra.mxu0 0.0
        %1689 = vmatprep.subr.mxu0 0.0
        %1690 = vmatpush1.xpose.msra.mxu0 0.0
        %1691 = vmatprep.subr.mxu0 0.0
        %1692 = vmatpush1.xpose.msra.mxu0 0.0
        %1693 = vmatprep.subr.mxu0 0.0
        %1694 = vmatpush1.xpose.msra.mxu0 0.0
        %1695 = vmatprep.subr.mxu0 0.0
        %1696 = vmatpush1.xpose.msra.mxu0 0.0
        %1697 = vmatprep.subr.mxu0 0.0
        %1698 = vmatpush1.xpose.msra.mxu0 0.0
        %1699 = vmatprep.subr.mxu0 0.0
        %1700 = vmatpush1.xpose.msra.mxu0 0.0
        %1701 = vmatprep.subr.mxu0 0.0
        %1702 = vmatpush1.xpose.msra.mxu0 0.0
        %1703 = vmatprep.subr.mxu0 0.0
        %1704 = vmatpush1.xpose.msra.mxu0 0.0
        %1705 = vmatprep.subr.mxu0 0.0
        %1706 = vmatpush1.xpose.msra.mxu0 0.0
        %1707 = vmatprep.subr.mxu0 0.0
        %1708 = vmatpush1.xpose.msra.mxu0 0.0
        %1709 = vmatprep.subr.mxu0 0.0
        %1710 = vmatpush1.xpose.msra.mxu0 0.0
        %1711 = vmatprep.subr.mxu0 0.0
        %1712 = vmatpush1.xpose.msra.mxu0 0.0
        %1713 = vmatprep.subr.mxu0 0.0
        %1714 = vmatpush1.xpose.msra.mxu0 0.0
        %1715 = vmatprep.subr.mxu0 0.0
        %1716 = vmatpush1.xpose.msra.mxu0 0.0
        %1717 = vmatprep.subr.mxu0 0.0
        %1718 = vmatpush1.xpose.msra.mxu0 0.0
        %1719 = vmatprep.mubr.f32.mxu0 0.0
        %1720 = vmatmul.mubr.f32.gmra.mrb[0].mxu0 %v1645
        %v1721 = vpop.f32.mrb[0].mxu0
        %v1722 = vadd.f32 0.0, %v1721
        %v1723 = vpop.f32.mrb[0].mxu0
        %1724 = vmatprep.mubr.f32.mxu0 0.0
        %1725 = vmatmul.mubr.f32.gmra.mrb[0].mxu0 %v1647
        %v1726 = vpop.f32.mrb[0].mxu0
        %v1727 = vadd.f32 0.0, %v1726
        %v1728 = vpop.f32.mrb[0].mxu0
        %1729 = vdwg.mxu0
        %vm1730 = vcmask 130048
        %v1731 = vsel %vm1730, %v1722, -inf
        %1732 = vmax.xlane.f32.xlu0 %v1731
        %v1733 = vpop.xlane.xlu0 %1732
        %v1734 = vsel %vm1730, %v1727, -inf
        %1735 = vmax.xlane.f32.xlu0 %v1734
        %v1736 = vpop.xlane.xlu0 %1735
        %v1737 = vsub.f32 %v1722, %v1733
        %v1738 = vsub.f32 %v1727, %v1736
        %v1739 = vmul.f32 %v1737, 1.442695
        %v1740 = vpow.pop %v1739
        %v1741 = vmul.f32 %v1738, 1.442695
        %v1742 = vpow.pop %v1741
        %v1743 = vsel %vm1730, %v1740, 0.0
        %1744 = vadd.xlane.f32.xlu0 %v1743
        %v1745 = vpop.xlane.xlu0 %1744
        %v1746 = vsel %vm1730, %v1742, 0.0
        %1747 = vadd.xlane.f32.xlu0 %v1746
        %v1748 = vpop.xlane.xlu0 %1747
        %v1749 = vrcp.pop %v1745
        %v1750 = vrcp.pop %v1748
        %v1751 = vmul.f32 %v1740, %v1749
        %v1752 = vmul.f32 %v1742, %v1750
        %v1756 = vsel %vm1730, %v1751, 0
        %v1759 = vsel %vm1730, %v1752, 0
        %1761 = vmatprep.subr.mxu0 0.0
        %1762 = vmatpush1.msra.mxu0 %v1596
        %1763 = vmatprep.subr.mxu0 0.0
        %1764 = vmatpush1.msra.mxu0 %v1601
        %1765 = vmatprep.subr.mxu0 0.0
        %1766 = vmatpush1.msra.mxu0 0.0
        %1767 = vmatprep.subr.mxu0 0.0
        %1768 = vmatpush1.msra.mxu0 0.0
        %1769 = vmatprep.subr.mxu0 0.0
        %1770 = vmatpush1.msra.mxu0 0.0
        %1771 = vmatprep.subr.mxu0 0.0
        %1772 = vmatpush1.msra.mxu0 0.0
        %1773 = vmatprep.subr.mxu0 0.0
        %1774 = vmatpush1.msra.mxu0 0.0
        %1775 = vmatprep.subr.mxu0 0.0
        %1776 = vmatpush1.msra.mxu0 0.0
        %1777 = vmatprep.subr.mxu0 0.0
        %1778 = vmatpush1.msra.mxu0 0.0
        %1779 = vmatprep.subr.mxu0 0.0
        %1780 = vmatpush1.msra.mxu0 0.0
        %1781 = vmatprep.subr.mxu0 0.0
        %1782 = vmatpush1.msra.mxu0 0.0
        %1783 = vmatprep.subr.mxu0 0.0
        %1784 = vmatpush1.msra.mxu0 0.0
        %1785 = vmatprep.subr.mxu0 0.0
        %1786 = vmatpush1.msra.mxu0 0.0
        %1787 = vmatprep.subr.mxu0 0.0
        %1788 = vmatpush1.msra.mxu0 0.0
        %1789 = vmatprep.subr.mxu0 0.0
        %1790 = vmatpush1.msra.mxu0 0.0
        %1791 = vmatprep.subr.mxu0 0.0
        %1792 = vmatpush1.msra.mxu0 0.0
        %1793 = vmatprep.subr.mxu0 0.0
        %1794 = vmatpush1.msra.mxu0 0.0
        %1795 = vmatprep.subr.mxu0 0.0
        %1796 = vmatpush1.msra.mxu0 0.0
        %1797 = vmatprep.subr.mxu0 0.0
        %1798 = vmatpush1.msra.mxu0 0.0
        %1799 = vmatprep.subr.mxu0 0.0
        %1800 = vmatpush1.msra.mxu0 0.0
        %1801 = vmatprep.subr.mxu0 0.0
        %1802 = vmatpush1.msra.mxu0 0.0
        %1803 = vmatprep.subr.mxu0 0.0
        %1804 = vmatpush1.msra.mxu0 0.0
        %1805 = vmatprep.subr.mxu0 0.0
        %1806 = vmatpush1.msra.mxu0 0.0
        %1807 = vmatprep.subr.mxu0 0.0
        %1808 = vmatpush1.msra.mxu0 0.0
        %1809 = vmatprep.subr.mxu0 0.0
        %1810 = vmatpush1.msra.mxu0 0.0
        %1811 = vmatprep.subr.mxu0 0.0
        %1812 = vmatpush1.msra.mxu0 0.0
        %1813 = vmatprep.subr.mxu0 0.0
        %1814 = vmatpush1.msra.mxu0 0.0
        %1815 = vmatprep.subr.mxu0 0.0
        %1816 = vmatpush1.msra.mxu0 0.0
        %1817 = vmatprep.subr.mxu0 0.0
        %1818 = vmatpush1.msra.mxu0 0.0
        %1819 = vmatprep.subr.mxu0 0.0
        %1820 = vmatpush1.msra.mxu0 0.0
        %1821 = vmatprep.subr.mxu0 0.0
        %1822 = vmatpush1.msra.mxu0 0.0
        %1823 = vmatprep.subr.mxu0 0.0
        %1824 = vmatpush1.msra.mxu0 0.0
        %1825 = vmatprep.mubr.f32.mxu0 0.0
        %1826 = vmatmul.mubr.f32.gmra.mrb[0].mxu0 %v1756
        %v1827 = vpop.f32.mrb[0].mxu0
        %v1828 = vadd.f32 %v1642, %v1827
        %v1829 = vpop.f32.mrb[0].mxu0
        %1830 = vmatprep.mubr.f32.mxu0 0.0
        %1831 = vmatmul.mubr.f32.gmra.mrb[0].mxu0 %v1759
        %v1832 = vpop.f32.mrb[0].mxu0
        %v1833 = vadd.f32 %v1644, %v1832
        %v1834 = vpop.f32.mrb[0].mxu0
        %1835 = vdwg.mxu0
        %1836 = vxpose.xlu0.b32.start [1/16] %v1596, 128
        %1837 = vxpose.xlu0.b32.cont [2/16] %v1601, 128
        %1838 = vxpose.xlu0.b32.cont [3/16] 0.0, 128
        %1839 = vxpose.xlu0.b32.cont [4/16] 0.0, 128
        %1840 = vxpose.xlu0.b32.cont [5/16] 0.0, 128
        %1841 = vxpose.xlu0.b32.cont [6/16] 0.0, 128
        %1842 = vxpose.xlu0.b32.cont [7/16] 0.0, 128
        %1843 = vxpose.xlu0.b32.cont [8/16] 0.0, 128
        %1844 = vxpose.xlu0.b32.cont [9/16] 0.0, 128
        %1845 = vxpose.xlu0.b32.cont [10/16] 0.0, 128
        %1846 = vxpose.xlu0.b32.cont [11/16] 0.0, 128
        %1847 = vxpose.xlu0.b32.cont [12/16] 0.0, 128
        %1848 = vxpose.xlu0.b32.cont [13/16] 0.0, 128
        %1849 = vxpose.xlu0.b32.cont [14/16] 0.0, 128
        %1850 = vxpose.xlu0.b32.cont [15/16] 0.0, 128
        %1851 = vxpose.xlu0.b32.end [16/16] 0.0, 128
        %v1852 = vpop.trf.xlu0
        %v1853 = vpop.trf.xlu0
        %v1854 = vpop.trf.xlu0
        %v1855 = vpop.trf.xlu0
        %v1856 = vpop.trf.xlu0
        %v1857 = vpop.trf.xlu0
        %v1858 = vpop.trf.xlu0
        %v1859 = vpop.trf.xlu0
        %v1860 = vpop.trf.xlu0
        %v1861 = vpop.trf.xlu0
        %v1862 = vpop.trf.xlu0
        %v1863 = vpop.trf.xlu0
        %v1864 = vpop.trf.xlu0
        %v1865 = vpop.trf.xlu0
        %v1866 = vpop.trf.xlu0
        %v1867 = vpop.trf.xlu0
        %1870 = vrot.lane.b32.xlu0 %v1596, 112
        %v1871 = vpop.permute.xlu0 %1870
        %1872 = vrot.lane.b32.xlu0 %v1601, 112
        %v1873 = vpop.permute.xlu0 %1872
        %1876 = vxpose.xlu0.b32.start [1/16] %v1871, 128
        %1877 = vxpose.xlu0.b32.cont [2/16] %v1873, 128
        %1878 = vxpose.xlu0.b32.cont [3/16] 0.0, 128
        %1879 = vxpose.xlu0.b32.cont [4/16] 0.0, 128
        %1880 = vxpose.xlu0.b32.cont [5/16] 0.0, 128
        %1881 = vxpose.xlu0.b32.cont [6/16] 0.0, 128
        %1882 = vxpose.xlu0.b32.cont [7/16] 0.0, 128
        %1883 = vxpose.xlu0.b32.cont [8/16] 0.0, 128
        %1884 = vxpose.xlu0.b32.cont [9/16] 0.0, 128
        %1885 = vxpose.xlu0.b32.cont [10/16] 0.0, 128
        %1886 = vxpose.xlu0.b32.cont [11/16] 0.0, 128
        %1887 = vxpose.xlu0.b32.cont [12/16] 0.0, 128
        %1888 = vxpose.xlu0.b32.cont [13/16] 0.0, 128
        %1889 = vxpose.xlu0.b32.cont [14/16] 0.0, 128
        %1890 = vxpose.xlu0.b32.cont [15/16] 0.0, 128
        %1891 = vxpose.xlu0.b32.end [16/16] 0.0, 128
        %v1892 = vpop.trf.xlu0
        %v1893 = vpop.trf.xlu0
        %v1894 = vpop.trf.xlu0
        %v1895 = vpop.trf.xlu0
        %v1896 = vpop.trf.xlu0
        %v1897 = vpop.trf.xlu0
        %v1898 = vpop.trf.xlu0
        %v1899 = vpop.trf.xlu0
        %v1900 = vpop.trf.xlu0
        %v1901 = vpop.trf.xlu0
        %v1902 = vpop.trf.xlu0
        %v1903 = vpop.trf.xlu0
        %v1904 = vpop.trf.xlu0
        %v1905 = vpop.trf.xlu0
        %v1906 = vpop.trf.xlu0
        %v1907 = vpop.trf.xlu0
        %1910 = vrot.lane.b32.xlu0 %v1892, 16
        %v1911 = vpop.permute.xlu0 %1910
        %1912 = vrot.lane.b32.xlu0 %v1893, 16
        %v1913 = vpop.permute.xlu0 %1912
        %v1916 = vsel %vm1730, %v1852, %v1911
        %v1917 = vsel %vm1730, %v1853, %v1913
        %1918 = vrot.lane.b32.xlu0 %v1596, 64
        %v1919 = vpop.permute.xlu0 %1918
        %1920 = vrot.lane.b32.xlu0 %v1601, 64
        %v1921 = vpop.permute.xlu0 %1920
        %1924 = vxpose.xlu0.b32.start [1/16] %v1919, 128
        %1925 = vxpose.xlu0.b32.cont [2/16] %v1921, 128
        %1926 = vxpose.xlu0.b32.cont [3/16] 0.0, 128
        %1927 = vxpose.xlu0.b32.cont [4/16] 0.0, 128
        %1928 = vxpose.xlu0.b32.cont [5/16] 0.0, 128
        %1929 = vxpose.xlu0.b32.cont [6/16] 0.0, 128
        %1930 = vxpose.xlu0.b32.cont [7/16] 0.0, 128
        %1931 = vxpose.xlu0.b32.cont [8/16] 0.0, 128
        %1932 = vxpose.xlu0.b32.cont [9/16] 0.0, 128
        %1933 = vxpose.xlu0.b32.cont [10/16] 0.0, 128
        %1934 = vxpose.xlu0.b32.cont [11/16] 0.0, 128
        %1935 = vxpose.xlu0.b32.cont [12/16] 0.0, 128
        %1936 = vxpose.xlu0.b32.cont [13/16] 0.0, 128
        %1937 = vxpose.xlu0.b32.cont [14/16] 0.0, 128
        %1938 = vxpose.xlu0.b32.cont [15/16] 0.0, 128
        %1939 = vxpose.xlu0.b32.end [16/16] 0.0, 128
        %v1940 = vpop.trf.xlu0
        %v1941 = vpop.trf.xlu0
        %v1942 = vpop.trf.xlu0
        %v1943 = vpop.trf.xlu0
        %v1944 = vpop.trf.xlu0
        %v1945 = vpop.trf.xlu0
        %v1946 = vpop.trf.xlu0
        %v1947 = vpop.trf.xlu0
        %v1948 = vpop.trf.xlu0
        %v1949 = vpop.trf.xlu0
        %v1950 = vpop.trf.xlu0
        %v1951 = vpop.trf.xlu0
        %v1952 = vpop.trf.xlu0
        %v1953 = vpop.trf.xlu0
        %v1954 = vpop.trf.xlu0
        %v1955 = vpop.trf.xlu0
        %1956 = vrot.lane.b32.xlu0 %v1596, 48
        %v1957 = vpop.permute.xlu0 %1956
        %1958 = vrot.lane.b32.xlu0 %v1601, 48
        %v1959 = vpop.permute.xlu0 %1958
        %1962 = vxpose.xlu0.b32.start [1/16] %v1957, 128
        %1963 = vxpose.xlu0.b32.cont [2/16] %v1959, 128
        %1964 = vxpose.xlu0.b32.cont [3/16] 0.0, 128
        %1965 = vxpose.xlu0.b32.cont [4/16] 0.0, 128
        %1966 = vxpose.xlu0.b32.cont [5/16] 0.0, 128
        %1967 = vxpose.xlu0.b32.cont [6/16] 0.0, 128
        %1968 = vxpose.xlu0.b32.cont [7/16] 0.0, 128
        %1969 = vxpose.xlu0.b32.cont [8/16] 0.0, 128
        %1970 = vxpose.xlu0.b32.cont [9/16] 0.0, 128
        %1971 = vxpose.xlu0.b32.cont [10/16] 0.0, 128
        %1972 = vxpose.xlu0.b32.cont [11/16] 0.0, 128
        %1973 = vxpose.xlu0.b32.cont [12/16] 0.0, 128
        %1974 = vxpose.xlu0.b32.cont [13/16] 0.0, 128
        %1975 = vxpose.xlu0.b32.cont [14/16] 0.0, 128
        %1976 = vxpose.xlu0.b32.cont [15/16] 0.0, 128
        %1977 = vxpose.xlu0.b32.end [16/16] 0.0, 128
        %v1978 = vpop.trf.xlu0
        %v1979 = vpop.trf.xlu0
        %v1980 = vpop.trf.xlu0
        %v1981 = vpop.trf.xlu0
        %v1982 = vpop.trf.xlu0
        %v1983 = vpop.trf.xlu0
        %v1984 = vpop.trf.xlu0
        %v1985 = vpop.trf.xlu0
        %v1986 = vpop.trf.xlu0
        %v1987 = vpop.trf.xlu0
        %v1988 = vpop.trf.xlu0
        %v1989 = vpop.trf.xlu0
        %v1990 = vpop.trf.xlu0
        %v1991 = vpop.trf.xlu0
        %v1992 = vpop.trf.xlu0
        %v1993 = vpop.trf.xlu0
        %1996 = vrot.lane.b32.xlu0 %v1978, 16
        %v1997 = vpop.permute.xlu0 %1996
        %1998 = vrot.lane.b32.xlu0 %v1979, 16
        %v1999 = vpop.permute.xlu0 %1998
        %v2002 = vsel %vm1730, %v1940, %v1997
        %v2003 = vsel %vm1730, %v1941, %v1999
        %v2004 = vmul.f32 %v1916, %v1916
        %v2005 = vmul.f32 %v1917, %v1917
        %v2006 = vsel %vm1614, %v2004, 0.0
        %2007 = vadd.xlane.f32.xlu0 %v2006
        %v2008 = vpop.xlane.xlu0 %2007
        %v2009 = vsel %vm1614, %v2005, 0.0
        %2010 = vadd.xlane.f32.xlu0 %v2009
        %v2011 = vpop.xlane.xlu0 %2010
        %v2012 = vmax.f32 %v2008, 1e-24
        %v2013 = vmax.f32 %v2011, 1e-24
        %v2014 = vrsqrt.pop %v2012
        %v2015 = vrsqrt.pop %v2013
        %v2016 = vmul.f32 %v1916, %v2014
        %v2017 = vmul.f32 %v1917, %v2015
        %v2018 = vmul.f32 %v2002, %v2002
        %v2019 = vmul.f32 %v2003, %v2003
        %v2020 = vsel %vm1614, %v2018, 0.0
        %2021 = vadd.xlane.f32.xlu0 %v2020
        %v2022 = vpop.xlane.xlu0 %2021
        %v2023 = vsel %vm1614, %v2019, 0.0
        %2024 = vadd.xlane.f32.xlu0 %v2023
        %v2025 = vpop.xlane.xlu0 %2024
        %v2026 = vmax.f32 %v2022, 1e-24
        %v2027 = vmax.f32 %v2025, 1e-24
        %v2028 = vrsqrt.pop %v2026
        %v2029 = vrsqrt.pop %v2027
        %v2030 = vmul.f32 %v2002, %v2028
        %v2031 = vmul.f32 %v2003, %v2029
        %v2033 = vsel %vm1614, %v2016, 0
        %v2036 = vsel %vm1614, %v2017, 0
        %v2039 = vsel %vm1614, %v2030, 0
        %v2042 = vsel %vm1614, %v2031, 0
        %2044 = vmatprep.subr.mxu0 0.0
        %2045 = vmatpush1.xpose.msra.mxu0 %v2039
        %2046 = vmatprep.subr.mxu0 0.0
        %2047 = vmatpush1.xpose.msra.mxu0 %v2042
        %2048 = vmatprep.subr.mxu0 0.0
        %2049 = vmatpush1.xpose.msra.mxu0 0.0
        %2050 = vmatprep.subr.mxu0 0.0
        %2051 = vmatpush1.xpose.msra.mxu0 0.0
        %2052 = vmatprep.subr.mxu0 0.0
        %2053 = vmatpush1.xpose.msra.mxu0 0.0
        %2054 = vmatprep.subr.mxu0 0.0
        %2055 = vmatpush1.xpose.msra.mxu0 0.0
        %2056 = vmatprep.subr.mxu0 0.0
        %2057 = vmatpush1.xpose.msra.mxu0 0.0
        %2058 = vmatprep.subr.mxu0 0.0
        %2059 = vmatpush1.xpose.msra.mxu0 0.0
        %2060 = vmatprep.subr.mxu0 0.0
        %2061 = vmatpush1.xpose.msra.mxu0 0.0
        %2062 = vmatprep.subr.mxu0 0.0
        %2063 = vmatpush1.xpose.msra.mxu0 0.0
        %2064 = vmatprep.subr.mxu0 0.0
        %2065 = vmatpush1.xpose.msra.mxu0 0.0
        %2066 = vmatprep.subr.mxu0 0.0
        %2067 = vmatpush1.xpose.msra.mxu0 0.0
        %2068 = vmatprep.subr.mxu0 0.0
        %2069 = vmatpush1.xpose.msra.mxu0 0.0
        %2070 = vmatprep.subr.mxu0 0.0
        %2071 = vmatpush1.xpose.msra.mxu0 0.0
        %2072 = vmatprep.subr.mxu0 0.0
        %2073 = vmatpush1.xpose.msra.mxu0 0.0
        %2074 = vmatprep.subr.mxu0 0.0
        %2075 = vmatpush1.xpose.msra.mxu0 0.0
        %2076 = vmatprep.subr.mxu0 0.0
        %2077 = vmatpush1.xpose.msra.mxu0 0.0
        %2078 = vmatprep.subr.mxu0 0.0
        %2079 = vmatpush1.xpose.msra.mxu0 0.0
        %2080 = vmatprep.subr.mxu0 0.0
        %2081 = vmatpush1.xpose.msra.mxu0 0.0
        %2082 = vmatprep.subr.mxu0 0.0
        %2083 = vmatpush1.xpose.msra.mxu0 0.0
        %2084 = vmatprep.subr.mxu0 0.0
        %2085 = vmatpush1.xpose.msra.mxu0 0.0
        %2086 = vmatprep.subr.mxu0 0.0
        %2087 = vmatpush1.xpose.msra.mxu0 0.0
        %2088 = vmatprep.subr.mxu0 0.0
        %2089 = vmatpush1.xpose.msra.mxu0 0.0
        %2090 = vmatprep.subr.mxu0 0.0
        %2091 = vmatpush1.xpose.msra.mxu0 0.0
        %2092 = vmatprep.subr.mxu0 0.0
        %2093 = vmatpush1.xpose.msra.mxu0 0.0
        %2094 = vmatprep.subr.mxu0 0.0
        %2095 = vmatpush1.xpose.msra.mxu0 0.0
        %2096 = vmatprep.subr.mxu0 0.0
        %2097 = vmatpush1.xpose.msra.mxu0 0.0
        %2098 = vmatprep.subr.mxu0 0.0
        %2099 = vmatpush1.xpose.msra.mxu0 0.0
        %2100 = vmatprep.subr.mxu0 0.0
        %2101 = vmatpush1.xpose.msra.mxu0 0.0
        %2102 = vmatprep.subr.mxu0 0.0
        %2103 = vmatpush1.xpose.msra.mxu0 0.0
        %2104 = vmatprep.subr.mxu0 0.0
        %2105 = vmatpush1.xpose.msra.mxu0 0.0
        %2106 = vmatprep.subr.mxu0 0.0
        %2107 = vmatpush1.xpose.msra.mxu0 0.0
        %2108 = vmatprep.mubr.f32.mxu0 0.0
        %2109 = vmatmul.mubr.f32.gmra.mrb[0].mxu0 %v2033
        %v2110 = vpop.f32.mrb[0].mxu0
        %v2111 = vadd.f32 0.0, %v2110
        %v2112 = vpop.f32.mrb[0].mxu0
        %2113 = vmatprep.mubr.f32.mxu0 0.0
        %2114 = vmatmul.mubr.f32.gmra.mrb[0].mxu0 %v2036
        %v2115 = vpop.f32.mrb[0].mxu0
        %v2116 = vadd.f32 0.0, %v2115
        %v2117 = vpop.f32.mrb[0].mxu0
        %2118 = vdwg.mxu0
        %v2119 = vsel %vm1730, %v2111, -inf
        %2120 = vmax.xlane.f32.xlu0 %v2119
        %v2121 = vpop.xlane.xlu0 %2120
        %v2122 = vsel %vm1730, %v2116, -inf
        %2123 = vmax.xlane.f32.xlu0 %v2122
        %v2124 = vpop.xlane.xlu0 %2123
        %v2125 = vsub.f32 %v2111, %v2121
        %v2126 = vsub.f32 %v2116, %v2124
        %v2127 = vmul.f32 %v2125, 1.442695
        %v2128 = vpow.pop %v2127
        %v2129 = vmul.f32 %v2126, 1.442695
        %v2130 = vpow.pop %v2129
        %v2131 = vsel %vm1730, %v2128, 0.0
        %2132 = vadd.xlane.f32.xlu0 %v2131
        %v2133 = vpop.xlane.xlu0 %2132
        %v2134 = vsel %vm1730, %v2130, 0.0
        %2135 = vadd.xlane.f32.xlu0 %v2134
        %v2136 = vpop.xlane.xlu0 %2135
        %v2137 = vrcp.pop %v2133
        %v2138 = vrcp.pop %v2136
        %v2139 = vmul.f32 %v2128, %v2137
        %v2140 = vmul.f32 %v2130, %v2138
        %v2142 = vsel %vm1730, %v2139, 0
        %v2145 = vsel %vm1730, %v2140, 0
        %2147 = vmatprep.subr.mxu0 0.0
        %2148 = vmatpush1.msra.mxu0 %v2002
        %2149 = vmatprep.subr.mxu0 0.0
        %2150 = vmatpush1.msra.mxu0 %v2003
        %2151 = vmatprep.subr.mxu0 0.0
        %2152 = vmatpush1.msra.mxu0 0.0
        %2153 = vmatprep.subr.mxu0 0.0
        %2154 = vmatpush1.msra.mxu0 0.0
        %2155 = vmatprep.subr.mxu0 0.0
        %2156 = vmatpush1.msra.mxu0 0.0
        %2157 = vmatprep.subr.mxu0 0.0
        %2158 = vmatpush1.msra.mxu0 0.0
        %2159 = vmatprep.subr.mxu0 0.0
        %2160 = vmatpush1.msra.mxu0 0.0
        %2161 = vmatprep.subr.mxu0 0.0
        %2162 = vmatpush1.msra.mxu0 0.0
        %2163 = vmatprep.subr.mxu0 0.0
        %2164 = vmatpush1.msra.mxu0 0.0
        %2165 = vmatprep.subr.mxu0 0.0
        %2166 = vmatpush1.msra.mxu0 0.0
        %2167 = vmatprep.subr.mxu0 0.0
        %2168 = vmatpush1.msra.mxu0 0.0
        %2169 = vmatprep.subr.mxu0 0.0
        %2170 = vmatpush1.msra.mxu0 0.0
        %2171 = vmatprep.subr.mxu0 0.0
        %2172 = vmatpush1.msra.mxu0 0.0
        %2173 = vmatprep.subr.mxu0 0.0
        %2174 = vmatpush1.msra.mxu0 0.0
        %2175 = vmatprep.subr.mxu0 0.0
        %2176 = vmatpush1.msra.mxu0 0.0
        %2177 = vmatprep.subr.mxu0 0.0
        %2178 = vmatpush1.msra.mxu0 0.0
        %2179 = vmatprep.subr.mxu0 0.0
        %2180 = vmatpush1.msra.mxu0 0.0
        %2181 = vmatprep.subr.mxu0 0.0
        %2182 = vmatpush1.msra.mxu0 0.0
        %2183 = vmatprep.subr.mxu0 0.0
        %2184 = vmatpush1.msra.mxu0 0.0
        %2185 = vmatprep.subr.mxu0 0.0
        %2186 = vmatpush1.msra.mxu0 0.0
        %2187 = vmatprep.subr.mxu0 0.0
        %2188 = vmatpush1.msra.mxu0 0.0
        %2189 = vmatprep.subr.mxu0 0.0
        %2190 = vmatpush1.msra.mxu0 0.0
        %2191 = vmatprep.subr.mxu0 0.0
        %2192 = vmatpush1.msra.mxu0 0.0
        %2193 = vmatprep.subr.mxu0 0.0
        %2194 = vmatpush1.msra.mxu0 0.0
        %2195 = vmatprep.subr.mxu0 0.0
        %2196 = vmatpush1.msra.mxu0 0.0
        %2197 = vmatprep.subr.mxu0 0.0
        %2198 = vmatpush1.msra.mxu0 0.0
        %2199 = vmatprep.subr.mxu0 0.0
        %2200 = vmatpush1.msra.mxu0 0.0
        %2201 = vmatprep.subr.mxu0 0.0
        %2202 = vmatpush1.msra.mxu0 0.0
        %2203 = vmatprep.subr.mxu0 0.0
        %2204 = vmatpush1.msra.mxu0 0.0
        %2205 = vmatprep.subr.mxu0 0.0
        %2206 = vmatpush1.msra.mxu0 0.0
        %2207 = vmatprep.subr.mxu0 0.0
        %2208 = vmatpush1.msra.mxu0 0.0
        %2209 = vmatprep.subr.mxu0 0.0
        %2210 = vmatpush1.msra.mxu0 0.0
        %2211 = vmatprep.mubr.f32.mxu0 0.0
        %2212 = vmatmul.mubr.f32.gmra.mrb[0].mxu0 %v2142
        %v2213 = vpop.f32.mrb[0].mxu0
        %v2214 = vadd.f32 %v2016, %v2213
        %v2215 = vpop.f32.mrb[0].mxu0
        %2216 = vmatprep.mubr.f32.mxu0 0.0
        %2217 = vmatmul.mubr.f32.gmra.mrb[0].mxu0 %v2145
        %v2218 = vpop.f32.mrb[0].mxu0
        %v2219 = vadd.f32 %v2017, %v2218
        %v2220 = vpop.f32.mrb[0].mxu0
        %2221 = vdwg.mxu0
        %2222 = vxpose.xlu0.b32.start [1/16] %v2214, 128
        %2223 = vxpose.xlu0.b32.cont [2/16] %v2219, 128
        %2224 = vxpose.xlu0.b32.cont [3/16] 0.0, 128
        %2225 = vxpose.xlu0.b32.cont [4/16] 0.0, 128
        %2226 = vxpose.xlu0.b32.cont [5/16] 0.0, 128
        %2227 = vxpose.xlu0.b32.cont [6/16] 0.0, 128
        %2228 = vxpose.xlu0.b32.cont [7/16] 0.0, 128
        %2229 = vxpose.xlu0.b32.cont [8/16] 0.0, 128
        %2230 = vxpose.xlu0.b32.cont [9/16] 0.0, 128
        %2231 = vxpose.xlu0.b32.cont [10/16] 0.0, 128
        %2232 = vxpose.xlu0.b32.cont [11/16] 0.0, 128
        %2233 = vxpose.xlu0.b32.cont [12/16] 0.0, 128
        %2234 = vxpose.xlu0.b32.cont [13/16] 0.0, 128
        %2235 = vxpose.xlu0.b32.cont [14/16] 0.0, 128
        %2236 = vxpose.xlu0.b32.cont [15/16] 0.0, 128
        %2237 = vxpose.xlu0.b32.end [16/16] 0.0, 128
        %v2238 = vpop.trf.xlu0
        %v2239 = vpop.trf.xlu0
        %v2240 = vpop.trf.xlu0
        %v2241 = vpop.trf.xlu0
        %v2242 = vpop.trf.xlu0
        %v2243 = vpop.trf.xlu0
        %v2244 = vpop.trf.xlu0
        %v2245 = vpop.trf.xlu0
        %v2246 = vpop.trf.xlu0
        %v2247 = vpop.trf.xlu0
        %v2248 = vpop.trf.xlu0
        %v2249 = vpop.trf.xlu0
        %v2250 = vpop.trf.xlu0
        %v2251 = vpop.trf.xlu0
        %v2252 = vpop.trf.xlu0
        %v2253 = vpop.trf.xlu0
        %2256 = vrot.lane.b32.xlu0 %v2214, 112
        %v2257 = vpop.permute.xlu0 %2256
        %2258 = vrot.lane.b32.xlu0 %v2219, 112
        %v2259 = vpop.permute.xlu0 %2258
        %2262 = vxpose.xlu0.b32.start [1/16] %v2257, 128
        %2263 = vxpose.xlu0.b32.cont [2/16] %v2259, 128
        %2264 = vxpose.xlu0.b32.cont [3/16] 0.0, 128
        %2265 = vxpose.xlu0.b32.cont [4/16] 0.0, 128
        %2266 = vxpose.xlu0.b32.cont [5/16] 0.0, 128
        %2267 = vxpose.xlu0.b32.cont [6/16] 0.0, 128
        %2268 = vxpose.xlu0.b32.cont [7/16] 0.0, 128
        %2269 = vxpose.xlu0.b32.cont [8/16] 0.0, 128
        %2270 = vxpose.xlu0.b32.cont [9/16] 0.0, 128
        %2271 = vxpose.xlu0.b32.cont [10/16] 0.0, 128
        %2272 = vxpose.xlu0.b32.cont [11/16] 0.0, 128
        %2273 = vxpose.xlu0.b32.cont [12/16] 0.0, 128
        %2274 = vxpose.xlu0.b32.cont [13/16] 0.0, 128
        %2275 = vxpose.xlu0.b32.cont [14/16] 0.0, 128
        %2276 = vxpose.xlu0.b32.cont [15/16] 0.0, 128
        %2277 = vxpose.xlu0.b32.end [16/16] 0.0, 128
        %v2278 = vpop.trf.xlu0
        %v2279 = vpop.trf.xlu0
        %v2280 = vpop.trf.xlu0
        %v2281 = vpop.trf.xlu0
        %v2282 = vpop.trf.xlu0
        %v2283 = vpop.trf.xlu0
        %v2284 = vpop.trf.xlu0
        %v2285 = vpop.trf.xlu0
        %v2286 = vpop.trf.xlu0
        %v2287 = vpop.trf.xlu0
        %v2288 = vpop.trf.xlu0
        %v2289 = vpop.trf.xlu0
        %v2290 = vpop.trf.xlu0
        %v2291 = vpop.trf.xlu0
        %v2292 = vpop.trf.xlu0
        %v2293 = vpop.trf.xlu0
        %2296 = vrot.lane.b32.xlu0 %v2278, 16
        %v2297 = vpop.permute.xlu0 %2296
        %2298 = vrot.lane.b32.xlu0 %v2279, 16
        %v2299 = vpop.permute.xlu0 %2298
        %v2302 = vsel %vm1730, %v2238, %v2297
        %v2303 = vsel %vm1730, %v2239, %v2299
        %2304 = vrot.lane.b32.xlu0 %v1604, 32
        %v2305 = vpop.permute.xlu0 %2304
        %2306 = vrot.lane.b32.xlu0 %v1605, 32
        %v2307 = vpop.permute.xlu0 %2306
        %v2310 = vsel %vm1614, %v2305, 0.0
        %2311 = vadd.xlane.f32.xlu0 %v2310
        %v2312 = vpop.xlane.xlu0 %2311
        %v2313 = vsel %vm1614, %v2307, 0.0
        %2314 = vadd.xlane.f32.xlu0 %v2313
        %v2315 = vpop.xlane.xlu0 %2314
        %v2316 = vmax.f32 %v2312, 1e-24
        %v2317 = vmax.f32 %v2315, 1e-24
        %v2318 = vrsqrt.pop %v2316
        %v2319 = vrsqrt.pop %v2317
        %v2320 = vmul.f32 %v1596, %v2318
        %v2321 = vmul.f32 %v1601, %v2319
        %2322 = vrot.lane.b32.xlu0 %v1604, 96
        %v2323 = vpop.permute.xlu0 %2322
        %2324 = vrot.lane.b32.xlu0 %v1605, 96
        %v2325 = vpop.permute.xlu0 %2324
        %v2328 = vsel %vm1614, %v2323, 0.0
        %2329 = vadd.xlane.f32.xlu0 %v2328
        %v2330 = vpop.xlane.xlu0 %2329
        %v2331 = vsel %vm1614, %v2325, 0.0
        %2332 = vadd.xlane.f32.xlu0 %v2331
        %v2333 = vpop.xlane.xlu0 %2332
        %v2334 = vmax.f32 %v2330, 1e-24
        %v2335 = vmax.f32 %v2333, 1e-24
        %v2336 = vrsqrt.pop %v2334
        %v2337 = vrsqrt.pop %v2335
        %v2338 = vmul.f32 %v1596, %v2336
        %v2339 = vmul.f32 %v1601, %v2337
        %2342 = vrot.lane.b32.xlu0 %v2320, 32
        %v2343 = vpop.permute.xlu0 %2342
        %2344 = vrot.lane.b32.xlu0 %v2321, 32
        %v2345 = vpop.permute.xlu0 %2344
        %2348 = vrot.lane.b32.xlu0 %v2338, 96
        %v2349 = vpop.permute.xlu0 %2348
        %2350 = vrot.lane.b32.xlu0 %v2339, 96
        %v2351 = vpop.permute.xlu0 %2350
        %v2352 = vsel %vm1614, %v2343, 0
        %v2354 = vsel %vm1614, %v2345, 0
        %v2356 = vsel %vm1614, %v2349, 0
        %v2358 = vsel %vm1614, %v2351, 0
        %2360 = vmatprep.subr.mxu0 0.0
        %2361 = vmatpush1.xpose.msra.mxu0 %v2356
        %2362 = vmatprep.subr.mxu0 0.0
        %2363 = vmatpush1.xpose.msra.mxu0 %v2358
        %2364 = vmatprep.subr.mxu0 0.0
        %2365 = vmatpush1.xpose.msra.mxu0 0.0
        %2366 = vmatprep.subr.mxu0 0.0
        %2367 = vmatpush1.xpose.msra.mxu0 0.0
        %2368 = vmatprep.subr.mxu0 0.0
        %2369 = vmatpush1.xpose.msra.mxu0 0.0
        %2370 = vmatprep.subr.mxu0 0.0
        %2371 = vmatpush1.xpose.msra.mxu0 0.0
        %2372 = vmatprep.subr.mxu0 0.0
        %2373 = vmatpush1.xpose.msra.mxu0 0.0
        %2374 = vmatprep.subr.mxu0 0.0
        %2375 = vmatpush1.xpose.msra.mxu0 0.0
        %2376 = vmatprep.subr.mxu0 0.0
        %2377 = vmatpush1.xpose.msra.mxu0 0.0
        %2378 = vmatprep.subr.mxu0 0.0
        %2379 = vmatpush1.xpose.msra.mxu0 0.0
        %2380 = vmatprep.subr.mxu0 0.0
        %2381 = vmatpush1.xpose.msra.mxu0 0.0
        %2382 = vmatprep.subr.mxu0 0.0
        %2383 = vmatpush1.xpose.msra.mxu0 0.0
        %2384 = vmatprep.subr.mxu0 0.0
        %2385 = vmatpush1.xpose.msra.mxu0 0.0
        %2386 = vmatprep.subr.mxu0 0.0
        %2387 = vmatpush1.xpose.msra.mxu0 0.0
        %2388 = vmatprep.subr.mxu0 0.0
        %2389 = vmatpush1.xpose.msra.mxu0 0.0
        %2390 = vmatprep.subr.mxu0 0.0
        %2391 = vmatpush1.xpose.msra.mxu0 0.0
        %2392 = vmatprep.subr.mxu0 0.0
        %2393 = vmatpush1.xpose.msra.mxu0 0.0
        %2394 = vmatprep.subr.mxu0 0.0
        %2395 = vmatpush1.xpose.msra.mxu0 0.0
        %2396 = vmatprep.subr.mxu0 0.0
        %2397 = vmatpush1.xpose.msra.mxu0 0.0
        %2398 = vmatprep.subr.mxu0 0.0
        %2399 = vmatpush1.xpose.msra.mxu0 0.0
        %2400 = vmatprep.subr.mxu0 0.0
        %2401 = vmatpush1.xpose.msra.mxu0 0.0
        %2402 = vmatprep.subr.mxu0 0.0
        %2403 = vmatpush1.xpose.msra.mxu0 0.0
        %2404 = vmatprep.subr.mxu0 0.0
        %2405 = vmatpush1.xpose.msra.mxu0 0.0
        %2406 = vmatprep.subr.mxu0 0.0
        %2407 = vmatpush1.xpose.msra.mxu0 0.0
        %2408 = vmatprep.subr.mxu0 0.0
        %2409 = vmatpush1.xpose.msra.mxu0 0.0
        %2410 = vmatprep.subr.mxu0 0.0
        %2411 = vmatpush1.xpose.msra.mxu0 0.0
        %2412 = vmatprep.subr.mxu0 0.0
        %2413 = vmatpush1.xpose.msra.mxu0 0.0
        %2414 = vmatprep.subr.mxu0 0.0
        %2415 = vmatpush1.xpose.msra.mxu0 0.0
        %2416 = vmatprep.subr.mxu0 0.0
        %2417 = vmatpush1.xpose.msra.mxu0 0.0
        %2418 = vmatprep.subr.mxu0 0.0
        %2419 = vmatpush1.xpose.msra.mxu0 0.0
        %2420 = vmatprep.subr.mxu0 0.0
        %2421 = vmatpush1.xpose.msra.mxu0 0.0
        %2422 = vmatprep.subr.mxu0 0.0
        %2423 = vmatpush1.xpose.msra.mxu0 0.0
        %2424 = vmatprep.mubr.f32.mxu0 0.0
        %2425 = vmatmul.mubr.f32.gmra.mrb[0].mxu0 %v2352
        %v2426 = vpop.f32.mrb[0].mxu0
        %v2427 = vadd.f32 0.0, %v2426
        %v2428 = vpop.f32.mrb[0].mxu0
        %2429 = vmatprep.mubr.f32.mxu0 0.0
        %2430 = vmatmul.mubr.f32.gmra.mrb[0].mxu0 %v2354
        %v2431 = vpop.f32.mrb[0].mxu0
        %v2432 = vadd.f32 0.0, %v2431
        %v2433 = vpop.f32.mrb[0].mxu0
        %2434 = vdwg.mxu0
        %v2435 = vsel %vm1730, %v2427, -inf
        %2436 = vmax.xlane.f32.xlu0 %v2435
        %v2437 = vpop.xlane.xlu0 %2436
        %v2438 = vsel %vm1730, %v2432, -inf
        %2439 = vmax.xlane.f32.xlu0 %v2438
        %v2440 = vpop.xlane.xlu0 %2439
        %v2441 = vsub.f32 %v2427, %v2437
        %v2442 = vsub.f32 %v2432, %v2440
        %v2443 = vmul.f32 %v2441, 1.442695
        %v2444 = vpow.pop %v2443
        %v2445 = vmul.f32 %v2442, 1.442695
        %v2446 = vpow.pop %v2445
        %v2447 = vsel %vm1730, %v2444, 0.0
        %2448 = vadd.xlane.f32.xlu0 %v2447
        %v2449 = vpop.xlane.xlu0 %2448
        %v2450 = vsel %vm1730, %v2446, 0.0
        %2451 = vadd.xlane.f32.xlu0 %v2450
        %v2452 = vpop.xlane.xlu0 %2451
        %v2453 = vrcp.pop %v2449
        %v2454 = vrcp.pop %v2452
        %v2455 = vmul.f32 %v2444, %v2453
        %v2456 = vmul.f32 %v2446, %v2454
        %2457 = vrot.lane.b32.xlu0 %v1596, 96
        %v2458 = vpop.permute.xlu0 %2457
        %2459 = vrot.lane.b32.xlu0 %v1601, 96
        %v2460 = vpop.permute.xlu0 %2459
        %v2466 = vsel %vm1730, %v2455, 0
        %v2469 = vsel %vm1730, %v2456, 0
        %2471 = vmatprep.subr.mxu0 0.0
        %2472 = vmatpush1.msra.mxu0 %v2458
        %2473 = vmatprep.subr.mxu0 0.0
        %2474 = vmatpush1.msra.mxu0 %v2460
        %2475 = vmatprep.subr.mxu0 0.0
        %2476 = vmatpush1.msra.mxu0 0.0
        %2477 = vmatprep.subr.mxu0 0.0
        %2478 = vmatpush1.msra.mxu0 0.0
        %2479 = vmatprep.subr.mxu0 0.0
        %2480 = vmatpush1.msra.mxu0 0.0
        %2481 = vmatprep.subr.mxu0 0.0
        %2482 = vmatpush1.msra.mxu0 0.0
        %2483 = vmatprep.subr.mxu0 0.0
        %2484 = vmatpush1.msra.mxu0 0.0
        %2485 = vmatprep.subr.mxu0 0.0
        %2486 = vmatpush1.msra.mxu0 0.0
        %2487 = vmatprep.subr.mxu0 0.0
        %2488 = vmatpush1.msra.mxu0 0.0
        %2489 = vmatprep.subr.mxu0 0.0
        %2490 = vmatpush1.msra.mxu0 0.0
        %2491 = vmatprep.subr.mxu0 0.0
        %2492 = vmatpush1.msra.mxu0 0.0
        %2493 = vmatprep.subr.mxu0 0.0
        %2494 = vmatpush1.msra.mxu0 0.0
        %2495 = vmatprep.subr.mxu0 0.0
        %2496 = vmatpush1.msra.mxu0 0.0
        %2497 = vmatprep.subr.mxu0 0.0
        %2498 = vmatpush1.msra.mxu0 0.0
        %2499 = vmatprep.subr.mxu0 0.0
        %2500 = vmatpush1.msra.mxu0 0.0
        %2501 = vmatprep.subr.mxu0 0.0
        %2502 = vmatpush1.msra.mxu0 0.0
        %2503 = vmatprep.subr.mxu0 0.0
        %2504 = vmatpush1.msra.mxu0 0.0
        %2505 = vmatprep.subr.mxu0 0.0
        %2506 = vmatpush1.msra.mxu0 0.0
        %2507 = vmatprep.subr.mxu0 0.0
        %2508 = vmatpush1.msra.mxu0 0.0
        %2509 = vmatprep.subr.mxu0 0.0
        %2510 = vmatpush1.msra.mxu0 0.0
        %2511 = vmatprep.subr.mxu0 0.0
        %2512 = vmatpush1.msra.mxu0 0.0
        %2513 = vmatprep.subr.mxu0 0.0
        %2514 = vmatpush1.msra.mxu0 0.0
        %2515 = vmatprep.subr.mxu0 0.0
        %2516 = vmatpush1.msra.mxu0 0.0
        %2517 = vmatprep.subr.mxu0 0.0
        %2518 = vmatpush1.msra.mxu0 0.0
        %2519 = vmatprep.subr.mxu0 0.0
        %2520 = vmatpush1.msra.mxu0 0.0
        %2521 = vmatprep.subr.mxu0 0.0
        %2522 = vmatpush1.msra.mxu0 0.0
        %2523 = vmatprep.subr.mxu0 0.0
        %2524 = vmatpush1.msra.mxu0 0.0
        %2525 = vmatprep.subr.mxu0 0.0
        %2526 = vmatpush1.msra.mxu0 0.0
        %2527 = vmatprep.subr.mxu0 0.0
        %2528 = vmatpush1.msra.mxu0 0.0
        %2529 = vmatprep.subr.mxu0 0.0
        %2530 = vmatpush1.msra.mxu0 0.0
        %2531 = vmatprep.subr.mxu0 0.0
        %2532 = vmatpush1.msra.mxu0 0.0
        %2533 = vmatprep.subr.mxu0 0.0
        %2534 = vmatpush1.msra.mxu0 0.0
        %2535 = vmatprep.mubr.f32.mxu0 0.0
        %2536 = vmatmul.mubr.f32.gmra.mrb[0].mxu0 %v2466
        %v2537 = vpop.f32.mrb[0].mxu0
        %v2538 = vadd.f32 %v2343, %v2537
        %v2539 = vpop.f32.mrb[0].mxu0
        %2540 = vmatprep.mubr.f32.mxu0 0.0
        %2541 = vmatmul.mubr.f32.gmra.mrb[0].mxu0 %v2469
        %v2542 = vpop.f32.mrb[0].mxu0
        %v2543 = vadd.f32 %v2345, %v2542
        %v2544 = vpop.f32.mrb[0].mxu0
        %2545 = vdwg.mxu0
        %2546 = vxpose.xlu0.b32.start [1/16] %v2458, 128
        %2547 = vxpose.xlu0.b32.cont [2/16] %v2460, 128
        %2548 = vxpose.xlu0.b32.cont [3/16] 0.0, 128
        %2549 = vxpose.xlu0.b32.cont [4/16] 0.0, 128
        %2550 = vxpose.xlu0.b32.cont [5/16] 0.0, 128
        %2551 = vxpose.xlu0.b32.cont [6/16] 0.0, 128
        %2552 = vxpose.xlu0.b32.cont [7/16] 0.0, 128
        %2553 = vxpose.xlu0.b32.cont [8/16] 0.0, 128
        %2554 = vxpose.xlu0.b32.cont [9/16] 0.0, 128
        %2555 = vxpose.xlu0.b32.cont [10/16] 0.0, 128
        %2556 = vxpose.xlu0.b32.cont [11/16] 0.0, 128
        %2557 = vxpose.xlu0.b32.cont [12/16] 0.0, 128
        %2558 = vxpose.xlu0.b32.cont [13/16] 0.0, 128
        %2559 = vxpose.xlu0.b32.cont [14/16] 0.0, 128
        %2560 = vxpose.xlu0.b32.cont [15/16] 0.0, 128
        %2561 = vxpose.xlu0.b32.end [16/16] 0.0, 128
        %v2562 = vpop.trf.xlu0
        %v2563 = vpop.trf.xlu0
        %v2564 = vpop.trf.xlu0
        %v2565 = vpop.trf.xlu0
        %v2566 = vpop.trf.xlu0
        %v2567 = vpop.trf.xlu0
        %v2568 = vpop.trf.xlu0
        %v2569 = vpop.trf.xlu0
        %v2570 = vpop.trf.xlu0
        %v2571 = vpop.trf.xlu0
        %v2572 = vpop.trf.xlu0
        %v2573 = vpop.trf.xlu0
        %v2574 = vpop.trf.xlu0
        %v2575 = vpop.trf.xlu0
        %v2576 = vpop.trf.xlu0
        %v2577 = vpop.trf.xlu0
        %2578 = vrot.lane.b32.xlu0 %v1596, 80
        %v2579 = vpop.permute.xlu0 %2578
        %2580 = vrot.lane.b32.xlu0 %v1601, 80
        %v2581 = vpop.permute.xlu0 %2580
        %2584 = vxpose.xlu0.b32.start [1/16] %v2579, 128
        %2585 = vxpose.xlu0.b32.cont [2/16] %v2581, 128
        %2586 = vxpose.xlu0.b32.cont [3/16] 0.0, 128
        %2587 = vxpose.xlu0.b32.cont [4/16] 0.0, 128
        %2588 = vxpose.xlu0.b32.cont [5/16] 0.0, 128
        %2589 = vxpose.xlu0.b32.cont [6/16] 0.0, 128
        %2590 = vxpose.xlu0.b32.cont [7/16] 0.0, 128
        %2591 = vxpose.xlu0.b32.cont [8/16] 0.0, 128
        %2592 = vxpose.xlu0.b32.cont [9/16] 0.0, 128
        %2593 = vxpose.xlu0.b32.cont [10/16] 0.0, 128
        %2594 = vxpose.xlu0.b32.cont [11/16] 0.0, 128
        %2595 = vxpose.xlu0.b32.cont [12/16] 0.0, 128
        %2596 = vxpose.xlu0.b32.cont [13/16] 0.0, 128
        %2597 = vxpose.xlu0.b32.cont [14/16] 0.0, 128
        %2598 = vxpose.xlu0.b32.cont [15/16] 0.0, 128
        %2599 = vxpose.xlu0.b32.end [16/16] 0.0, 128
        %v2600 = vpop.trf.xlu0
        %v2601 = vpop.trf.xlu0
        %v2602 = vpop.trf.xlu0
        %v2603 = vpop.trf.xlu0
        %v2604 = vpop.trf.xlu0
        %v2605 = vpop.trf.xlu0
        %v2606 = vpop.trf.xlu0
        %v2607 = vpop.trf.xlu0
        %v2608 = vpop.trf.xlu0
        %v2609 = vpop.trf.xlu0
        %v2610 = vpop.trf.xlu0
        %v2611 = vpop.trf.xlu0
        %v2612 = vpop.trf.xlu0
        %v2613 = vpop.trf.xlu0
        %v2614 = vpop.trf.xlu0
        %v2615 = vpop.trf.xlu0
        %2618 = vrot.lane.b32.xlu0 %v2600, 16
        %v2619 = vpop.permute.xlu0 %2618
        %2620 = vrot.lane.b32.xlu0 %v2601, 16
        %v2621 = vpop.permute.xlu0 %2620
        %v2624 = vsel %vm1730, %v2562, %v2619
        %v2625 = vsel %vm1730, %v2563, %v2621
        %2626 = vrot.lane.b32.xlu0 %v1596, 32
        %v2627 = vpop.permute.xlu0 %2626
        %2628 = vrot.lane.b32.xlu0 %v1601, 32
        %v2629 = vpop.permute.xlu0 %2628
        %2632 = vxpose.xlu0.b32.start [1/16] %v2627, 128
        %2633 = vxpose.xlu0.b32.cont [2/16] %v2629, 128
        %2634 = vxpose.xlu0.b32.cont [3/16] 0.0, 128
        %2635 = vxpose.xlu0.b32.cont [4/16] 0.0, 128
        %2636 = vxpose.xlu0.b32.cont [5/16] 0.0, 128
        %2637 = vxpose.xlu0.b32.cont [6/16] 0.0, 128
        %2638 = vxpose.xlu0.b32.cont [7/16] 0.0, 128
        %2639 = vxpose.xlu0.b32.cont [8/16] 0.0, 128
        %2640 = vxpose.xlu0.b32.cont [9/16] 0.0, 128
        %2641 = vxpose.xlu0.b32.cont [10/16] 0.0, 128
        %2642 = vxpose.xlu0.b32.cont [11/16] 0.0, 128
        %2643 = vxpose.xlu0.b32.cont [12/16] 0.0, 128
        %2644 = vxpose.xlu0.b32.cont [13/16] 0.0, 128
        %2645 = vxpose.xlu0.b32.cont [14/16] 0.0, 128
        %2646 = vxpose.xlu0.b32.cont [15/16] 0.0, 128
        %2647 = vxpose.xlu0.b32.end [16/16] 0.0, 128
        %v2648 = vpop.trf.xlu0
        %v2649 = vpop.trf.xlu0
        %v2650 = vpop.trf.xlu0
        %v2651 = vpop.trf.xlu0
        %v2652 = vpop.trf.xlu0
        %v2653 = vpop.trf.xlu0
        %v2654 = vpop.trf.xlu0
        %v2655 = vpop.trf.xlu0
        %v2656 = vpop.trf.xlu0
        %v2657 = vpop.trf.xlu0
        %v2658 = vpop.trf.xlu0
        %v2659 = vpop.trf.xlu0
        %v2660 = vpop.trf.xlu0
        %v2661 = vpop.trf.xlu0
        %v2662 = vpop.trf.xlu0
        %v2663 = vpop.trf.xlu0
        %2664 = vrot.lane.b32.xlu0 %v1596, 16
        %v2665 = vpop.permute.xlu0 %2664
        %2666 = vrot.lane.b32.xlu0 %v1601, 16
        %v2667 = vpop.permute.xlu0 %2666
        %2670 = vxpose.xlu0.b32.start [1/16] %v2665, 128
        %2671 = vxpose.xlu0.b32.cont [2/16] %v2667, 128
        %2672 = vxpose.xlu0.b32.cont [3/16] 0.0, 128
        %2673 = vxpose.xlu0.b32.cont [4/16] 0.0, 128
        %2674 = vxpose.xlu0.b32.cont [5/16] 0.0, 128
        %2675 = vxpose.xlu0.b32.cont [6/16] 0.0, 128
        %2676 = vxpose.xlu0.b32.cont [7/16] 0.0, 128
        %2677 = vxpose.xlu0.b32.cont [8/16] 0.0, 128
        %2678 = vxpose.xlu0.b32.cont [9/16] 0.0, 128
        %2679 = vxpose.xlu0.b32.cont [10/16] 0.0, 128
        %2680 = vxpose.xlu0.b32.cont [11/16] 0.0, 128
        %2681 = vxpose.xlu0.b32.cont [12/16] 0.0, 128
        %2682 = vxpose.xlu0.b32.cont [13/16] 0.0, 128
        %2683 = vxpose.xlu0.b32.cont [14/16] 0.0, 128
        %2684 = vxpose.xlu0.b32.cont [15/16] 0.0, 128
        %2685 = vxpose.xlu0.b32.end [16/16] 0.0, 128
        %v2686 = vpop.trf.xlu0
        %v2687 = vpop.trf.xlu0
        %v2688 = vpop.trf.xlu0
        %v2689 = vpop.trf.xlu0
        %v2690 = vpop.trf.xlu0
        %v2691 = vpop.trf.xlu0
        %v2692 = vpop.trf.xlu0
        %v2693 = vpop.trf.xlu0
        %v2694 = vpop.trf.xlu0
        %v2695 = vpop.trf.xlu0
        %v2696 = vpop.trf.xlu0
        %v2697 = vpop.trf.xlu0
        %v2698 = vpop.trf.xlu0
        %v2699 = vpop.trf.xlu0
        %v2700 = vpop.trf.xlu0
        %v2701 = vpop.trf.xlu0
        %2704 = vrot.lane.b32.xlu0 %v2686, 16
        %v2705 = vpop.permute.xlu0 %2704
        %2706 = vrot.lane.b32.xlu0 %v2687, 16
        %v2707 = vpop.permute.xlu0 %2706
        %v2710 = vsel %vm1730, %v2648, %v2705
        %v2711 = vsel %vm1730, %v2649, %v2707
        %v2712 = vmul.f32 %v2624, %v2624
        %v2713 = vmul.f32 %v2625, %v2625
        %v2714 = vsel %vm1614, %v2712, 0.0
        %2715 = vadd.xlane.f32.xlu0 %v2714
        %v2716 = vpop.xlane.xlu0 %2715
        %v2717 = vsel %vm1614, %v2713, 0.0
        %2718 = vadd.xlane.f32.xlu0 %v2717
        %v2719 = vpop.xlane.xlu0 %2718
        %v2720 = vmax.f32 %v2716, 1e-24
        %v2721 = vmax.f32 %v2719, 1e-24
        %v2722 = vrsqrt.pop %v2720
        %v2723 = vrsqrt.pop %v2721
        %v2724 = vmul.f32 %v2624, %v2722
        %v2725 = vmul.f32 %v2625, %v2723
        %v2726 = vmul.f32 %v2710, %v2710
        %v2727 = vmul.f32 %v2711, %v2711
        %v2728 = vsel %vm1614, %v2726, 0.0
        %2729 = vadd.xlane.f32.xlu0 %v2728
        %v2730 = vpop.xlane.xlu0 %2729
        %v2731 = vsel %vm1614, %v2727, 0.0
        %2732 = vadd.xlane.f32.xlu0 %v2731
        %v2733 = vpop.xlane.xlu0 %2732
        %v2734 = vmax.f32 %v2730, 1e-24
        %v2735 = vmax.f32 %v2733, 1e-24
        %v2736 = vrsqrt.pop %v2734
        %v2737 = vrsqrt.pop %v2735
        %v2738 = vmul.f32 %v2710, %v2736
        %v2739 = vmul.f32 %v2711, %v2737
        %v2741 = vsel %vm1614, %v2724, 0
        %v2744 = vsel %vm1614, %v2725, 0
        %v2747 = vsel %vm1614, %v2738, 0
        %v2750 = vsel %vm1614, %v2739, 0
        %2752 = vmatprep.subr.mxu0 0.0
        %2753 = vmatpush1.xpose.msra.mxu0 %v2747
        %2754 = vmatprep.subr.mxu0 0.0
        %2755 = vmatpush1.xpose.msra.mxu0 %v2750
        %2756 = vmatprep.subr.mxu0 0.0
        %2757 = vmatpush1.xpose.msra.mxu0 0.0
        %2758 = vmatprep.subr.mxu0 0.0
        %2759 = vmatpush1.xpose.msra.mxu0 0.0
        %2760 = vmatprep.subr.mxu0 0.0
        %2761 = vmatpush1.xpose.msra.mxu0 0.0
        %2762 = vmatprep.subr.mxu0 0.0
        %2763 = vmatpush1.xpose.msra.mxu0 0.0
        %2764 = vmatprep.subr.mxu0 0.0
        %2765 = vmatpush1.xpose.msra.mxu0 0.0
        %2766 = vmatprep.subr.mxu0 0.0
        %2767 = vmatpush1.xpose.msra.mxu0 0.0
        %2768 = vmatprep.subr.mxu0 0.0
        %2769 = vmatpush1.xpose.msra.mxu0 0.0
        %2770 = vmatprep.subr.mxu0 0.0
        %2771 = vmatpush1.xpose.msra.mxu0 0.0
        %2772 = vmatprep.subr.mxu0 0.0
        %2773 = vmatpush1.xpose.msra.mxu0 0.0
        %2774 = vmatprep.subr.mxu0 0.0
        %2775 = vmatpush1.xpose.msra.mxu0 0.0
        %2776 = vmatprep.subr.mxu0 0.0
        %2777 = vmatpush1.xpose.msra.mxu0 0.0
        %2778 = vmatprep.subr.mxu0 0.0
        %2779 = vmatpush1.xpose.msra.mxu0 0.0
        %2780 = vmatprep.subr.mxu0 0.0
        %2781 = vmatpush1.xpose.msra.mxu0 0.0
        %2782 = vmatprep.subr.mxu0 0.0
        %2783 = vmatpush1.xpose.msra.mxu0 0.0
        %2784 = vmatprep.subr.mxu0 0.0
        %2785 = vmatpush1.xpose.msra.mxu0 0.0
        %2786 = vmatprep.subr.mxu0 0.0
        %2787 = vmatpush1.xpose.msra.mxu0 0.0
        %2788 = vmatprep.subr.mxu0 0.0
        %2789 = vmatpush1.xpose.msra.mxu0 0.0
        %2790 = vmatprep.subr.mxu0 0.0
        %2791 = vmatpush1.xpose.msra.mxu0 0.0
        %2792 = vmatprep.subr.mxu0 0.0
        %2793 = vmatpush1.xpose.msra.mxu0 0.0
        %2794 = vmatprep.subr.mxu0 0.0
        %2795 = vmatpush1.xpose.msra.mxu0 0.0
        %2796 = vmatprep.subr.mxu0 0.0
        %2797 = vmatpush1.xpose.msra.mxu0 0.0
        %2798 = vmatprep.subr.mxu0 0.0
        %2799 = vmatpush1.xpose.msra.mxu0 0.0
        %2800 = vmatprep.subr.mxu0 0.0
        %2801 = vmatpush1.xpose.msra.mxu0 0.0
        %2802 = vmatprep.subr.mxu0 0.0
        %2803 = vmatpush1.xpose.msra.mxu0 0.0
        %2804 = vmatprep.subr.mxu0 0.0
        %2805 = vmatpush1.xpose.msra.mxu0 0.0
        %2806 = vmatprep.subr.mxu0 0.0
        %2807 = vmatpush1.xpose.msra.mxu0 0.0
        %2808 = vmatprep.subr.mxu0 0.0
        %2809 = vmatpush1.xpose.msra.mxu0 0.0
        %2810 = vmatprep.subr.mxu0 0.0
        %2811 = vmatpush1.xpose.msra.mxu0 0.0
        %2812 = vmatprep.subr.mxu0 0.0
        %2813 = vmatpush1.xpose.msra.mxu0 0.0
        %2814 = vmatprep.subr.mxu0 0.0
        %2815 = vmatpush1.xpose.msra.mxu0 0.0
        %2816 = vmatprep.mubr.f32.mxu0 0.0
        %2817 = vmatmul.mubr.f32.gmra.mrb[0].mxu0 %v2741
        %v2818 = vpop.f32.mrb[0].mxu0
        %v2819 = vadd.f32 0.0, %v2818
        %v2820 = vpop.f32.mrb[0].mxu0
        %2821 = vmatprep.mubr.f32.mxu0 0.0
        %2822 = vmatmul.mubr.f32.gmra.mrb[0].mxu0 %v2744
        %v2823 = vpop.f32.mrb[0].mxu0
        %v2824 = vadd.f32 0.0, %v2823
        %v2825 = vpop.f32.mrb[0].mxu0
        %2826 = vdwg.mxu0
        %v2827 = vsel %vm1730, %v2819, -inf
        %2828 = vmax.xlane.f32.xlu0 %v2827
        %v2829 = vpop.xlane.xlu0 %2828
        %v2830 = vsel %vm1730, %v2824, -inf
        %2831 = vmax.xlane.f32.xlu0 %v2830
        %v2832 = vpop.xlane.xlu0 %2831
        %v2833 = vsub.f32 %v2819, %v2829
        %v2834 = vsub.f32 %v2824, %v2832
        %v2835 = vmul.f32 %v2833, 1.442695
        %v2836 = vpow.pop %v2835
        %v2837 = vmul.f32 %v2834, 1.442695
        %v2838 = vpow.pop %v2837
        %v2839 = vsel %vm1730, %v2836, 0.0
        %2840 = vadd.xlane.f32.xlu0 %v2839
        %v2841 = vpop.xlane.xlu0 %2840
        %v2842 = vsel %vm1730, %v2838, 0.0
        %2843 = vadd.xlane.f32.xlu0 %v2842
        %v2844 = vpop.xlane.xlu0 %2843
        %v2845 = vrcp.pop %v2841
        %v2846 = vrcp.pop %v2844
        %v2847 = vmul.f32 %v2836, %v2845
        %v2848 = vmul.f32 %v2838, %v2846
        %v2850 = vsel %vm1730, %v2847, 0
        %v2853 = vsel %vm1730, %v2848, 0
        %2855 = vmatprep.subr.mxu0 0.0
        %2856 = vmatpush1.msra.mxu0 %v2710
        %2857 = vmatprep.subr.mxu0 0.0
        %2858 = vmatpush1.msra.mxu0 %v2711
        %2859 = vmatprep.subr.mxu0 0.0
        %2860 = vmatpush1.msra.mxu0 0.0
        %2861 = vmatprep.subr.mxu0 0.0
        %2862 = vmatpush1.msra.mxu0 0.0
        %2863 = vmatprep.subr.mxu0 0.0
        %2864 = vmatpush1.msra.mxu0 0.0
        %2865 = vmatprep.subr.mxu0 0.0
        %2866 = vmatpush1.msra.mxu0 0.0
        %2867 = vmatprep.subr.mxu0 0.0
        %2868 = vmatpush1.msra.mxu0 0.0
        %2869 = vmatprep.subr.mxu0 0.0
        %2870 = vmatpush1.msra.mxu0 0.0
        %2871 = vmatprep.subr.mxu0 0.0
        %2872 = vmatpush1.msra.mxu0 0.0
        %2873 = vmatprep.subr.mxu0 0.0
        %2874 = vmatpush1.msra.mxu0 0.0
        %2875 = vmatprep.subr.mxu0 0.0
        %2876 = vmatpush1.msra.mxu0 0.0
        %2877 = vmatprep.subr.mxu0 0.0
        %2878 = vmatpush1.msra.mxu0 0.0
        %2879 = vmatprep.subr.mxu0 0.0
        %2880 = vmatpush1.msra.mxu0 0.0
        %2881 = vmatprep.subr.mxu0 0.0
        %2882 = vmatpush1.msra.mxu0 0.0
        %2883 = vmatprep.subr.mxu0 0.0
        %2884 = vmatpush1.msra.mxu0 0.0
        %2885 = vmatprep.subr.mxu0 0.0
        %2886 = vmatpush1.msra.mxu0 0.0
        %2887 = vmatprep.subr.mxu0 0.0
        %2888 = vmatpush1.msra.mxu0 0.0
        %2889 = vmatprep.subr.mxu0 0.0
        %2890 = vmatpush1.msra.mxu0 0.0
        %2891 = vmatprep.subr.mxu0 0.0
        %2892 = vmatpush1.msra.mxu0 0.0
        %2893 = vmatprep.subr.mxu0 0.0
        %2894 = vmatpush1.msra.mxu0 0.0
        %2895 = vmatprep.subr.mxu0 0.0
        %2896 = vmatpush1.msra.mxu0 0.0
        %2897 = vmatprep.subr.mxu0 0.0
        %2898 = vmatpush1.msra.mxu0 0.0
        %2899 = vmatprep.subr.mxu0 0.0
        %2900 = vmatpush1.msra.mxu0 0.0
        %2901 = vmatprep.subr.mxu0 0.0
        %2902 = vmatpush1.msra.mxu0 0.0
        %2903 = vmatprep.subr.mxu0 0.0
        %2904 = vmatpush1.msra.mxu0 0.0
        %2905 = vmatprep.subr.mxu0 0.0
        %2906 = vmatpush1.msra.mxu0 0.0
        %2907 = vmatprep.subr.mxu0 0.0
        %2908 = vmatpush1.msra.mxu0 0.0
        %2909 = vmatprep.subr.mxu0 0.0
        %2910 = vmatpush1.msra.mxu0 0.0
        %2911 = vmatprep.subr.mxu0 0.0
        %2912 = vmatpush1.msra.mxu0 0.0
        %2913 = vmatprep.subr.mxu0 0.0
        %2914 = vmatpush1.msra.mxu0 0.0
        %2915 = vmatprep.subr.mxu0 0.0
        %2916 = vmatpush1.msra.mxu0 0.0
        %2917 = vmatprep.subr.mxu0 0.0
        %2918 = vmatpush1.msra.mxu0 0.0
        %2919 = vmatprep.mubr.f32.mxu0 0.0
        %2920 = vmatmul.mubr.f32.gmra.mrb[0].mxu0 %v2850
        %v2921 = vpop.f32.mrb[0].mxu0
        %v2922 = vadd.f32 %v2724, %v2921
        %v2923 = vpop.f32.mrb[0].mxu0
        %2924 = vmatprep.mubr.f32.mxu0 0.0
        %2925 = vmatmul.mubr.f32.gmra.mrb[0].mxu0 %v2853
        %v2926 = vpop.f32.mrb[0].mxu0
        %v2927 = vadd.f32 %v2725, %v2926
        %v2928 = vpop.f32.mrb[0].mxu0
        %2929 = vdwg.mxu0
        %2930 = vxpose.xlu0.b32.start [1/16] %v2922, 128
        %2931 = vxpose.xlu0.b32.cont [2/16] %v2927, 128
        %2932 = vxpose.xlu0.b32.cont [3/16] 0.0, 128
        %2933 = vxpose.xlu0.b32.cont [4/16] 0.0, 128
        %2934 = vxpose.xlu0.b32.cont [5/16] 0.0, 128
        %2935 = vxpose.xlu0.b32.cont [6/16] 0.0, 128
        %2936 = vxpose.xlu0.b32.cont [7/16] 0.0, 128
        %2937 = vxpose.xlu0.b32.cont [8/16] 0.0, 128
        %2938 = vxpose.xlu0.b32.cont [9/16] 0.0, 128
        %2939 = vxpose.xlu0.b32.cont [10/16] 0.0, 128
        %2940 = vxpose.xlu0.b32.cont [11/16] 0.0, 128
        %2941 = vxpose.xlu0.b32.cont [12/16] 0.0, 128
        %2942 = vxpose.xlu0.b32.cont [13/16] 0.0, 128
        %2943 = vxpose.xlu0.b32.cont [14/16] 0.0, 128
        %2944 = vxpose.xlu0.b32.cont [15/16] 0.0, 128
        %2945 = vxpose.xlu0.b32.end [16/16] 0.0, 128
        %v2946 = vpop.trf.xlu0
        %v2947 = vpop.trf.xlu0
        %v2948 = vpop.trf.xlu0
        %v2949 = vpop.trf.xlu0
        %v2950 = vpop.trf.xlu0
        %v2951 = vpop.trf.xlu0
        %v2952 = vpop.trf.xlu0
        %v2953 = vpop.trf.xlu0
        %v2954 = vpop.trf.xlu0
        %v2955 = vpop.trf.xlu0
        %v2956 = vpop.trf.xlu0
        %v2957 = vpop.trf.xlu0
        %v2958 = vpop.trf.xlu0
        %v2959 = vpop.trf.xlu0
        %v2960 = vpop.trf.xlu0
        %v2961 = vpop.trf.xlu0
        %2964 = vrot.lane.b32.xlu0 %v2922, 112
        %v2965 = vpop.permute.xlu0 %2964
        %2966 = vrot.lane.b32.xlu0 %v2927, 112
        %v2967 = vpop.permute.xlu0 %2966
        %2970 = vxpose.xlu0.b32.start [1/16] %v2965, 128
        %2971 = vxpose.xlu0.b32.cont [2/16] %v2967, 128
        %2972 = vxpose.xlu0.b32.cont [3/16] 0.0, 128
        %2973 = vxpose.xlu0.b32.cont [4/16] 0.0, 128
        %2974 = vxpose.xlu0.b32.cont [5/16] 0.0, 128
        %2975 = vxpose.xlu0.b32.cont [6/16] 0.0, 128
        %2976 = vxpose.xlu0.b32.cont [7/16] 0.0, 128
        %2977 = vxpose.xlu0.b32.cont [8/16] 0.0, 128
        %2978 = vxpose.xlu0.b32.cont [9/16] 0.0, 128
        %2979 = vxpose.xlu0.b32.cont [10/16] 0.0, 128
        %2980 = vxpose.xlu0.b32.cont [11/16] 0.0, 128
        %2981 = vxpose.xlu0.b32.cont [12/16] 0.0, 128
        %2982 = vxpose.xlu0.b32.cont [13/16] 0.0, 128
        %2983 = vxpose.xlu0.b32.cont [14/16] 0.0, 128
        %2984 = vxpose.xlu0.b32.cont [15/16] 0.0, 128
        %2985 = vxpose.xlu0.b32.end [16/16] 0.0, 128
        %v2986 = vpop.trf.xlu0
        %v2987 = vpop.trf.xlu0
        %v2988 = vpop.trf.xlu0
        %v2989 = vpop.trf.xlu0
        %v2990 = vpop.trf.xlu0
        %v2991 = vpop.trf.xlu0
        %v2992 = vpop.trf.xlu0
        %v2993 = vpop.trf.xlu0
        %v2994 = vpop.trf.xlu0
        %v2995 = vpop.trf.xlu0
        %v2996 = vpop.trf.xlu0
        %v2997 = vpop.trf.xlu0
        %v2998 = vpop.trf.xlu0
        %v2999 = vpop.trf.xlu0
        %v3000 = vpop.trf.xlu0
        %v3001 = vpop.trf.xlu0
        %3004 = vrot.lane.b32.xlu0 %v2986, 16
        %v3005 = vpop.permute.xlu0 %3004
        %3006 = vrot.lane.b32.xlu0 %v2987, 16
        %v3007 = vpop.permute.xlu0 %3006
        %v3010 = vsel %vm1730, %v2946, %v3005
        %v3011 = vsel %vm1730, %v2947, %v3007
        %3014 = vrot.lane.b32.xlu0 %v2538, 32
        %v3015 = vpop.permute.xlu0 %3014
        %3016 = vrot.lane.b32.xlu0 %v2543, 32
        %v3017 = vpop.permute.xlu0 %3016
        %v3020 = vsel %vm1614, %v1828, %v3015
        %v3021 = vsel %vm1614, %v1833, %v3017
        %3024 = vrot.lane.b32.xlu0 %v3010, 32
        %v3025 = vpop.permute.xlu0 %3024
        %3026 = vrot.lane.b32.xlu0 %v3011, 32
        %v3027 = vpop.permute.xlu0 %3026
        %v3030 = vsel %vm1614, %v2302, %v3025
        %v3031 = vsel %vm1614, %v2303, %v3027
        %3034 = vrot.lane.b32.xlu0 %v3030, 64
        %v3035 = vpop.permute.xlu0 %3034
        %3036 = vrot.lane.b32.xlu0 %v3031, 64
        %v3037 = vpop.permute.xlu0 %3036
        %v3040 = vsel %vm1501, %v3020, %v3035
        %v3041 = vsel %vm1501, %v3021, %v3037
        %3042 = vmatprep.subr.mxu0 0.0
        %3043 = vmatpush1.msra.mxu0 %v1506
        %3044 = vmatprep.subr.mxu0 0.0
        %3045 = vmatpush1.msra.mxu0 %v1507
        %3046 = vmatprep.subr.mxu0 0.0
        %3047 = vmatpush1.msra.mxu0 %v1508
        %3048 = vmatprep.subr.mxu0 0.0
        %3049 = vmatpush1.msra.mxu0 %v1509
        %3050 = vmatprep.subr.mxu0 0.0
        %3051 = vmatpush1.msra.mxu0 %v1510
        %3052 = vmatprep.subr.mxu0 0.0
        %3053 = vmatpush1.msra.mxu0 %v1511
        %3054 = vmatprep.subr.mxu0 0.0
        %3055 = vmatpush1.msra.mxu0 %v1512
        %3056 = vmatprep.subr.mxu0 0.0
        %3057 = vmatpush1.msra.mxu0 %v1513
        %3058 = vmatprep.subr.mxu0 0.0
        %3059 = vmatpush1.msra.mxu0 %v1514
        %3060 = vmatprep.subr.mxu0 0.0
        %3061 = vmatpush1.msra.mxu0 %v1515
        %3062 = vmatprep.subr.mxu0 0.0
        %3063 = vmatpush1.msra.mxu0 %v1516
        %3064 = vmatprep.subr.mxu0 0.0
        %3065 = vmatpush1.msra.mxu0 %v1517
        %3066 = vmatprep.subr.mxu0 0.0
        %3067 = vmatpush1.msra.mxu0 %v1518
        %3068 = vmatprep.subr.mxu0 0.0
        %3069 = vmatpush1.msra.mxu0 %v1519
        %3070 = vmatprep.subr.mxu0 0.0
        %3071 = vmatpush1.msra.mxu0 %v1520
        %3072 = vmatprep.subr.mxu0 0.0
        %3073 = vmatpush1.msra.mxu0 %v1521
        %3074 = vmatprep.subr.mxu0 0.0
        %3075 = vmatpush1.msra.mxu0 0.0
        %3076 = vmatprep.subr.mxu0 0.0
        %3077 = vmatpush1.msra.mxu0 0.0
        %3078 = vmatprep.subr.mxu0 0.0
        %3079 = vmatpush1.msra.mxu0 0.0
        %3080 = vmatprep.subr.mxu0 0.0
        %3081 = vmatpush1.msra.mxu0 0.0
        %3082 = vmatprep.subr.mxu0 0.0
        %3083 = vmatpush1.msra.mxu0 0.0
        %3084 = vmatprep.subr.mxu0 0.0
        %3085 = vmatpush1.msra.mxu0 0.0
        %3086 = vmatprep.subr.mxu0 0.0
        %3087 = vmatpush1.msra.mxu0 0.0
        %3088 = vmatprep.subr.mxu0 0.0
        %3089 = vmatpush1.msra.mxu0 0.0
        %3090 = vmatprep.subr.mxu0 0.0
        %3091 = vmatpush1.msra.mxu0 0.0
        %3092 = vmatprep.subr.mxu0 0.0
        %3093 = vmatpush1.msra.mxu0 0.0
        %3094 = vmatprep.subr.mxu0 0.0
        %3095 = vmatpush1.msra.mxu0 0.0
        %3096 = vmatprep.subr.mxu0 0.0
        %3097 = vmatpush1.msra.mxu0 0.0
        %3098 = vmatprep.subr.mxu0 0.0
        %3099 = vmatpush1.msra.mxu0 0.0
        %3100 = vmatprep.subr.mxu0 0.0
        %3101 = vmatpush1.msra.mxu0 0.0
        %3102 = vmatprep.subr.mxu0 0.0
        %3103 = vmatpush1.msra.mxu0 0.0
        %3104 = vmatprep.subr.mxu0 0.0
        %3105 = vmatpush1.msra.mxu0 0.0
        %3106 = vmatprep.mubr.f32.mxu0 0.0
        %3107 = vmatmul.mubr.f32.gmra.mrb[0].mxu0 %v3040
        %v3108 = vpop.f32.mrb[0].mxu0
        %v3109 = vadd.f32 0.0, %v3108
        %v3110 = vpop.f32.mrb[0].mxu0
        %3111 = vmatprep.mubr.f32.mxu0 0.0
        %3112 = vmatmul.mubr.f32.gmra.mrb[0].mxu0 %v3041
        %v3113 = vpop.f32.mrb[0].mxu0
        %v3114 = vadd.f32 0.0, %v3113
        %v3115 = vpop.f32.mrb[0].mxu0
        %3116 = vdwg.mxu0
        %3119 = vrot.lane.b32.xlu0 %v3109, 64
        %v3120 = vpop.permute.xlu0 %3119
        %3121 = vrot.lane.b32.xlu0 %v3114, 64
        %v3122 = vpop.permute.xlu0 %3121
        %v3125 = vadd.f32 %v3109, %v3120
        %v3126 = vadd.f32 %v3114, %v3122
        %v3127 = vmul.f32 %v1522, 2.0
        %v3129 = vlaneseq
        %v3130 = vshrl.u32 %v3129, 7
        %v3131 = vsub.s32 0, %v3130
        %v3132 = vrot.slane %v3127, %v3131
        %v3134 = vadd.f32 %v3125, %v3132
        %v3135 = vadd.f32 %v3126, %v3132
        %v3136 = vadd.f32 %v3134, %v377
        %v3137 = vadd.f32 %v3135, %v378
        %3140 = vrot.lane.b32.xlu0 %v377, 64
        %v3141 = vpop.permute.xlu0 %3140
        %3142 = vrot.lane.b32.xlu0 %v378, 64
        %v3143 = vpop.permute.xlu0 %3142
        %v3146 = vadd.f32 %v3136, %v3141
        %v3147 = vadd.f32 %v3137, %v3143
        %3148 = vst.msk [vmem:[%s376] sm:$0xff] %vm1501, %v3146
        %3149 = vst.msk [vmem:[%s376 + $0x8] sm:$0xff] %vm1501, %v3147
        %p3150 = scmp.lt.s32.totalorder %s22, 1
        %s3151 = scalar_select %p3150, %s22, 1
        %s3152 = smul.addr %s3151, 2
        %s3153 = smul.addr %s3152, 8
        %s3154 = scalar_lea.vmem %s9, %s3153
        // Predicated region
        $region69: #{forward.1} parent=55 // pred_check
          %p3155 = pneg %p234
        $region70: #{forward.1} parent=55 // pred_check_branch
          %3157 = sbr.rel (%p3155) target = $region72
        $region71: #{forward.1} parent=55 // pred_region
          _
        $region72: #{forward.1} parent=55 // pred_fallthru
          _
      $region56: #{forward.1} parent=5 // pred_fallthru
        _
      %p3158 = scmp.le.s32.totalorder 2, %s17
      // Predicated region
      $region73: #{forward.1} parent=5 // pred_check
        %p3159 = pneg %p3158
      $region74: #{forward.1} parent=5 // pred_check_branch
        %3161 = sbr.rel (%p3159) target = $region76
      $region75: #{forward.1} parent=5 // pred_region
        %s3162 = ssub.s32 %s17, 2
        // Predicated region
        $region77: #{forward.1} parent=75 // pred_check
          %p3163 = pneg %p240
        $region78: #{forward.1} parent=75 // pred_check_branch
          %3165 = sbr.rel (%p3163) target = $region80
        $region79: #{forward.1} parent=75 // pred_region
          %p3166 = scmp.lt.s32.totalorder %s23, 1
          %s3167 = scalar_select %p3166, %s23, 1
          %s3168 = smul.addr %s3167, 2
          %s3169 = smul.addr %s3168, 8
          %s3170 = scalar_lea.vmem %s9, %s3169
        $region80: #{forward.1} parent=75 // pred_fallthru
          _
      $region76: #{forward.1} parent=5 // pred_fallthru
        _
    $region6: #{forward.1} parent=1 // loop_footer
      %s21 = sadd.s32 1, %s17
    $region7: #{forward.1} parent=1 // loop_footer_branch
      %16 = sbr.rel target = $region3
    $region8: #{forward.1} parent=1 // loop_exit
      _
    %3171 = vsyncpa [#allocation3], 1
    %s3172 = scalar_lea.sflag [#allocation3], 1
    %3173 = vsyncpa %s3172, 1
    %3174 = vsyncpa [#allocation5], 1

</llo_original>
